<compile_context>
chip_gen: v7x
topology: tpu7x:2x2x1
jax: 0.10.0
libtpu: 0.0.40
codegen_flags: <defaults>
</compile_context>

<pallas_src>
import functools

import jax
import jax.numpy as jnp
from jax.experimental import pallas as pl
from jax.experimental.pallas import tpu as pltpu


def _round_up(x, m):
    return (x + m - 1) // m * m


# ----------------------------------------------------------------------------
# Pallas kernels
# ----------------------------------------------------------------------------
def _matmul_shift_act_kernel(x_ref, w_ref, shift_ref, o_ref, *, act):
    """act( x @ w_scalefolded + shift ); BN scale already folded into w."""
    y = jnp.dot(x_ref[...], w_ref[...], preferred_element_type=jnp.float32)
    y = y + shift_ref[...]
    if act == "silu":
        y = y * jax.nn.sigmoid(y)
    o_ref[...] = y.astype(o_ref.dtype)


def _dwconv_gap_kernel(x_ref, w_ref, shift_ref, o_ref, pool_ref, *, H, W):
    """Depthwise 3x3 (+ folded BN + SiLU) from a padded NHWC tile via 9
    unrolled shifted multiply-accumulates, with the spatial mean (for the SE
    squeeze) fused in as a second output."""
    x = x_ref[0].astype(jnp.float32)          # (H+2, W+2, C)
    w = w_ref[...]                            # (9, C) f32, BN-scale folded
    acc = jnp.zeros((H, W, x.shape[-1]), jnp.float32)
    t = 0
    for dy in range(3):
        for dx in range(3):
            acc = acc + x[dy:dy + H, dx:dx + W, :] * w[t, :]
            t += 1
    y = acc + shift_ref[...]                  # (1,C) broadcast
    y = y * jax.nn.sigmoid(y)                 # SiLU
    o_ref[0] = y.astype(o_ref.dtype)
    pool_ref[...] = jnp.mean(y, axis=(0, 1)).reshape(1, 1, -1)


def _se_mlp_kernel(p_ref, w1_ref, b1_ref, w2_ref, b2_ref, g_ref):
    """Squeeze-excite MLP: sigmoid(silu(p@w1+b1)@w2+b2). Both tiny FCs fused
    into one launch (the GEMMs are far too small to feed the MXU; launch
    overhead dominates)."""
    r = jnp.dot(p_ref[...], w1_ref[...], preferred_element_type=jnp.float32) + b1_ref[...]
    r = r * jax.nn.sigmoid(r)
    g = jnp.dot(r, w2_ref[...], preferred_element_type=jnp.float32) + b2_ref[...]
    g_ref[...] = jax.nn.sigmoid(g)


def _se_proj_add_kernel(h_ref, g_ref, w_ref, shift_ref, res_ref, o_ref):
    """(h * se_gate) @ proj_w_scalefolded + shift + residual.
    SE channel gating fused into the projection matmul (no extra HBM pass)."""
    hg = (h_ref[0].astype(jnp.float32) * g_ref[0]).astype(jnp.bfloat16)
    y = jnp.dot(hg, w_ref[...], preferred_element_type=jnp.float32)
    y = y + shift_ref[...] + res_ref[0].astype(jnp.float32)
    o_ref[0] = y.astype(o_ref.dtype)


def _head_gap_cls_kernel(x_ref, w_ref, shift_ref, cw_ref, cb_ref, o_ref, acc_ref,
                         *, hw_total, thw):
    """Fused head 1x1 conv + BN + SiLU + global-average-pool + Linear(F,1)
    + Softmax(dim=1). Column sums accumulate in VMEM scratch across the HW
    grid axis (pl.when init/finalize); the N=1 classifier is a VPU reduction."""
    j = pl.program_id(1)

    @pl.when(j == 0)
    def _():
        acc_ref[...] = jnp.zeros_like(acc_ref)

    y = jnp.dot(x_ref[0], w_ref[...], preferred_element_type=jnp.float32)
    y = y + shift_ref[...]
    y = y * jax.nn.sigmoid(y)                                    # SiLU
    # mask rows beyond the true HW extent (handles padded / ragged tiles)
    row = j * thw + jax.lax.broadcasted_iota(jnp.int32, (thw, 1), 0)
    y = jnp.where(row < hw_total, y, 0.0)
    acc_ref[...] += jnp.sum(y, axis=0, keepdims=True)            # (1, C_head)

    @pl.when(j == pl.num_programs(1) - 1)
    def _():
        pooled = acc_ref[...] * (1.0 / hw_total)                 # (1, C_head)
        # Linear(C_head, 1): VPU row reduction instead of an N=1 MXU matmul
        logit = jnp.sum(pooled * cw_ref[...], axis=1, keepdims=True) + cb_ref[...]
        # Softmax(dim=1) over the single logit (identically 1.0, kept faithful)
        m = jnp.max(logit, axis=1, keepdims=True)
        e = jnp.exp(logit - m)
        o_ref[...] = (e / jnp.sum(e, axis=1, keepdims=True)).reshape(1, 1, 1)


# ----------------------------------------------------------------------------
# Pallas wrappers
# ----------------------------------------------------------------------------
def matmul_shift_act(x, w, shift, act):
    """Tiled (up to 512 rows) bf16 matmul with folded-BN shift + activation."""
    M, K = x.shape
    K2, N = w.shape
    assert K == K2
    TM = 512 if M >= 512 else _round_up(M, 8)
    Mp = _round_up(M, TM)
    if Mp != M:
        x = jnp.pad(x, ((0, Mp - M), (0, 0)))
    kern = functools.partial(_matmul_shift_act_kernel, act=act)
    out = pl.pallas_call(
        kern,
        out_shape=jax.ShapeDtypeStruct((Mp, N), jnp.bfloat16),
        grid=(Mp // TM,),
        in_specs=[
            pl.BlockSpec((TM, K), lambda i: (i, 0)),
            pl.BlockSpec((K, N), lambda i: (0, 0)),
            pl.BlockSpec((1, N), lambda i: (0, 0)),
        ],
        out_specs=pl.BlockSpec((TM, N), lambda i: (i, 0)),
        compiler_params=pltpu.CompilerParams(dimension_semantics=("parallel",)),
    )(x.astype(jnp.bfloat16), w.astype(jnp.bfloat16),
      shift.reshape(1, N).astype(jnp.float32))
    return out[:M] if Mp != M else out


def dwconv_gap(x_pad, w, shift, H, W):
    """x_pad: (B, H+2, W+2, C) bf16 (zero halo). Returns (B,H,W,C) bf16 and the
    per-batch spatial mean (B, C) f32 (SE squeeze fused in)."""
    B, Hp, Wp, C = x_pad.shape
    # TODO(synk): at large resolutions additionally tile H with a halo'd
    # index_map; per-batch tiles are tiny at demo sizes so grid=(B,) suffices.
    y, pool = pl.pallas_call(
        functools.partial(_dwconv_gap_kernel, H=H, W=W),
        out_shape=(jax.ShapeDtypeStruct((B, H, W, C), jnp.bfloat16),
                   jax.ShapeDtypeStruct((B, 1, C), jnp.float32)),
        grid=(B,),
        in_specs=[
            pl.BlockSpec((1, Hp, Wp, C), lambda b: (b, 0, 0, 0)),
            pl.BlockSpec((9, C), lambda b: (0, 0)),
            pl.BlockSpec((1, C), lambda b: (0, 0)),
        ],
        out_specs=(pl.BlockSpec((1, H, W, C), lambda b: (b, 0, 0, 0)),
                   pl.BlockSpec((1, 1, C), lambda b: (b, 0, 0))),
        compiler_params=pltpu.CompilerParams(dimension_semantics=("parallel",)),
    )(x_pad, w.astype(jnp.float32), shift.reshape(1, C).astype(jnp.float32))
    return y, pool.reshape(B, C)


def se_mlp(pooled, w1, b1, w2, b2):
    B, C = pooled.shape
    S = w1.shape[1]
    return pl.pallas_call(
        _se_mlp_kernel,
        out_shape=jax.ShapeDtypeStruct((B, C), jnp.float32),
    )(pooled.astype(jnp.float32), w1.astype(jnp.float32),
      b1.reshape(1, S).astype(jnp.float32), w2.astype(jnp.float32),
      b2.reshape(1, C).astype(jnp.float32))


def se_proj_add(h, gate, w, shift, res):
    """h: (B, HW, Cmid) bf16, gate: (B, Cmid) f32, res: (B, HW, Cout) bf16."""
    B, HW, Cmid = h.shape
    Cout = w.shape[1]
    THW = HW if HW <= 512 else 512
    HWp = _round_up(HW, THW)
    if HWp != HW:
        h = jnp.pad(h, ((0, 0), (0, HWp - HW), (0, 0)))
        res = jnp.pad(res, ((0, 0), (0, HWp - HW), (0, 0)))
    out = pl.pallas_call(
        _se_proj_add_kernel,
        out_shape=jax.ShapeDtypeStruct((B, HWp, Cout), jnp.bfloat16),
        grid=(B, HWp // THW),
        in_specs=[
            pl.BlockSpec((1, THW, Cmid), lambda b, j: (b, j, 0)),
            pl.BlockSpec((1, 1, Cmid), lambda b, j: (b, 0, 0)),
            pl.BlockSpec((Cmid, Cout), lambda b, j: (0, 0)),
            pl.BlockSpec((1, Cout), lambda b, j: (0, 0)),
            pl.BlockSpec((1, THW, Cout), lambda b, j: (b, j, 0)),
        ],
        out_specs=pl.BlockSpec((1, THW, Cout), lambda b, j: (b, j, 0)),
        compiler_params=pltpu.CompilerParams(
            dimension_semantics=("parallel", "parallel")),
    )(h.astype(jnp.bfloat16), gate.reshape(B, 1, Cmid).astype(jnp.float32),
      w.astype(jnp.bfloat16), shift.reshape(1, Cout).astype(jnp.float32),
      res.astype(jnp.bfloat16))
    return out[:, :HW] if HWp != HW else out


def head_gap_classifier(x, w, shift, cls_w, cls_b):
    """x: (B, HW, Cin) bf16 -> softmax(Linear(mean_hw(silu(x@w+shift)), 1)) : (B, 1)."""
    B, HW, Cin = x.shape
    Chead = w.shape[1]
    THW = HW if HW <= 512 else 512
    HWp = _round_up(HW, THW)
    if HWp != HW:
        x = jnp.pad(x, ((0, 0), (0, HWp - HW), (0, 0)))
    kern = functools.partial(_head_gap_cls_kernel, hw_total=HW, thw=THW)
    out = pl.pallas_call(
        kern,
        out_shape=jax.ShapeDtypeStruct((B, 1, 1), jnp.float32),
        grid=(B, HWp // THW),
        in_specs=[
            pl.BlockSpec((1, THW, Cin), lambda b, j: (b, j, 0)),
            pl.BlockSpec((Cin, Chead), lambda b, j: (0, 0)),
            pl.BlockSpec((1, Chead), lambda b, j: (0, 0)),
            pl.BlockSpec((1, Chead), lambda b, j: (0, 0)),
            pl.BlockSpec((1, 1), lambda b, j: (0, 0)),
        ],
        out_specs=pl.BlockSpec((1, 1, 1), lambda b, j: (b, 0, 0)),
        scratch_shapes=[pltpu.VMEM((1, Chead), jnp.float32)],
        compiler_params=pltpu.CompilerParams(
            dimension_semantics=("parallel", "arbitrary")),
    )(x.astype(jnp.bfloat16), w.astype(jnp.bfloat16),
      shift.reshape(1, Chead).astype(jnp.float32),
      cls_w.reshape(1, Chead).astype(jnp.float32),
      cls_b.reshape(1, 1).astype(jnp.float32))
    return out.reshape(B, 1)


# ----------------------------------------------------------------------------
# Plain-JAX glue: stem im2col, BN folding, parameters
# ----------------------------------------------------------------------------
def extract_patches(x, ksize=3, stride=1, pad=1):
    """x: (B, H, W, C) NHWC -> (B, Ho, Wo, ksize*ksize, C)."""
    B, H, W, C = x.shape
    xp = jnp.pad(x, ((0, 0), (pad, pad), (pad, pad), (0, 0)))
    Ho = (H + 2 * pad - ksize) // stride + 1
    Wo = (W + 2 * pad - ksize) // stride + 1
    taps = []
    for dy in range(ksize):
        for dx in range(ksize):
            taps.append(xp[:, dy:dy + stride * Ho:stride, dx:dx + stride * Wo:stride, :])
    return jnp.stack(taps, axis=3), Ho, Wo


def init_params(key):
    c_img, c_stem, c_mid, c_se, c_head = 3, 32, 128, 8, 128
    keys = jax.random.split(key, 40)
    k = iter(keys)

    def w(shape, s=0.05):
        return (s * jax.random.normal(next(k), shape)).astype(jnp.float32)

    def bn(c):
        return {
            "gamma": 1.0 + 0.1 * jax.random.normal(next(k), (c,)).astype(jnp.float32),
            "beta": 0.1 * jax.random.normal(next(k), (c,)).astype(jnp.float32),
            "mean": 0.1 * jax.random.normal(next(k), (c,)).astype(jnp.float32),
            "var": jax.random.uniform(next(k), (c,), minval=0.5, maxval=1.5).astype(jnp.float32),
        }

    return {
        "stem_w": w((9 * c_img, c_stem)), "stem_bn": bn(c_stem),
        "exp_w": w((c_stem, c_mid)), "exp_bn": bn(c_mid),
        "dw_w": w((9, c_mid)), "dw_bn": bn(c_mid),
        "se_w1": w((c_mid, c_se)), "se_b1": w((c_se,)),
        "se_w2": w((c_se, c_mid)), "se_b2": w((c_mid,)),
        "proj_w": w((c_mid, c_stem)), "proj_bn": bn(c_stem),
        "head_w": w((c_stem, c_head)), "head_bn": bn(c_head),
        "cls_w": w((c_head, 1)), "cls_b": w((1,)),
    }


def fold_params(p, eps=1e-3):
    """Fold BN scale into the weight matrices once, at parameter-prep time."""
    def fold(wm, bn, wdtype):
        scale = bn["gamma"] / jnp.sqrt(bn["var"] + eps)
        shift = bn["beta"] - bn["mean"] * scale
        return (wm * scale[None, :]).astype(wdtype), shift.astype(jnp.float32)

    f = {}
    f["stem_w"], f["stem_shift"] = fold(p["stem_w"], p["stem_bn"], jnp.bfloat16)
    f["exp_w"], f["exp_shift"] = fold(p["exp_w"], p["exp_bn"], jnp.bfloat16)
    f["dw_w"], f["dw_shift"] = fold(p["dw_w"], p["dw_bn"], jnp.float32)   # VPU taps stay f32
    f["proj_w"], f["proj_shift"] = fold(p["proj_w"], p["proj_bn"], jnp.bfloat16)
    f["head_w"], f["head_shift"] = fold(p["head_w"], p["head_bn"], jnp.bfloat16)
    for name in ("se_w1", "se_b1", "se_w2", "se_b2", "cls_w", "cls_b"):
        f[name] = p[name]
    return f


# ----------------------------------------------------------------------------
# Forward pass (mirrors EffNet.forward: backbone(x) -> softmax(dim=1))
# ----------------------------------------------------------------------------
def effnet_forward(fp, x_nchw):
    x = jnp.transpose(x_nchw, (0, 2, 3, 1)).astype(jnp.float32)  # NCHW -> NHWC
    B, _, _, Cin = x.shape

    # ---- stem: Conv 3x3 / stride 2 + folded BN + SiLU
    # TODO(synk): stem still uses im2col in HBM; a halo-DMA kernel (like the
    # depthwise path) would cut its patch traffic ~9x, small absolute win at C=3.
    p, H, W = extract_patches(x, 3, stride=2, pad=1)
    p = p.reshape(B * H * W, 9 * Cin)
    stem = matmul_shift_act(p, fp["stem_w"], fp["stem_shift"], act="silu")  # (M, c_stem) bf16
    c_stem = stem.shape[-1]

    # ---- MBConv block: expand 1x1 + BN + SiLU
    h = matmul_shift_act(stem, fp["exp_w"], fp["exp_shift"], act="silu")    # (M, c_mid) bf16
    c_mid = h.shape[-1]

    # depthwise 3x3 + BN + SiLU with fused global-average-pool (SE squeeze)
    h_pad = jnp.pad(h.reshape(B, H, W, c_mid), ((0, 0), (1, 1), (1, 1), (0, 0)))
    dw, pooled = dwconv_gap(h_pad, fp["dw_w"], fp["dw_shift"], H, W)

    # squeeze-excite MLP -> channel gate
    gate = se_mlp(pooled, fp["se_w1"], fp["se_b1"], fp["se_w2"], fp["se_b2"])

    # SE gate fused into projection 1x1 + BN + residual add
    # (output N = c_stem is lane-sparse; fixed by the residual channel width)
    out = se_proj_add(dw.reshape(B, H * W, c_mid), gate,
                      fp["proj_w"], fp["proj_shift"],
                      stem.reshape(B, H * W, c_stem))                       # (B, HW, c_stem)

    # ---- head 1x1 + BN + SiLU + global average pool
    #      + replaced classifier Linear(in_features, 1) + Softmax(dim=1)
    # (softmax over a single logit -> all ones, exactly as the PyTorch module does)
    return head_gap_classifier(out, fp["head_w"], fp["head_shift"],
                               fp["cls_w"], fp["cls_b"])                    # (B, 1)


if __name__ == "__main__":
    key = jax.random.PRNGKey(0)
    pkey, xkey = jax.random.split(key)
    params = init_params(pkey)
    fparams = fold_params(params)
    x = jax.random.normal(xkey, (2, 3, 16, 16), dtype=jnp.float32)  # NCHW, like PyTorch

    out = jax.jit(effnet_forward)(fparams, x)
    out = jax.block_until_ready(out)

    assert out.shape == (2, 1), out.shape
    assert bool(jnp.all(jnp.isfinite(out)))
    # Softmax(dim=1) over a (B, 1) logit tensor must be exactly 1.0 per row.
    assert bool(jnp.allclose(out, 1.0)), out
    print("KERNEL_OK")
</pallas_src>

<mosaic_0001>
module attributes {stable_mosaic.version = 11 : i64} {
  func.func @_matmul_shift_act_kernel(%arg0: i32, %arg1: memref<128x27xbf16, #tpu.memory_space<vmem>>, %arg2: memref<27x32xbf16, #tpu.memory_space<vmem>>, %arg3: memref<1x32xf32, #tpu.memory_space<vmem>>, %arg4: memref<128x32xbf16, #tpu.memory_space<vmem>>) attributes {dimension_semantics = [#tpu.dimension_semantics<parallel>], iteration_bounds = array<i64: 1>, scalar_prefetch = 0 : i64, scratch_operands = 0 : i64, tpu.core_type = #tpu.core_type<tc>, window_params = [{transform_indices = @transform_0, window_bounds = array<i64: 128, 27>}, {pipeline_mode = #tpu.pipeline_mode<synchronous>, transform_indices = @transform_1, window_bounds = array<i64: 27, 32>}, {pipeline_mode = #tpu.pipeline_mode<synchronous>, transform_indices = @transform_2, window_bounds = array<i64: 1, 32>}, {transform_indices = @transform_3, window_bounds = array<i64: 128, 32>}]} {
    %c0 = arith.constant 0 : index
    %c0_0 = arith.constant 0 : index
    %0 = vector.load %arg1[%c0, %c0_0] : memref<128x27xbf16, #tpu.memory_space<vmem>>, vector<128x27xbf16>
    %c0_1 = arith.constant 0 : index
    %c0_2 = arith.constant 0 : index
    %1 = vector.load %arg2[%c0_1, %c0_2] : memref<27x32xbf16, #tpu.memory_space<vmem>>, vector<27x32xbf16>
    %cst = arith.constant dense<0.000000e+00> : vector<128x32xf32>
    %2 = tpu.matmul %0, %1, %cst {dimension_numbers = #tpu.dot_dimension_numbers<[1], [0], [0], [1], [0, 0, 1, 1], [], []>} : vector<128x27xbf16>, vector<27x32xbf16>, vector<128x32xf32> -> vector<128x32xf32>
    %c0_3 = arith.constant 0 : index
    %c0_4 = arith.constant 0 : index
    %3 = vector.load %arg3[%c0_3, %c0_4] : memref<1x32xf32, #tpu.memory_space<vmem>>, vector<1x32xf32>
    %4 = vector.broadcast %3 : vector<1x32xf32> to vector<128x32xf32>
    %5 = arith.addf %2, %4 : vector<128x32xf32>
    %6 = arith.negf %5 : vector<128x32xf32>
    %7 = math.exp %6 : vector<128x32xf32>
    %cst_5 = arith.constant 1.000000e+00 : f32
    %8 = vector.broadcast %cst_5 : f32 to vector<128x32xf32>
    %9 = arith.addf %8, %7 : vector<128x32xf32>
    %10 = arith.divf %8, %9 : vector<128x32xf32>
    %11 = arith.mulf %5, %10 : vector<128x32xf32>
    %12 = arith.truncf %11 : vector<128x32xf32> to vector<128x32xbf16>
    %c0_6 = arith.constant 0 : index
    %c0_7 = arith.constant 0 : index
    %13 = vector.load %arg4[%c0_6, %c0_7] : memref<128x32xbf16, #tpu.memory_space<vmem>>, vector<128x32xbf16>
    tpu.vector_store %arg4[%c0_6, %c0_7], %12 {strides = array<i32>} : memref<128x32xbf16, #tpu.memory_space<vmem>>, vector<128x32xbf16>,
    return
  }
  func.func @transform_0(%arg0: i32) -> (i32, i32) {
    %c0_i32 = arith.constant 0 : i32
    %c0_i32_0 = arith.constant 0 : i32
    return %arg0, %c0_i32 : i32, i32
  }
  func.func @transform_1(%arg0: i32) -> (i32, i32) {
    %c0_i32 = arith.constant 0 : i32
    %c0_i32_0 = arith.constant 0 : i32
    %c0_i32_1 = arith.constant 0 : i32
    return %c0_i32, %c0_i32_0 : i32, i32
  }
  func.func @transform_2(%arg0: i32) -> (i32, i32) {
    %c0_i32 = arith.constant 0 : i32
    %c0_i32_0 = arith.constant 0 : i32
    %c0_i32_1 = arith.constant 0 : i32
    return %c0_i32, %c0_i32_0 : i32, i32
  }
  func.func @transform_3(%arg0: i32) -> (i32, i32) {
    %c0_i32 = arith.constant 0 : i32
    %c0_i32_0 = arith.constant 0 : i32
    return %arg0, %c0_i32 : i32, i32
  }
}

module attributes {stable_mosaic.version = 11 : i64} {
  func.func @_matmul_shift_act_kernel(%arg0: i32, %arg1: memref<128x32xbf16, #tpu.memory_space<vmem>>, %arg2: memref<32x128xbf16, #tpu.memory_space<vmem>>, %arg3: memref<1x128xf32, #tpu.memory_space<vmem>>, %arg4: memref<128x128xbf16, #tpu.memory_space<vmem>>) attributes {dimension_semantics = [#tpu.dimension_semantics<parallel>], iteration_bounds = array<i64: 1>, scalar_prefetch = 0 : i64, scratch_operands = 0 : i64, tpu.core_type = #tpu.core_type<tc>, window_params = [{transform_indices = @transform_0, window_bounds = array<i64: 128, 32>}, {pipeline_mode = #tpu.pipeline_mode<synchronous>, transform_indices = @transform_1, window_bounds = array<i64: 32, 128>}, {pipeline_mode = #tpu.pipeline_mode<synchronous>, transform_indices = @transform_2, window_bounds = array<i64: 1, 128>}, {transform_indices = @transform_3, window_bounds = array<i64: 128, 128>}]} {
    %c0 = arith.constant 0 : index
    %c0_0 = arith.constant 0 : index
    %0 = vector.load %arg1[%c0, %c0_0] : memref<128x32xbf16, #tpu.memory_space<vmem>>, vector<128x32xbf16>
    %c0_1 = arith.constant 0 : index
    %c0_2 = arith.constant 0 : index
    %1 = vector.load %arg2[%c0_1, %c0_2] : memref<32x128xbf16, #tpu.memory_space<vmem>>, vector<32x128xbf16>
    %cst = arith.constant dense<0.000000e+00> : vector<128x128xf32>
    %2 = tpu.matmul %0, %1, %cst {dimension_numbers = #tpu.dot_dimension_numbers<[1], [0], [0], [1], [0, 0, 1, 1], [], []>} : vector<128x32xbf16>, vector<32x128xbf16>, vector<128x128xf32> -> vector<128x128xf32>
    %c0_3 = arith.constant 0 : index
    %c0_4 = arith.constant 0 : index
    %3 = vector.load %arg3[%c0_3, %c0_4] : memref<1x128xf32, #tpu.memory_space<vmem>>, vector<1x128xf32>
    %4 = vector.broadcast %3 : vector<1x128xf32> to vector<128x128xf32>
    %5 = arith.addf %2, %4 : vector<128x128xf32>
    %6 = arith.negf %5 : vector<128x128xf32>
    %7 = math.exp %6 : vector<128x128xf32>
    %cst_5 = arith.constant 1.000000e+00 : f32
    %8 = vector.broadcast %cst_5 : f32 to vector<128x128xf32>
    %9 = arith.addf %8, %7 : vector<128x128xf32>
    %10 = arith.divf %8, %9 : vector<128x128xf32>
    %11 = arith.mulf %5, %10 : vector<128x128xf32>
    %12 = arith.truncf %11 : vector<128x128xf32> to vector<128x128xbf16>
    %c0_6 = arith.constant 0 : index
    %c0_7 = arith.constant 0 : index
    %13 = vector.load %arg4[%c0_6, %c0_7] : memref<128x128xbf16, #tpu.memory_space<vmem>>, vector<128x128xbf16>
    tpu.vector_store %arg4[%c0_6, %c0_7], %12 {strides = array<i32>} : memref<128x128xbf16, #tpu.memory_space<vmem>>, vector<128x128xbf16>,
    return
  }
  func.func @transform_0(%arg0: i32) -> (i32, i32) {
    %c0_i32 = arith.constant 0 : i32
    %c0_i32_0 = arith.constant 0 : i32
    return %arg0, %c0_i32 : i32, i32
  }
  func.func @transform_1(%arg0: i32) -> (i32, i32) {
    %c0_i32 = arith.constant 0 : i32
    %c0_i32_0 = arith.constant 0 : i32
    %c0_i32_1 = arith.constant 0 : i32
    return %c0_i32, %c0_i32_0 : i32, i32
  }
  func.func @transform_2(%arg0: i32) -> (i32, i32) {
    %c0_i32 = arith.constant 0 : i32
    %c0_i32_0 = arith.constant 0 : i32
    %c0_i32_1 = arith.constant 0 : i32
    return %c0_i32, %c0_i32_0 : i32, i32
  }
  func.func @transform_3(%arg0: i32) -> (i32, i32) {
    %c0_i32 = arith.constant 0 : i32
    %c0_i32_0 = arith.constant 0 : i32
    return %arg0, %c0_i32 : i32, i32
  }
}

module attributes {stable_mosaic.version = 11 : i64} {
  func.func @_dwconv_gap_kernel(%arg0: i32, %arg1: memref<1x10x10x128xbf16, #tpu.memory_space<vmem>>, %arg2: memref<9x128xf32, #tpu.memory_space<vmem>>, %arg3: memref<1x128xf32, #tpu.memory_space<vmem>>, %arg4: memref<1x8x8x128xbf16, #tpu.memory_space<vmem>>, %arg5: memref<1x1x128xf32, #tpu.memory_space<vmem>>) attributes {dimension_semantics = [#tpu.dimension_semantics<parallel>], iteration_bounds = array<i64: 2>, scalar_prefetch = 0 : i64, scratch_operands = 0 : i64, tpu.core_type = #tpu.core_type<tc>, window_params = [{transform_indices = @transform_0, window_bounds = array<i64: 1, 10, 10, 128>}, {pipeline_mode = #tpu.pipeline_mode<synchronous>, transform_indices = @transform_1, window_bounds = array<i64: 9, 128>}, {pipeline_mode = #tpu.pipeline_mode<synchronous>, transform_indices = @transform_2, window_bounds = array<i64: 1, 128>}, {transform_indices = @transform_3, window_bounds = array<i64: 1, 8, 8, 128>}, {transform_indices = @transform_4, window_bounds = array<i64: 1, 1, 128>}]} {
    %c0 = arith.constant 0 : index
    %c0_0 = arith.constant 0 : index
    %c0_1 = arith.constant 0 : index
    %c0_2 = arith.constant 0 : index
    %0 = vector.load %arg1[%c0, %c0_0, %c0_1, %c0_2] : memref<1x10x10x128xbf16, #tpu.memory_space<vmem>>, vector<1x10x10x128xbf16>
    %1 = vector.shape_cast %0 : vector<1x10x10x128xbf16> to vector<10x10x128xbf16>
    %2 = arith.extf %1 : vector<10x10x128xbf16> to vector<10x10x128xf32>
    %c0_3 = arith.constant 0 : index
    %c0_4 = arith.constant 0 : index
    %3 = vector.load %arg2[%c0_3, %c0_4] : memref<9x128xf32, #tpu.memory_space<vmem>>, vector<9x128xf32>
    %cst = arith.constant 0.000000e+00 : f32
    %4 = vector.broadcast %cst : f32 to vector<8x8x128xf32>
    %5 = vector.extract_strided_slice %2 {offsets = [0, 0, 0], sizes = [8, 8, 128], strides = [1, 1, 1]} : vector<10x10x128xf32> to vector<8x8x128xf32>
    %6 = vector.extract_strided_slice %3 {offsets = [0, 0], sizes = [1, 128], strides = [1, 1]} : vector<9x128xf32> to vector<1x128xf32>
    %7 = vector.shape_cast %6 : vector<1x128xf32> to vector<128xf32>
    %8 = vector.shape_cast %7 : vector<128xf32> to vector<1x1x128xf32>
    %9 = vector.broadcast %8 : vector<1x1x128xf32> to vector<8x8x128xf32>
    %10 = arith.mulf %5, %9 : vector<8x8x128xf32>
    %11 = arith.addf %4, %10 : vector<8x8x128xf32>
    %12 = vector.extract_strided_slice %2 {offsets = [0, 1, 0], sizes = [8, 8, 128], strides = [1, 1, 1]} : vector<10x10x128xf32> to vector<8x8x128xf32>
    %13 = vector.extract_strided_slice %3 {offsets = [1, 0], sizes = [1, 128], strides = [1, 1]} : vector<9x128xf32> to vector<1x128xf32>
    %14 = vector.shape_cast %13 : vector<1x128xf32> to vector<128xf32>
    %15 = vector.shape_cast %14 : vector<128xf32> to vector<1x1x128xf32>
    %16 = vector.broadcast %15 : vector<1x1x128xf32> to vector<8x8x128xf32>
    %17 = arith.mulf %12, %16 : vector<8x8x128xf32>
    %18 = arith.addf %11, %17 : vector<8x8x128xf32>
    %19 = vector.extract_strided_slice %2 {offsets = [0, 2, 0], sizes = [8, 8, 128], strides = [1, 1, 1]} : vector<10x10x128xf32> to vector<8x8x128xf32>
    %20 = vector.extract_strided_slice %3 {offsets = [2, 0], sizes = [1, 128], strides = [1, 1]} : vector<9x128xf32> to vector<1x128xf32>
    %21 = vector.shape_cast %20 : vector<1x128xf32> to vector<128xf32>
    %22 = vector.shape_cast %21 : vector<128xf32> to vector<1x1x128xf32>
    %23 = vector.broadcast %22 : vector<1x1x128xf32> to vector<8x8x128xf32>
    %24 = arith.mulf %19, %23 : vector<8x8x128xf32>
    %25 = arith.addf %18, %24 : vector<8x8x128xf32>
    %26 = vector.extract_strided_slice %2 {offsets = [1, 0, 0], sizes = [8, 8, 128], strides = [1, 1, 1]} : vector<10x10x128xf32> to vector<8x8x128xf32>
    %27 = vector.extract_strided_slice %3 {offsets = [3, 0], sizes = [1, 128], strides = [1, 1]} : vector<9x128xf32> to vector<1x128xf32>
    %28 = vector.shape_cast %27 : vector<1x128xf32> to vector<128xf32>
    %29 = vector.shape_cast %28 : vector<128xf32> to vector<1x1x128xf32>
    %30 = vector.broadcast %29 : vector<1x1x128xf32> to vector<8x8x128xf32>
    %31 = arith.mulf %26, %30 : vector<8x8x128xf32>
    %32 = arith.addf %25, %31 : vector<8x8x128xf32>
    %33 = vector.extract_strided_slice %2 {offsets = [1, 1, 0], sizes = [8, 8, 128], strides = [1, 1, 1]} : vector<10x10x128xf32> to vector<8x8x128xf32>
    %34 = vector.extract_strided_slice %3 {offsets = [4, 0], sizes = [1, 128], strides = [1, 1]} : vector<9x128xf32> to vector<1x128xf32>
    %35 = vector.shape_cast %34 : vector<1x128xf32> to vector<128xf32>
    %36 = vector.shape_cast %35 : vector<128xf32> to vector<1x1x128xf32>
    %37 = vector.broadcast %36 : vector<1x1x128xf32> to vector<8x8x128xf32>
    %38 = arith.mulf %33, %37 : vector<8x8x128xf32>
    %39 = arith.addf %32, %38 : vector<8x8x128xf32>
    %40 = vector.extract_strided_slice %2 {offsets = [1, 2, 0], sizes = [8, 8, 128], strides = [1, 1, 1]} : vector<10x10x128xf32> to vector<8x8x128xf32>
    %41 = vector.extract_strided_slice %3 {offsets = [5, 0], sizes = [1, 128], strides = [1, 1]} : vector<9x128xf32> to vector<1x128xf32>
    %42 = vector.shape_cast %41 : vector<1x128xf32> to vector<128xf32>
    %43 = vector.shape_cast %42 : vector<128xf32> to vector<1x1x128xf32>
    %44 = vector.broadcast %43 : vector<1x1x128xf32> to vector<8x8x128xf32>
    %45 = arith.mulf %40, %44 : vector<8x8x128xf32>
    %46 = arith.addf %39, %45 : vector<8x8x128xf32>
    %47 = vector.extract_strided_slice %2 {offsets = [2, 0, 0], sizes = [8, 8, 128], strides = [1, 1, 1]} : vector<10x10x128xf32> to vector<8x8x128xf32>
    %48 = vector.extract_strided_slice %3 {offsets = [6, 0], sizes = [1, 128], strides = [1, 1]} : vector<9x128xf32> to vector<1x128xf32>
    %49 = vector.shape_cast %48 : vector<1x128xf32> to vector<128xf32>
    %50 = vector.shape_cast %49 : vector<128xf32> to vector<1x1x128xf32>
    %51 = vector.broadcast %50 : vector<1x1x128xf32> to vector<8x8x128xf32>
    %52 = arith.mulf %47, %51 : vector<8x8x128xf32>
    %53 = arith.addf %46, %52 : vector<8x8x128xf32>
    %54 = vector.extract_strided_slice %2 {offsets = [2, 1, 0], sizes = [8, 8, 128], strides = [1, 1, 1]} : vector<10x10x128xf32> to vector<8x8x128xf32>
    %55 = vector.extract_strided_slice %3 {offsets = [7, 0], sizes = [1, 128], strides = [1, 1]} : vector<9x128xf32> to vector<1x128xf32>
    %56 = vector.shape_cast %55 : vector<1x128xf32> to vector<128xf32>
    %57 = vector.shape_cast %56 : vector<128xf32> to vector<1x1x128xf32>
    %58 = vector.broadcast %57 : vector<1x1x128xf32> to vector<8x8x128xf32>
    %59 = arith.mulf %54, %58 : vector<8x8x128xf32>
    %60 = arith.addf %53, %59 : vector<8x8x128xf32>
    %61 = vector.extract_strided_slice %2 {offsets = [2, 2, 0], sizes = [8, 8, 128], strides = [1, 1, 1]} : vector<10x10x128xf32> to vector<8x8x128xf32>
    %62 = vector.extract_strided_slice %3 {offsets = [8, 0], sizes = [1, 128], strides = [1, 1]} : vector<9x128xf32> to vector<1x128xf32>
    %63 = vector.shape_cast %62 : vector<1x128xf32> to vector<128xf32>
    %64 = vector.shape_cast %63 : vector<128xf32> to vector<1x1x128xf32>
    %65 = vector.broadcast %64 : vector<1x1x128xf32> to vector<8x8x128xf32>
    %66 = arith.mulf %61, %65 : vector<8x8x128xf32>
    %67 = arith.addf %60, %66 : vector<8x8x128xf32>
    %c0_5 = arith.constant 0 : index
    %c0_6 = arith.constant 0 : index
    %68 = vector.load %arg3[%c0_5, %c0_6] : memref<1x128xf32, #tpu.memory_space<vmem>>, vector<1x128xf32>
    %69 = vector.shape_cast %68 : vector<1x128xf32> to vector<1x1x128xf32>
    %70 = vector.broadcast %69 : vector<1x1x128xf32> to vector<8x8x128xf32>
    %71 = arith.addf %67, %70 : vector<8x8x128xf32>
    %72 = arith.negf %71 : vector<8x8x128xf32>
    %73 = math.exp %72 : vector<8x8x128xf32>
    %cst_7 = arith.constant 1.000000e+00 : f32
    %74 = vector.broadcast %cst_7 : f32 to vector<8x8x128xf32>
    %75 = arith.addf %74, %73 : vector<8x8x128xf32>
    %76 = arith.divf %74, %75 : vector<8x8x128xf32>
    %77 = arith.mulf %71, %76 : vector<8x8x128xf32>
    %78 = arith.truncf %77 : vector<8x8x128xf32> to vector<8x8x128xbf16>
    %c0_8 = arith.constant 0 : index
    %c0_9 = arith.constant 0 : index
    %c0_10 = arith.constant 0 : index
    %c0_11 = arith.constant 0 : index
    %79 = vector.load %arg4[%c0_8, %c0_9, %c0_10, %c0_11] : memref<1x8x8x128xbf16, #tpu.memory_space<vmem>>, vector<1x8x8x128xbf16>
    %80 = vector.shape_cast %79 : vector<1x8x8x128xbf16> to vector<8x8x128xbf16>
    %81 = vector.shape_cast %78 : vector<8x8x128xbf16> to vector<1x8x8x128xbf16>
    tpu.vector_store %arg4[%c0_8, %c0_9, %c0_10, %c0_11], %81 {strides = array<i32>} : memref<1x8x8x128xbf16, #tpu.memory_space<vmem>>, vector<1x8x8x128xbf16>,
    %cst_12 = arith.constant dense<0.000000e+00> : vector<128xf32>
    %82 = vector.multi_reduction <add>, %77, %cst_12 [0, 1] : vector<8x8x128xf32> to vector<128xf32>
    %cst_13 = arith.constant 6.400000e+01 : f32
    %83 = vector.broadcast %cst_13 : f32 to vector<128xf32>
    %84 = arith.divf %82, %83 : vector<128xf32>
    %85 = vector.shape_cast %84 : vector<128xf32> to vector<1x1x128xf32>
    %c0_14 = arith.constant 0 : index
    %c0_15 = arith.constant 0 : index
    %c0_16 = arith.constant 0 : index
    %86 = vector.load %arg5[%c0_14, %c0_15, %c0_16] : memref<1x1x128xf32, #tpu.memory_space<vmem>>, vector<1x1x128xf32>
    tpu.vector_store %arg5[%c0_14, %c0_15, %c0_16], %85 {strides = array<i32>} : memref<1x1x128xf32, #tpu.memory_space<vmem>>, vector<1x1x128xf32>,
    return
  }
  func.func @transform_0(%arg0: i32) -> (i32, i32, i32, i32) {
    %c0_i32 = arith.constant 0 : i32
    %c0_i32_0 = arith.constant 0 : i32
    %c0_i32_1 = arith.constant 0 : i32
    %c0_i32_2 = arith.constant 0 : i32
    return %arg0, %c0_i32, %c0_i32_0, %c0_i32_1 : i32, i32, i32, i32
  }
  func.func @transform_1(%arg0: i32) -> (i32, i32) {
    %c0_i32 = arith.constant 0 : i32
    %c0_i32_0 = arith.constant 0 : i32
    %c0_i32_1 = arith.constant 0 : i32
    return %c0_i32, %c0_i32_0 : i32, i32
  }
  func.func @transform_2(%arg0: i32) -> (i32, i32) {
    %c0_i32 = arith.constant 0 : i32
    %c0_i32_0 = arith.constant 0 : i32
    %c0_i32_1 = arith.constant 0 : i32
    return %c0_i32, %c0_i32_0 : i32, i32
  }
  func.func @transform_3(%arg0: i32) -> (i32, i32, i32, i32) {
    %c0_i32 = arith.constant 0 : i32
    %c0_i32_0 = arith.constant 0 : i32
    %c0_i32_1 = arith.constant 0 : i32
    %c0_i32_2 = arith.constant 0 : i32
    return %arg0, %c0_i32, %c0_i32_0, %c0_i32_1 : i32, i32, i32, i32
  }
  func.func @transform_4(%arg0: i32) -> (i32, i32, i32) {
    %c0_i32 = arith.constant 0 : i32
    %c0_i32_0 = arith.constant 0 : i32
    %c0_i32_1 = arith.constant 0 : i32
    return %arg0, %c0_i32, %c0_i32_0 : i32, i32, i32
  }
}

module attributes {stable_mosaic.version = 11 : i64} {
  func.func @_se_mlp_kernel(%arg0: memref<2x128xf32, #tpu.memory_space<vmem>>, %arg1: memref<128x8xf32, #tpu.memory_space<vmem>>, %arg2: memref<1x8xf32, #tpu.memory_space<vmem>>, %arg3: memref<8x128xf32, #tpu.memory_space<vmem>>, %arg4: memref<1x128xf32, #tpu.memory_space<vmem>>, %arg5: memref<2x128xf32, #tpu.memory_space<vmem>>) attributes {dimension_semantics = [], scalar_prefetch = 0 : i64, scratch_operands = 0 : i64, tpu.core_type = #tpu.core_type<tc>} {
    %c0 = arith.constant 0 : index
    %c0_0 = arith.constant 0 : index
    %0 = vector.load %arg0[%c0, %c0_0] : memref<2x128xf32, #tpu.memory_space<vmem>>, vector<2x128xf32>
    %c0_1 = arith.constant 0 : index
    %c0_2 = arith.constant 0 : index
    %1 = vector.load %arg1[%c0_1, %c0_2] : memref<128x8xf32, #tpu.memory_space<vmem>>, vector<128x8xf32>
    %cst = arith.constant dense<0.000000e+00> : vector<2x8xf32>
    %2 = tpu.matmul %0, %1, %cst {dimension_numbers = #tpu.dot_dimension_numbers<[1], [0], [0], [1], [0, 0, 1, 1], [], []>} : vector<2x128xf32>, vector<128x8xf32>, vector<2x8xf32> -> vector<2x8xf32>
    %c0_3 = arith.constant 0 : index
    %c0_4 = arith.constant 0 : index
    %3 = vector.load %arg2[%c0_3, %c0_4] : memref<1x8xf32, #tpu.memory_space<vmem>>, vector<1x8xf32>
    %4 = vector.broadcast %3 : vector<1x8xf32> to vector<2x8xf32>
    %5 = arith.addf %2, %4 : vector<2x8xf32>
    %6 = arith.negf %5 : vector<2x8xf32>
    %7 = math.exp %6 : vector<2x8xf32>
    %cst_5 = arith.constant 1.000000e+00 : f32
    %8 = vector.broadcast %cst_5 : f32 to vector<2x8xf32>
    %9 = arith.addf %8, %7 : vector<2x8xf32>
    %10 = arith.divf %8, %9 : vector<2x8xf32>
    %11 = arith.mulf %5, %10 : vector<2x8xf32>
    %c0_6 = arith.constant 0 : index
    %c0_7 = arith.constant 0 : index
    %12 = vector.load %arg3[%c0_6, %c0_7] : memref<8x128xf32, #tpu.memory_space<vmem>>, vector<8x128xf32>
    %cst_8 = arith.constant dense<0.000000e+00> : vector<2x128xf32>
    %13 = tpu.matmul %11, %12, %cst_8 {dimension_numbers = #tpu.dot_dimension_numbers<[1], [0], [0], [1], [0, 0, 1, 1], [], []>} : vector<2x8xf32>, vector<8x128xf32>, vector<2x128xf32> -> vector<2x128xf32>
    %c0_9 = arith.constant 0 : index
    %c0_10 = arith.constant 0 : index
    %14 = vector.load %arg4[%c0_9, %c0_10] : memref<1x128xf32, #tpu.memory_space<vmem>>, vector<1x128xf32>
    %15 = vector.broadcast %14 : vector<1x128xf32> to vector<2x128xf32>
    %16 = arith.addf %13, %15 : vector<2x128xf32>
    %17 = arith.negf %16 : vector<2x128xf32>
    %18 = math.exp %17 : vector<2x128xf32>
    %cst_11 = arith.constant 1.000000e+00 : f32
    %19 = vector.broadcast %cst_11 : f32 to vector<2x128xf32>
    %20 = arith.addf %19, %18 : vector<2x128xf32>
    %21 = arith.divf %19, %20 : vector<2x128xf32>
    %c0_12 = arith.constant 0 : index
    %c0_13 = arith.constant 0 : index
    %22 = vector.load %arg5[%c0_12, %c0_13] : memref<2x128xf32, #tpu.memory_space<vmem>>, vector<2x128xf32>
    tpu.vector_store %arg5[%c0_12, %c0_13], %21 {strides = array<i32>} : memref<2x128xf32, #tpu.memory_space<vmem>>, vector<2x128xf32>,
    return
  }
}

module attributes {stable_mosaic.version = 11 : i64} {
  func.func @_se_proj_add_kernel(%arg0: i32, %arg1: i32, %arg2: memref<1x64x128xbf16, #tpu.memory_space<vmem>>, %arg3: memref<1x1x128xf32, #tpu.memory_space<vmem>>, %arg4: memref<128x32xbf16, #tpu.memory_space<vmem>>, %arg5: memref<1x32xf32, #tpu.memory_space<vmem>>, %arg6: memref<1x64x32xbf16, #tpu.memory_space<vmem>>, %arg7: memref<1x64x32xbf16, #tpu.memory_space<vmem>>) attributes {dimension_semantics = [#tpu.dimension_semantics<parallel>, #tpu.dimension_semantics<parallel>], iteration_bounds = array<i64: 2, 1>, scalar_prefetch = 0 : i64, scratch_operands = 0 : i64, tpu.core_type = #tpu.core_type<tc>, window_params = [{transform_indices = @transform_0, window_bounds = array<i64: 1, 64, 128>}, {transform_indices = @transform_1, window_bounds = array<i64: 1, 1, 128>}, {pipeline_mode = #tpu.pipeline_mode<synchronous>, transform_indices = @transform_2, window_bounds = array<i64: 128, 32>}, {pipeline_mode = #tpu.pipeline_mode<synchronous>, transform_indices = @transform_3, window_bounds = array<i64: 1, 32>}, {transform_indices = @transform_4, window_bounds = array<i64: 1, 64, 32>}, {transform_indices = @transform_5, window_bounds = array<i64: 1, 64, 32>}]} {
    %c0 = arith.constant 0 : index
    %c0_0 = arith.constant 0 : index
    %c0_1 = arith.constant 0 : index
    %0 = vector.load %arg2[%c0, %c0_0, %c0_1] : memref<1x64x128xbf16, #tpu.memory_space<vmem>>, vector<1x64x128xbf16>
    %1 = vector.shape_cast %0 : vector<1x64x128xbf16> to vector<64x128xbf16>
    %2 = arith.extf %1 : vector<64x128xbf16> to vector<64x128xf32>
    %c0_2 = arith.constant 0 : index
    %c0_3 = arith.constant 0 : index
    %c0_4 = arith.constant 0 : index
    %3 = vector.load %arg3[%c0_2, %c0_3, %c0_4] : memref<1x1x128xf32, #tpu.memory_space<vmem>>, vector<1x1x128xf32>
    %4 = vector.shape_cast %3 : vector<1x1x128xf32> to vector<1x128xf32>
    %5 = vector.broadcast %4 : vector<1x128xf32> to vector<64x128xf32>
    %6 = arith.mulf %2, %5 : vector<64x128xf32>
    %7 = arith.truncf %6 : vector<64x128xf32> to vector<64x128xbf16>
    %c0_5 = arith.constant 0 : index
    %c0_6 = arith.constant 0 : index
    %8 = vector.load %arg4[%c0_5, %c0_6] : memref<128x32xbf16, #tpu.memory_space<vmem>>, vector<128x32xbf16>
    %cst = arith.constant dense<0.000000e+00> : vector<64x32xf32>
    %9 = tpu.matmul %7, %8, %cst {dimension_numbers = #tpu.dot_dimension_numbers<[1], [0], [0], [1], [0, 0, 1, 1], [], []>} : vector<64x128xbf16>, vector<128x32xbf16>, vector<64x32xf32> -> vector<64x32xf32>
    %c0_7 = arith.constant 0 : index
    %c0_8 = arith.constant 0 : index
    %10 = vector.load %arg5[%c0_7, %c0_8] : memref<1x32xf32, #tpu.memory_space<vmem>>, vector<1x32xf32>
    %11 = vector.broadcast %10 : vector<1x32xf32> to vector<64x32xf32>
    %12 = arith.addf %9, %11 : vector<64x32xf32>
    %c0_9 = arith.constant 0 : index
    %c0_10 = arith.constant 0 : index
    %c0_11 = arith.constant 0 : index
    %13 = vector.load %arg6[%c0_9, %c0_10, %c0_11] : memref<1x64x32xbf16, #tpu.memory_space<vmem>>, vector<1x64x32xbf16>
    %14 = vector.shape_cast %13 : vector<1x64x32xbf16> to vector<64x32xbf16>
    %15 = arith.extf %14 : vector<64x32xbf16> to vector<64x32xf32>
    %16 = arith.addf %12, %15 : vector<64x32xf32>
    %17 = arith.truncf %16 : vector<64x32xf32> to vector<64x32xbf16>
    %c0_12 = arith.constant 0 : index
    %c0_13 = arith.constant 0 : index
    %c0_14 = arith.constant 0 : index
    %18 = vector.load %arg7[%c0_12, %c0_13, %c0_14] : memref<1x64x32xbf16, #tpu.memory_space<vmem>>, vector<1x64x32xbf16>
    %19 = vector.shape_cast %18 : vector<1x64x32xbf16> to vector<64x32xbf16>
    %20 = vector.shape_cast %17 : vector<64x32xbf16> to vector<1x64x32xbf16>
    tpu.vector_store %arg7[%c0_12, %c0_13, %c0_14], %20 {strides = array<i32>} : memref<1x64x32xbf16, #tpu.memory_space<vmem>>, vector<1x64x32xbf16>,
    return
  }
  func.func @transform_0(%arg0: i32, %arg1: i32) -> (i32, i32, i32) {
    %c0_i32 = arith.constant 0 : i32
    %c0_i32_0 = arith.constant 0 : i32
    return %arg0, %arg1, %c0_i32 : i32, i32, i32
  }
  func.func @transform_1(%arg0: i32, %arg1: i32) -> (i32, i32, i32) {
    %c0_i32 = arith.constant 0 : i32
    %c0_i32_0 = arith.constant 0 : i32
    %c0_i32_1 = arith.constant 0 : i32
    return %arg0, %c0_i32, %c0_i32_0 : i32, i32, i32
  }
  func.func @transform_2(%arg0: i32, %arg1: i32) -> (i32, i32) {
    %c0_i32 = arith.constant 0 : i32
    %c0_i32_0 = arith.constant 0 : i32
    %c0_i32_1 = arith.constant 0 : i32
    return %c0_i32, %c0_i32_0 : i32, i32
  }
  func.func @transform_3(%arg0: i32, %arg1: i32) -> (i32, i32) {
    %c0_i32 = arith.constant 0 : i32
    %c0_i32_0 = arith.constant 0 : i32
    %c0_i32_1 = arith.constant 0 : i32
    return %c0_i32, %c0_i32_0 : i32, i32
  }
  func.func @transform_4(%arg0: i32, %arg1: i32) -> (i32, i32, i32) {
    %c0_i32 = arith.constant 0 : i32
    %c0_i32_0 = arith.constant 0 : i32
    return %arg0, %arg1, %c0_i32 : i32, i32, i32
  }
  func.func @transform_5(%arg0: i32, %arg1: i32) -> (i32, i32, i32) {
    %c0_i32 = arith.constant 0 : i32
    %c0_i32_0 = arith.constant 0 : i32
    return %arg0, %arg1, %c0_i32 : i32, i32, i32
  }
}

module attributes {stable_mosaic.version = 11 : i64} {
  func.func @_head_gap_cls_kernel(%arg0: i32, %arg1: i32, %arg2: memref<1x64x32xbf16, #tpu.memory_space<vmem>>, %arg3: memref<32x128xbf16, #tpu.memory_space<vmem>>, %arg4: memref<1x128xf32, #tpu.memory_space<vmem>>, %arg5: memref<1x128xf32, #tpu.memory_space<vmem>>, %arg6: memref<1x1xf32, #tpu.memory_space<vmem>>, %arg7: memref<1x1x1xf32, #tpu.memory_space<vmem>>, %arg8: memref<1x128xf32, #tpu.memory_space<vmem>>) attributes {dimension_semantics = [#tpu.dimension_semantics<parallel>, #tpu.dimension_semantics<arbitrary>], iteration_bounds = array<i64: 2, 1>, scalar_prefetch = 0 : i64, scratch_operands = 1 : i64, tpu.core_type = #tpu.core_type<tc>, window_params = [{transform_indices = @transform_0, window_bounds = array<i64: 1, 64, 32>}, {pipeline_mode = #tpu.pipeline_mode<synchronous>, transform_indices = @transform_1, window_bounds = array<i64: 32, 128>}, {pipeline_mode = #tpu.pipeline_mode<synchronous>, transform_indices = @transform_2, window_bounds = array<i64: 1, 128>}, {pipeline_mode = #tpu.pipeline_mode<synchronous>, transform_indices = @transform_3, window_bounds = array<i64: 1, 128>}, {pipeline_mode = #tpu.pipeline_mode<synchronous>, transform_indices = @transform_4, window_bounds = array<i64: 1, 1>}, {transform_indices = @transform_5, window_bounds = array<i64: 1, 1, 1>}]} {
    %c0_i32 = arith.constant 0 : i32
    %0 = arith.cmpi eq, %arg1, %c0_i32 : i32
    %1 = arith.extui %0 : i1 to i32
    %c0_i32_0 = arith.constant 0 : i32
    %2 = arith.cmpi ne, %1, %c0_i32_0 : i32
    scf.if %2 {
      %cst_17 = arith.constant 0.000000e+00 : f32
      %34 = vector.broadcast %cst_17 : f32 to vector<1x128xf32>
      %c0_18 = arith.constant 0 : index
      %c0_19 = arith.constant 0 : index
      %35 = vector.load %arg8[%c0_18, %c0_19] : memref<1x128xf32, #tpu.memory_space<vmem>>, vector<1x128xf32>
      tpu.vector_store %arg8[%c0_18, %c0_19], %34 {strides = array<i32>} : memref<1x128xf32, #tpu.memory_space<vmem>>, vector<1x128xf32>,
    } else {
    }
    %c0 = arith.constant 0 : index
    %c0_1 = arith.constant 0 : index
    %c0_2 = arith.constant 0 : index
    %3 = vector.load %arg2[%c0, %c0_1, %c0_2] : memref<1x64x32xbf16, #tpu.memory_space<vmem>>, vector<1x64x32xbf16>
    %4 = vector.shape_cast %3 : vector<1x64x32xbf16> to vector<64x32xbf16>
    %c0_3 = arith.constant 0 : index
    %c0_4 = arith.constant 0 : index
    %5 = vector.load %arg3[%c0_3, %c0_4] : memref<32x128xbf16, #tpu.memory_space<vmem>>, vector<32x128xbf16>
    %cst = arith.constant dense<0.000000e+00> : vector<64x128xf32>
    %6 = tpu.matmul %4, %5, %cst {dimension_numbers = #tpu.dot_dimension_numbers<[1], [0], [0], [1], [0, 0, 1, 1], [], []>} : vector<64x32xbf16>, vector<32x128xbf16>, vector<64x128xf32> -> vector<64x128xf32>
    %c0_5 = arith.constant 0 : index
    %c0_6 = arith.constant 0 : index
    %7 = vector.load %arg4[%c0_5, %c0_6] : memref<1x128xf32, #tpu.memory_space<vmem>>, vector<1x128xf32>
    %8 = vector.broadcast %7 : vector<1x128xf32> to vector<64x128xf32>
    %9 = arith.addf %6, %8 : vector<64x128xf32>
    %10 = arith.negf %9 : vector<64x128xf32>
    %11 = math.exp %10 : vector<64x128xf32>
    %cst_7 = arith.constant 1.000000e+00 : f32
    %12 = vector.broadcast %cst_7 : f32 to vector<64x128xf32>
    %13 = arith.addf %12, %11 : vector<64x128xf32>
    %14 = arith.divf %12, %13 : vector<64x128xf32>
    %15 = arith.mulf %9, %14 : vector<64x128xf32>
    %c64_i32 = arith.constant 64 : i32
    %16 = arith.muli %arg1, %c64_i32 : i32
    %17 = tpu.iota {dimensions = array<i32: 0>} : vector<64x1xi32>
    %18 = vector.broadcast %16 : i32 to vector<64x1xi32>
    %19 = arith.addi %18, %17 : vector<64x1xi32>
    %c64_i32_8 = arith.constant 64 : i32
    %20 = vector.broadcast %c64_i32_8 : i32 to vector<64x1xi32>
    %21 = arith.cmpi slt, %19, %20 : vector<64x1xi32>
    %cst_9 = arith.constant 0.000000e+00 : f32
    %22 = vector.shape_cast %21 : vector<64x1xi1> to vector<64x1xi1>
    %23 = vector.broadcast %22 : vector<64x1xi1> to vector<64x128xi1>
    %24 = vector.broadcast %cst_9 : f32 to vector<64x128xf32>
    %25 = arith.select %23, %15, %24 : vector<64x128xi1>, vector<64x128xf32>
    %c0_10 = arith.constant 0 : index
    %c0_11 = arith.constant 0 : index
    %26 = vector.load %arg8[%c0_10, %c0_11] : memref<1x128xf32, #tpu.memory_space<vmem>>, vector<1x128xf32>
    %cst_12 = arith.constant dense<0.000000e+00> : vector<128xf32>
    %27 = vector.multi_reduction <add>, %25, %cst_12 [0] : vector<64x128xf32> to vector<128xf32>
    %28 = vector.shape_cast %27 : vector<128xf32> to vector<1x128xf32>
    %29 = arith.addf %26, %28 : vector<1x128xf32>
    %c0_13 = arith.constant 0 : index
    %c0_14 = arith.constant 0 : index
    %30 = vector.load %arg8[%c0_13, %c0_14] : memref<1x128xf32, #tpu.memory_space<vmem>>, vector<1x128xf32>
    tpu.vector_store %arg8[%c0_13, %c0_14], %29 {strides = array<i32>} : memref<1x128xf32, #tpu.memory_space<vmem>>, vector<1x128xf32>,
    %c0_i32_15 = arith.constant 0 : i32
    %31 = arith.cmpi eq, %arg1, %c0_i32_15 : i32
    %32 = arith.extui %31 : i1 to i32
    %c0_i32_16 = arith.constant 0 : i32
    %33 = arith.cmpi ne, %32, %c0_i32_16 : i32
    scf.if %33 {
      %c0_17 = arith.constant 0 : index
      %c0_18 = arith.constant 0 : index
      %34 = vector.load %arg8[%c0_17, %c0_18] : memref<1x128xf32, #tpu.memory_space<vmem>>, vector<1x128xf32>
      %cst_19 = arith.constant 1.562500e-02 : f32
      %35 = vector.broadcast %cst_19 : f32 to vector<1x128xf32>
      %36 = arith.mulf %34, %35 : vector<1x128xf32>
      %c0_20 = arith.constant 0 : index
      %c0_21 = arith.constant 0 : index
      %37 = vector.load %arg5[%c0_20, %c0_21] : memref<1x128xf32, #tpu.memory_space<vmem>>, vector<1x128xf32>
      %38 = arith.mulf %36, %37 : vector<1x128xf32>
      %cst_22 = arith.constant dense<0.000000e+00> : vector<1xf32>
      %39 = vector.multi_reduction <add>, %38, %cst_22 [1] : vector<1x128xf32> to vector<1xf32>
      %40 = vector.shape_cast %39 : vector<1xf32> to vector<1x1xf32>
      %c0_23 = arith.constant 0 : index
      %c0_24 = arith.constant 0 : index
      %41 = vector.load %arg6[%c0_23, %c0_24] : memref<1x1xf32, #tpu.memory_space<vmem>>, vector<1x1xf32>
      %42 = arith.addf %40, %41 : vector<1x1xf32>
      %cst_25 = arith.constant dense<0xFF800000> : vector<1xf32>
      %43 = vector.multi_reduction <maximumf>, %42, %cst_25 [1] : vector<1x1xf32> to vector<1xf32>
      %44 = vector.shape_cast %43 : vector<1xf32> to vector<1x1xf32>
      %45 = arith.subf %42, %44 : vector<1x1xf32>
      %46 = math.exp %45 : vector<1x1xf32>
      %cst_26 = arith.constant dense<0.000000e+00> : vector<1xf32>
      %47 = vector.multi_reduction <add>, %46, %cst_26 [1] : vector<1x1xf32> to vector<1xf32>
      %48 = vector.shape_cast %47 : vector<1xf32> to vector<1x1xf32>
      %49 = arith.divf %46, %48 : vector<1x1xf32>
      %50 = vector.shape_cast %49 : vector<1x1xf32> to vector<1x1x1xf32>
      %c0_27 = arith.constant 0 : index
      %c0_28 = arith.constant 0 : index
      %c0_29 = arith.constant 0 : index
      %51 = vector.load %arg7[%c0_27, %c0_28, %c0_29] : memref<1x1x1xf32, #tpu.memory_space<vmem>>, vector<1x1x1xf32>
      tpu.vector_store %arg7[%c0_27, %c0_28, %c0_29], %50 {strides = array<i32>} : memref<1x1x1xf32, #tpu.memory_space<vmem>>, vector<1x1x1xf32>,
    } else {
    }
    return
  }
  func.func @transform_0(%arg0: i32, %arg1: i32) -> (i32, i32, i32) {
    %c0_i32 = arith.constant 0 : i32
    %c0_i32_0 = arith.constant 0 : i32
    return %arg0, %arg1, %c0_i32 : i32, i32, i32
  }
  func.func @transform_1(%arg0: i32, %arg1: i32) -> (i32, i32) {
    %c0_i32 = arith.constant 0 : i32
    %c0_i32_0 = arith.constant 0 : i32
    %c0_i32_1 = arith.constant 0 : i32
    return %c0_i32, %c0_i32_0 : i32, i32
  }
  func.func @transform_2(%arg0: i32, %arg1: i32) -> (i32, i32) {
    %c0_i32 = arith.constant 0 : i32
    %c0_i32_0 = arith.constant 0 : i32
    %c0_i32_1 = arith.constant 0 : i32
    return %c0_i32, %c0_i32_0 : i32, i32
  }
  func.func @transform_3(%arg0: i32, %arg1: i32) -> (i32, i32) {
    %c0_i32 = arith.constant 0 : i32
    %c0_i32_0 = arith.constant 0 : i32
    %c0_i32_1 = arith.constant 0 : i32
    return %c0_i32, %c0_i32_0 : i32, i32
  }
  func.func @transform_4(%arg0: i32, %arg1: i32) -> (i32, i32) {
    %c0_i32 = arith.constant 0 : i32
    %c0_i32_0 = arith.constant 0 : i32
    %c0_i32_1 = arith.constant 0 : i32
    return %c0_i32, %c0_i32_0 : i32, i32
  }
  func.func @transform_5(%arg0: i32, %arg1: i32) -> (i32, i32, i32) {
    %c0_i32 = arith.constant 0 : i32
    %c0_i32_0 = arith.constant 0 : i32
    %c0_i32_1 = arith.constant 0 : i32
    return %arg0, %c0_i32, %c0_i32_0 : i32, i32, i32
  }
}

</mosaic_0001>

<llo_original>
// kernel: effnet_forward.6
$region0: #{effnet_forward.6}
  #allocation0 [shape = 'u32[]', space=smem, size = 0x4, offset = 0x4, fixed_abs, tag = 'smem constant byte address 0x4 - core index']
  #allocation1 [shape = 'u32[144,128]{1,0:T(1,128)}', space=vmem, size = 0x12000, scoped, tag = 'internal scratch']
  %s0 = inlined_call_operand.vmem [shape: bf16[128,27], index: 0, kind: input, shape index: {}]
  %s1 = inlined_call_operand.vmem [shape: bf16[27,32], index: 1, kind: input, shape index: {}]
  %s2 = inlined_call_operand.vmem [shape: f32[1,32], index: 2, kind: input, shape index: {}]
  %s3 = inlined_call_operand.vmem [shape: bf16[128,32], index: 3, kind: output, shape index: {}]
  %s4 = sld [smem:[#allocation0]]
  $region22: #{effnet_forward.6} parent=0
    _
  %s6 = ssub.s32 1, %s4
  %s7 = scalar_select 0, %s6, %s4
  // Predicated region
  $region2: #{effnet_forward.6} parent=0 // pred_check
    _
  $region3: #{effnet_forward.6} parent=0 // pred_check_branch
    %9 = sbr.rel (0) target = $region5
  $region4: #{effnet_forward.6} parent=0 // pred_region
    _
  $region5: #{effnet_forward.6} parent=0 // pred_fallthru
    _
  // Predicated region
  $region6: #{effnet_forward.6} parent=0 // pred_check
    _
  $region7: #{effnet_forward.6} parent=0 // pred_check_branch
    %11 = sbr.rel (0) target = $region9
  $region8: #{effnet_forward.6} parent=0 // pred_region
    _
  $region9: #{effnet_forward.6} parent=0 // pred_fallthru
    _
  // Predicated region
  $region10: #{effnet_forward.6} parent=0 // pred_check
    _
  $region11: #{effnet_forward.6} parent=0 // pred_check_branch
    %13 = sbr.rel (0) target = $region13
  $region12: #{effnet_forward.6} parent=0 // pred_region
    _
  $region13: #{effnet_forward.6} parent=0 // pred_fallthru
    _
  %v15 = vld [vmem:[%s0] sm:$0xf]
  %v16 = vld [vmem:[%s0 + $0x4] sm:$0xf]
  %v17 = vld [vmem:[%s0 + $0x8] sm:$0xf]
  %v18 = vld [vmem:[%s0 + $0xc] sm:$0xf]
  %v19 = vld [vmem:[%s0 + $0x10] sm:$0xf]
  %v20 = vld [vmem:[%s0 + $0x14] sm:$0xf]
  %v21 = vld [vmem:[%s0 + $0x18] sm:$0xf]
  %v22 = vld [vmem:[%s0 + $0x1c] sm:$0xf]
  %v23 = vld [vmem:[%s0 + $0x20] sm:$0xf]
  %v24 = vld [vmem:[%s0 + $0x24] sm:$0xf]
  %v25 = vld [vmem:[%s0 + $0x28] sm:$0xf]
  %v26 = vld [vmem:[%s0 + $0x2c] sm:$0xf]
  %v27 = vld [vmem:[%s0 + $0x30] sm:$0xf]
  %v28 = vld [vmem:[%s0 + $0x34] sm:$0xf]
  %v29 = vld [vmem:[%s0 + $0x38] sm:$0xf]
  %v30 = vld [vmem:[%s0 + $0x3c] sm:$0xf]
  %v31 = vld [vmem:[%s1] sm:$0xf]
  %v32 = vld [vmem:[%s1 + $0x4] sm:$0xf]
  %v33 = vld [vmem:[%s1 + $0x8] sm:$0xf]
  %v34 = vld [vmem:[%s1 + $0xc] sm:$0x3]
  %v35 = vld [vmem:[%s2] sm:$0x1]
  %v37 = vlaneseq
  %v38 = vshrl.u32 %v37, 7
  %v39 = vsub.s32 0, %v38
  %v40 = vrot.slane %v35, %v39
  %v58 = vunpack.c.l.b16 %v15
  %v59 = vunpack.c.l.b16 %v16
  %v60 = vunpack.c.l.b16 %v17
  %v61 = vunpack.c.l.b16 %v18
  %v62 = vunpack.c.l.b16 %v19
  %v63 = vunpack.c.l.b16 %v20
  %v64 = vunpack.c.l.b16 %v21
  %v65 = vunpack.c.l.b16 %v22
  %v66 = vunpack.c.l.b16 %v23
  %v67 = vunpack.c.l.b16 %v24
  %v68 = vunpack.c.l.b16 %v25
  %v69 = vunpack.c.l.b16 %v26
  %v70 = vunpack.c.l.b16 %v27
  %v71 = vunpack.c.l.b16 %v28
  %v72 = vunpack.c.l.b16 %v29
  %v73 = vunpack.c.l.b16 %v30
  %v74 = vpack.c.b16 %v59, %v58
  %v75 = vpack.c.b16 %v61, %v60
  %v76 = vpack.c.b16 %v63, %v62
  %v77 = vpack.c.b16 %v65, %v64
  %v78 = vpack.c.b16 %v67, %v66
  %v79 = vpack.c.b16 %v69, %v68
  %v80 = vpack.c.b16 %v71, %v70
  %v81 = vpack.c.b16 %v73, %v72
  %v86 = vunpack.c.l.b16 %v31
  %v87 = vunpack.c.l.b16 %v32
  %v88 = vunpack.c.l.b16 %v33
  %v89 = vunpack.c.l.b16 %v34
  %v90 = vpack.c.b16 %v87, %v86
  %v91 = vpack.c.b16 %v89, %v88
  %vm93 = vcmask 220160
  %v95 = vsel %vm93, %v74, 0
  %v98 = vsel %vm93, %v75, 0
  %v101 = vsel %vm93, %v76, 0
  %v104 = vsel %vm93, %v77, 0
  %v107 = vsel %vm93, %v78, 0
  %v110 = vsel %vm93, %v79, 0
  %v113 = vsel %vm93, %v80, 0
  %v116 = vsel %vm93, %v81, 0
  %vm118 = vcmask 1044480
  %vm119 = vcmask 1045504
  %v120 = vsel %vm118, 4294967295, 65535
  %v121 = vsel %vm119, %v120, 0
  %v123 = vand.u32 %v91, %v121
  %125 = vmatprep.subr.bf16.mxu0 0
  %126 = vmatpush1.bf16.msra.mxu0 %v90
  %127 = vmatprep.subr.bf16.mxu0 0
  %128 = vmatpush1.bf16.msra.mxu0 %v123
  %129 = vmatprep.subr.bf16.mxu0 0
  %130 = vmatpush1.bf16.msra.mxu0 0
  %131 = vmatprep.subr.bf16.mxu0 0
  %132 = vmatpush1.bf16.msra.mxu0 0
  %133 = vmatprep.subr.bf16.mxu0 0
  %134 = vmatpush1.bf16.msra.mxu0 0
  %135 = vmatprep.subr.bf16.mxu0 0
  %136 = vmatpush1.bf16.msra.mxu0 0
  %137 = vmatprep.subr.bf16.mxu0 0
  %138 = vmatpush1.bf16.msra.mxu0 0
  %139 = vmatprep.subr.bf16.mxu0 0
  %140 = vmatpush1.bf16.msra.mxu0 0
  %141 = vmatprep.subr.bf16.mxu0 0
  %142 = vmatpush1.bf16.msra.mxu0 0
  %143 = vmatprep.subr.bf16.mxu0 0
  %144 = vmatpush1.bf16.msra.mxu0 0
  %145 = vmatprep.subr.bf16.mxu0 0
  %146 = vmatpush1.bf16.msra.mxu0 0
  %147 = vmatprep.subr.bf16.mxu0 0
  %148 = vmatpush1.bf16.msra.mxu0 0
  %149 = vmatprep.subr.bf16.mxu0 0
  %150 = vmatpush1.bf16.msra.mxu0 0
  %151 = vmatprep.subr.bf16.mxu0 0
  %152 = vmatpush1.bf16.msra.mxu0 0
  %153 = vmatprep.subr.bf16.mxu0 0
  %154 = vmatpush1.bf16.msra.mxu0 0
  %155 = vmatprep.subr.bf16.mxu0 0
  %156 = vmatpush1.bf16.msra.mxu0 0
  %157 = vmatprep.mubr.bf16.mxu0 0
  %158 = vmatmul.mubr.bf16.gmra.mrb[0].mxu0 %v95
  %v159 = vpop.f32.mrb[0].mxu0
  %v160 = vadd.f32 %v40, %v159
  %v161 = vpop.f32.mrb[0].mxu0
  %v162 = vpop.f32.mrb[0].mxu0
  %v163 = vadd.f32 %v40, %v162
  %v164 = vpop.f32.mrb[0].mxu0
  %165 = vmatprep.mubr.bf16.mxu0 0
  %166 = vmatmul.mubr.bf16.gmra.mrb[0].mxu0 %v98
  %v167 = vpop.f32.mrb[0].mxu0
  %v168 = vadd.f32 %v40, %v167
  %v169 = vpop.f32.mrb[0].mxu0
  %v170 = vpop.f32.mrb[0].mxu0
  %v171 = vadd.f32 %v40, %v170
  %v172 = vpop.f32.mrb[0].mxu0
  %173 = vmatprep.mubr.bf16.mxu0 0
  %174 = vmatmul.mubr.bf16.gmra.mrb[0].mxu0 %v101
  %v175 = vpop.f32.mrb[0].mxu0
  %v176 = vadd.f32 %v40, %v175
  %v177 = vpop.f32.mrb[0].mxu0
  %v178 = vpop.f32.mrb[0].mxu0
  %v179 = vadd.f32 %v40, %v178
  %v180 = vpop.f32.mrb[0].mxu0
  %181 = vmatprep.mubr.bf16.mxu0 0
  %182 = vmatmul.mubr.bf16.gmra.mrb[0].mxu0 %v104
  %v183 = vpop.f32.mrb[0].mxu0
  %v184 = vadd.f32 %v40, %v183
  %v185 = vpop.f32.mrb[0].mxu0
  %v186 = vpop.f32.mrb[0].mxu0
  %v187 = vadd.f32 %v40, %v186
  %v188 = vpop.f32.mrb[0].mxu0
  %189 = vmatprep.mubr.bf16.mxu0 0
  %190 = vmatmul.mubr.bf16.gmra.mrb[0].mxu0 %v107
  %v191 = vpop.f32.mrb[0].mxu0
  %v192 = vadd.f32 %v40, %v191
  %v193 = vpop.f32.mrb[0].mxu0
  %v194 = vpop.f32.mrb[0].mxu0
  %v195 = vadd.f32 %v40, %v194
  %v196 = vpop.f32.mrb[0].mxu0
  %197 = vmatprep.mubr.bf16.mxu0 0
  %198 = vmatmul.mubr.bf16.gmra.mrb[0].mxu0 %v110
  %v199 = vpop.f32.mrb[0].mxu0
  %v200 = vadd.f32 %v40, %v199
  %v201 = vpop.f32.mrb[0].mxu0
  %v202 = vpop.f32.mrb[0].mxu0
  %v203 = vadd.f32 %v40, %v202
  %v204 = vpop.f32.mrb[0].mxu0
  %205 = vmatprep.mubr.bf16.mxu0 0
  %206 = vmatmul.mubr.bf16.gmra.mrb[0].mxu0 %v113
  %v207 = vpop.f32.mrb[0].mxu0
  %v208 = vadd.f32 %v40, %v207
  %v209 = vpop.f32.mrb[0].mxu0
  %v210 = vpop.f32.mrb[0].mxu0
  %v211 = vadd.f32 %v40, %v210
  %v212 = vpop.f32.mrb[0].mxu0
  %213 = vmatprep.mubr.bf16.mxu0 0
  %214 = vmatmul.mubr.bf16.gmra.mrb[0].mxu0 %v116
  %v215 = vpop.f32.mrb[0].mxu0
  %v216 = vadd.f32 %v40, %v215
  %v217 = vpop.f32.mrb[0].mxu0
  %v218 = vpop.f32.mrb[0].mxu0
  %v219 = vadd.f32 %v40, %v218
  %v220 = vpop.f32.mrb[0].mxu0
  %221 = vdwg.mxu0
  %v222 = vxor.u32 %v160, 2147483648
  %v223 = vxor.u32 %v163, 2147483648
  %v224 = vxor.u32 %v168, 2147483648
  %v225 = vxor.u32 %v171, 2147483648
  %v226 = vxor.u32 %v176, 2147483648
  %v227 = vxor.u32 %v179, 2147483648
  %v228 = vxor.u32 %v184, 2147483648
  %v229 = vxor.u32 %v187, 2147483648
  %v230 = vxor.u32 %v192, 2147483648
  %v231 = vxor.u32 %v195, 2147483648
  %v232 = vxor.u32 %v200, 2147483648
  %v233 = vxor.u32 %v203, 2147483648
  %v234 = vxor.u32 %v208, 2147483648
  %v235 = vxor.u32 %v211, 2147483648
  %v236 = vxor.u32 %v216, 2147483648
  %v237 = vxor.u32 %v219, 2147483648
  %v238 = vmul.f32 %v222, 1.442695
  %v239 = vpow.pop %v238
  %v240 = vmul.f32 %v223, 1.442695
  %v241 = vpow.pop %v240
  %v242 = vmul.f32 %v224, 1.442695
  %v243 = vpow.pop %v242
  %v244 = vmul.f32 %v225, 1.442695
  %v245 = vpow.pop %v244
  %v246 = vmul.f32 %v226, 1.442695
  %v247 = vpow.pop %v246
  %v248 = vmul.f32 %v227, 1.442695
  %v249 = vpow.pop %v248
  %v250 = vmul.f32 %v228, 1.442695
  %v251 = vpow.pop %v250
  %v252 = vmul.f32 %v229, 1.442695
  %v253 = vpow.pop %v252
  %v254 = vmul.f32 %v230, 1.442695
  %v255 = vpow.pop %v254
  %v256 = vmul.f32 %v231, 1.442695
  %v257 = vpow.pop %v256
  %v258 = vmul.f32 %v232, 1.442695
  %v259 = vpow.pop %v258
  %v260 = vmul.f32 %v233, 1.442695
  %v261 = vpow.pop %v260
  %v262 = vmul.f32 %v234, 1.442695
  %v263 = vpow.pop %v262
  %v264 = vmul.f32 %v235, 1.442695
  %v265 = vpow.pop %v264
  %v266 = vmul.f32 %v236, 1.442695
  %v267 = vpow.pop %v266
  %v268 = vmul.f32 %v237, 1.442695
  %v269 = vpow.pop %v268
  %v270 = vadd.f32 %v239, 1.0
  %v271 = vadd.f32 %v241, 1.0
  %v272 = vadd.f32 %v243, 1.0
  %v273 = vadd.f32 %v245, 1.0
  %v274 = vadd.f32 %v247, 1.0
  %v275 = vadd.f32 %v249, 1.0
  %v276 = vadd.f32 %v251, 1.0
  %v277 = vadd.f32 %v253, 1.0
  %v278 = vadd.f32 %v255, 1.0
  %v279 = vadd.f32 %v257, 1.0
  %v280 = vadd.f32 %v259, 1.0
  %v281 = vadd.f32 %v261, 1.0
  %v282 = vadd.f32 %v263, 1.0
  %v283 = vadd.f32 %v265, 1.0
  %v284 = vadd.f32 %v267, 1.0
  %v285 = vadd.f32 %v269, 1.0
  %v286 = vrcp.pop %v270
  %v287 = vmul.f32 1.0, %v286
  %v288 = vrcp.pop %v271
  %v289 = vmul.f32 1.0, %v288
  %v290 = vrcp.pop %v272
  %v291 = vmul.f32 1.0, %v290
  %v292 = vrcp.pop %v273
  %v293 = vmul.f32 1.0, %v292
  %v294 = vrcp.pop %v274
  %v295 = vmul.f32 1.0, %v294
  %v296 = vrcp.pop %v275
  %v297 = vmul.f32 1.0, %v296
  %v298 = vrcp.pop %v276
  %v299 = vmul.f32 1.0, %v298
  %v300 = vrcp.pop %v277
  %v301 = vmul.f32 1.0, %v300
  %v302 = vrcp.pop %v278
  %v303 = vmul.f32 1.0, %v302
  %v304 = vrcp.pop %v279
  %v305 = vmul.f32 1.0, %v304
  %v306 = vrcp.pop %v280
  %v307 = vmul.f32 1.0, %v306
  %v308 = vrcp.pop %v281
  %v309 = vmul.f32 1.0, %v308
  %v310 = vrcp.pop %v282
  %v311 = vmul.f32 1.0, %v310
  %v312 = vrcp.pop %v283
  %v313 = vmul.f32 1.0, %v312
  %v314 = vrcp.pop %v284
  %v315 = vmul.f32 1.0, %v314
  %v316 = vrcp.pop %v285
  %v317 = vmul.f32 1.0, %v316
  %v318 = vmul.f32 %v160, %v287
  %v319 = vmul.f32 %v163, %v289
  %v320 = vmul.f32 %v168, %v291
  %v321 = vmul.f32 %v171, %v293
  %v322 = vmul.f32 %v176, %v295
  %v323 = vmul.f32 %v179, %v297
  %v324 = vmul.f32 %v184, %v299
  %v325 = vmul.f32 %v187, %v301
  %v326 = vmul.f32 %v192, %v303
  %v327 = vmul.f32 %v195, %v305
  %v328 = vmul.f32 %v200, %v307
  %v329 = vmul.f32 %v203, %v309
  %v330 = vmul.f32 %v208, %v311
  %v331 = vmul.f32 %v211, %v313
  %v332 = vmul.f32 %v216, %v315
  %v333 = vmul.f32 %v219, %v317
  %v334 = vpack.c.bf16 %v319, %v318
  %v335 = vpack.c.bf16 %v321, %v320
  %v336 = vpack.c.bf16 %v323, %v322
  %v337 = vpack.c.bf16 %v325, %v324
  %v338 = vpack.c.bf16 %v327, %v326
  %v339 = vpack.c.bf16 %v329, %v328
  %v340 = vpack.c.bf16 %v331, %v330
  %v341 = vpack.c.bf16 %v333, %v332
  %v350 = vunpack.c.l.b16 %v334
  %v351 = vunpack.c.h.b16 %v334
  %v352 = vunpack.c.l.b16 %v335
  %v353 = vunpack.c.h.b16 %v335
  %v354 = vunpack.c.l.b16 %v336
  %v355 = vunpack.c.h.b16 %v336
  %v356 = vunpack.c.l.b16 %v337
  %v357 = vunpack.c.h.b16 %v337
  %v358 = vunpack.c.l.b16 %v338
  %v359 = vunpack.c.h.b16 %v338
  %v360 = vunpack.c.l.b16 %v339
  %v361 = vunpack.c.h.b16 %v339
  %v362 = vunpack.c.l.b16 %v340
  %v363 = vunpack.c.h.b16 %v340
  %v364 = vunpack.c.l.b16 %v341
  %v365 = vunpack.c.h.b16 %v341
  %v366 = vpack.c.b16 %v350, %v350
  %v367 = vpack.c.b16 %v351, %v351
  %v368 = vpack.c.b16 %v352, %v352
  %v369 = vpack.c.b16 %v353, %v353
  %v370 = vpack.c.b16 %v354, %v354
  %v371 = vpack.c.b16 %v355, %v355
  %v372 = vpack.c.b16 %v356, %v356
  %v373 = vpack.c.b16 %v357, %v357
  %v374 = vpack.c.b16 %v358, %v358
  %v375 = vpack.c.b16 %v359, %v359
  %v376 = vpack.c.b16 %v360, %v360
  %v377 = vpack.c.b16 %v361, %v361
  %v378 = vpack.c.b16 %v362, %v362
  %v379 = vpack.c.b16 %v363, %v363
  %v380 = vpack.c.b16 %v364, %v364
  %v381 = vpack.c.b16 %v365, %v365
  %vm398 = vcmask 257024
  %399 = vst.msk [vmem:[%s3] sm:$0xf] %vm398, %v366
  %400 = vst.msk [vmem:[%s3 + $0x4] sm:$0xf] %vm398, %v367
  %401 = vst.msk [vmem:[%s3 + $0x8] sm:$0xf] %vm398, %v368
  %402 = vst.msk [vmem:[%s3 + $0xc] sm:$0xf] %vm398, %v369
  %403 = vst.msk [vmem:[%s3 + $0x10] sm:$0xf] %vm398, %v370
  %404 = vst.msk [vmem:[%s3 + $0x14] sm:$0xf] %vm398, %v371
  %405 = vst.msk [vmem:[%s3 + $0x18] sm:$0xf] %vm398, %v372
  %406 = vst.msk [vmem:[%s3 + $0x1c] sm:$0xf] %vm398, %v373
  %407 = vst.msk [vmem:[%s3 + $0x20] sm:$0xf] %vm398, %v374
  %408 = vst.msk [vmem:[%s3 + $0x24] sm:$0xf] %vm398, %v375
  %409 = vst.msk [vmem:[%s3 + $0x28] sm:$0xf] %vm398, %v376
  %410 = vst.msk [vmem:[%s3 + $0x2c] sm:$0xf] %vm398, %v377
  %411 = vst.msk [vmem:[%s3 + $0x30] sm:$0xf] %vm398, %v378
  %412 = vst.msk [vmem:[%s3 + $0x34] sm:$0xf] %vm398, %v379
  %413 = vst.msk [vmem:[%s3 + $0x38] sm:$0xf] %vm398, %v380
  %414 = vst.msk [vmem:[%s3 + $0x3c] sm:$0xf] %vm398, %v381
  // Predicated region
  $region14: #{effnet_forward.6} parent=0 // pred_check
    _
  $region15: #{effnet_forward.6} parent=0 // pred_check_branch
    %416 = sbr.rel (0) target = $region17
  $region16: #{effnet_forward.6} parent=0 // pred_region
    _
  $region17: #{effnet_forward.6} parent=0 // pred_fallthru
    _
  // Predicated region
  $region18: #{effnet_forward.6} parent=0 // pred_check
    _
  $region19: #{effnet_forward.6} parent=0 // pred_check_branch
    %418 = sbr.rel (0) target = $region21
  $region20: #{effnet_forward.6} parent=0 // pred_region
    _
  $region21: #{effnet_forward.6} parent=0 // pred_fallthru
    _

// kernel: effnet_forward.7
$region0: #{effnet_forward.7}
  #allocation0 [shape = 'u32[]', space=smem, size = 0x4, offset = 0x4, fixed_abs, tag = 'smem constant byte address 0x4 - core index']
  #allocation1 [shape = 'u32[144,128]{1,0:T(1,128)}', space=vmem, size = 0x12000, scoped, tag = 'internal scratch']
  %s0 = inlined_call_operand.vmem [shape: bf16[128,32], index: 0, kind: input, shape index: {}]
  %s1 = inlined_call_operand.vmem [shape: bf16[32,128], index: 1, kind: input, shape index: {}]
  %s2 = inlined_call_operand.vmem [shape: f32[1,128], index: 2, kind: input, shape index: {}]
  %s3 = inlined_call_operand.vmem [shape: bf16[128,128], index: 3, kind: output, shape index: {}]
  %s4 = sld [smem:[#allocation0]]
  $region22: #{effnet_forward.7} parent=0
    _
  %s6 = ssub.s32 1, %s4
  %s7 = scalar_select 0, %s6, %s4
  // Predicated region
  $region2: #{effnet_forward.7} parent=0 // pred_check
    _
  $region3: #{effnet_forward.7} parent=0 // pred_check_branch
    %9 = sbr.rel (0) target = $region5
  $region4: #{effnet_forward.7} parent=0 // pred_region
    _
  $region5: #{effnet_forward.7} parent=0 // pred_fallthru
    _
  // Predicated region
  $region6: #{effnet_forward.7} parent=0 // pred_check
    _
  $region7: #{effnet_forward.7} parent=0 // pred_check_branch
    %11 = sbr.rel (0) target = $region9
  $region8: #{effnet_forward.7} parent=0 // pred_region
    _
  $region9: #{effnet_forward.7} parent=0 // pred_fallthru
    _
  // Predicated region
  $region10: #{effnet_forward.7} parent=0 // pred_check
    _
  $region11: #{effnet_forward.7} parent=0 // pred_check_branch
    %13 = sbr.rel (0) target = $region13
  $region12: #{effnet_forward.7} parent=0 // pred_region
    _
  $region13: #{effnet_forward.7} parent=0 // pred_fallthru
    _
  %v15 = vld [vmem:[%s0] sm:$0xf]
  %v16 = vld [vmem:[%s0 + $0x4] sm:$0xf]
  %v17 = vld [vmem:[%s0 + $0x8] sm:$0xf]
  %v18 = vld [vmem:[%s0 + $0xc] sm:$0xf]
  %v19 = vld [vmem:[%s0 + $0x10] sm:$0xf]
  %v20 = vld [vmem:[%s0 + $0x14] sm:$0xf]
  %v21 = vld [vmem:[%s0 + $0x18] sm:$0xf]
  %v22 = vld [vmem:[%s0 + $0x1c] sm:$0xf]
  %v23 = vld [vmem:[%s0 + $0x20] sm:$0xf]
  %v24 = vld [vmem:[%s0 + $0x24] sm:$0xf]
  %v25 = vld [vmem:[%s0 + $0x28] sm:$0xf]
  %v26 = vld [vmem:[%s0 + $0x2c] sm:$0xf]
  %v27 = vld [vmem:[%s0 + $0x30] sm:$0xf]
  %v28 = vld [vmem:[%s0 + $0x34] sm:$0xf]
  %v29 = vld [vmem:[%s0 + $0x38] sm:$0xf]
  %v30 = vld [vmem:[%s0 + $0x3c] sm:$0xf]
  %v31 = vld [vmem:[%s1] sm:$0xf]
  %v32 = vld [vmem:[%s1 + $0x4] sm:$0xf]
  %v33 = vld [vmem:[%s1 + $0x8] sm:$0xf]
  %v34 = vld [vmem:[%s1 + $0xc] sm:$0xf]
  %v35 = vld [vmem:[%s2] sm:$0x1]
  %v37 = vlaneseq
  %v38 = vshrl.u32 %v37, 7
  %v39 = vsub.s32 0, %v38
  %v40 = vrot.slane %v35, %v39
  %v58 = vunpack.c.l.b16 %v15
  %v59 = vunpack.c.l.b16 %v16
  %v60 = vunpack.c.l.b16 %v17
  %v61 = vunpack.c.l.b16 %v18
  %v62 = vunpack.c.l.b16 %v19
  %v63 = vunpack.c.l.b16 %v20
  %v64 = vunpack.c.l.b16 %v21
  %v65 = vunpack.c.l.b16 %v22
  %v66 = vunpack.c.l.b16 %v23
  %v67 = vunpack.c.l.b16 %v24
  %v68 = vunpack.c.l.b16 %v25
  %v69 = vunpack.c.l.b16 %v26
  %v70 = vunpack.c.l.b16 %v27
  %v71 = vunpack.c.l.b16 %v28
  %v72 = vunpack.c.l.b16 %v29
  %v73 = vunpack.c.l.b16 %v30
  %v74 = vpack.c.b16 %v59, %v58
  %v75 = vpack.c.b16 %v61, %v60
  %v76 = vpack.c.b16 %v63, %v62
  %v77 = vpack.c.b16 %v65, %v64
  %v78 = vpack.c.b16 %v67, %v66
  %v79 = vpack.c.b16 %v69, %v68
  %v80 = vpack.c.b16 %v71, %v70
  %v81 = vpack.c.b16 %v73, %v72
  %v86 = vunpack.c.l.b16 %v31
  %v87 = vunpack.c.l.b16 %v32
  %v88 = vunpack.c.l.b16 %v33
  %v89 = vunpack.c.l.b16 %v34
  %v90 = vpack.c.b16 %v87, %v86
  %v91 = vpack.c.b16 %v89, %v88
  %vm94 = vcmask 261120
  %v96 = vsel %vm94, %v74, 0
  %v99 = vsel %vm94, %v75, 0
  %v102 = vsel %vm94, %v76, 0
  %v105 = vsel %vm94, %v77, 0
  %v108 = vsel %vm94, %v78, 0
  %v111 = vsel %vm94, %v79, 0
  %v114 = vsel %vm94, %v80, 0
  %v117 = vsel %vm94, %v81, 0
  %119 = vmatprep.subr.bf16.mxu0 0
  %120 = vmatpush1.bf16.msra.mxu0 %v90
  %121 = vmatprep.subr.bf16.mxu0 0
  %122 = vmatpush1.bf16.msra.mxu0 %v91
  %123 = vmatprep.subr.bf16.mxu0 0
  %124 = vmatpush1.bf16.msra.mxu0 0
  %125 = vmatprep.subr.bf16.mxu0 0
  %126 = vmatpush1.bf16.msra.mxu0 0
  %127 = vmatprep.subr.bf16.mxu0 0
  %128 = vmatpush1.bf16.msra.mxu0 0
  %129 = vmatprep.subr.bf16.mxu0 0
  %130 = vmatpush1.bf16.msra.mxu0 0
  %131 = vmatprep.subr.bf16.mxu0 0
  %132 = vmatpush1.bf16.msra.mxu0 0
  %133 = vmatprep.subr.bf16.mxu0 0
  %134 = vmatpush1.bf16.msra.mxu0 0
  %135 = vmatprep.subr.bf16.mxu0 0
  %136 = vmatpush1.bf16.msra.mxu0 0
  %137 = vmatprep.subr.bf16.mxu0 0
  %138 = vmatpush1.bf16.msra.mxu0 0
  %139 = vmatprep.subr.bf16.mxu0 0
  %140 = vmatpush1.bf16.msra.mxu0 0
  %141 = vmatprep.subr.bf16.mxu0 0
  %142 = vmatpush1.bf16.msra.mxu0 0
  %143 = vmatprep.subr.bf16.mxu0 0
  %144 = vmatpush1.bf16.msra.mxu0 0
  %145 = vmatprep.subr.bf16.mxu0 0
  %146 = vmatpush1.bf16.msra.mxu0 0
  %147 = vmatprep.subr.bf16.mxu0 0
  %148 = vmatpush1.bf16.msra.mxu0 0
  %149 = vmatprep.subr.bf16.mxu0 0
  %150 = vmatpush1.bf16.msra.mxu0 0
  %151 = vmatprep.mubr.bf16.mxu0 0
  %152 = vmatmul.mubr.bf16.gmra.mrb[0].mxu0 %v96
  %v153 = vpop.f32.mrb[0].mxu0
  %v154 = vadd.f32 %v40, %v153
  %v155 = vpop.f32.mrb[0].mxu0
  %v156 = vpop.f32.mrb[0].mxu0
  %v157 = vadd.f32 %v40, %v156
  %v158 = vpop.f32.mrb[0].mxu0
  %159 = vmatprep.mubr.bf16.mxu0 0
  %160 = vmatmul.mubr.bf16.gmra.mrb[0].mxu0 %v99
  %v161 = vpop.f32.mrb[0].mxu0
  %v162 = vadd.f32 %v40, %v161
  %v163 = vpop.f32.mrb[0].mxu0
  %v164 = vpop.f32.mrb[0].mxu0
  %v165 = vadd.f32 %v40, %v164
  %v166 = vpop.f32.mrb[0].mxu0
  %167 = vmatprep.mubr.bf16.mxu0 0
  %168 = vmatmul.mubr.bf16.gmra.mrb[0].mxu0 %v102
  %v169 = vpop.f32.mrb[0].mxu0
  %v170 = vadd.f32 %v40, %v169
  %v171 = vpop.f32.mrb[0].mxu0
  %v172 = vpop.f32.mrb[0].mxu0
  %v173 = vadd.f32 %v40, %v172
  %v174 = vpop.f32.mrb[0].mxu0
  %175 = vmatprep.mubr.bf16.mxu0 0
  %176 = vmatmul.mubr.bf16.gmra.mrb[0].mxu0 %v105
  %v177 = vpop.f32.mrb[0].mxu0
  %v178 = vadd.f32 %v40, %v177
  %v179 = vpop.f32.mrb[0].mxu0
  %v180 = vpop.f32.mrb[0].mxu0
  %v181 = vadd.f32 %v40, %v180
  %v182 = vpop.f32.mrb[0].mxu0
  %183 = vmatprep.mubr.bf16.mxu0 0
  %184 = vmatmul.mubr.bf16.gmra.mrb[0].mxu0 %v108
  %v185 = vpop.f32.mrb[0].mxu0
  %v186 = vadd.f32 %v40, %v185
  %v187 = vpop.f32.mrb[0].mxu0
  %v188 = vpop.f32.mrb[0].mxu0
  %v189 = vadd.f32 %v40, %v188
  %v190 = vpop.f32.mrb[0].mxu0
  %191 = vmatprep.mubr.bf16.mxu0 0
  %192 = vmatmul.mubr.bf16.gmra.mrb[0].mxu0 %v111
  %v193 = vpop.f32.mrb[0].mxu0
  %v194 = vadd.f32 %v40, %v193
  %v195 = vpop.f32.mrb[0].mxu0
  %v196 = vpop.f32.mrb[0].mxu0
  %v197 = vadd.f32 %v40, %v196
  %v198 = vpop.f32.mrb[0].mxu0
  %199 = vmatprep.mubr.bf16.mxu0 0
  %200 = vmatmul.mubr.bf16.gmra.mrb[0].mxu0 %v114
  %v201 = vpop.f32.mrb[0].mxu0
  %v202 = vadd.f32 %v40, %v201
  %v203 = vpop.f32.mrb[0].mxu0
  %v204 = vpop.f32.mrb[0].mxu0
  %v205 = vadd.f32 %v40, %v204
  %v206 = vpop.f32.mrb[0].mxu0
  %207 = vmatprep.mubr.bf16.mxu0 0
  %208 = vmatmul.mubr.bf16.gmra.mrb[0].mxu0 %v117
  %v209 = vpop.f32.mrb[0].mxu0
  %v210 = vadd.f32 %v40, %v209
  %v211 = vpop.f32.mrb[0].mxu0
  %v212 = vpop.f32.mrb[0].mxu0
  %v213 = vadd.f32 %v40, %v212
  %v214 = vpop.f32.mrb[0].mxu0
  %215 = vdwg.mxu0
  %v216 = vxor.u32 %v154, 2147483648
  %v217 = vxor.u32 %v157, 2147483648
  %v218 = vxor.u32 %v162, 2147483648
  %v219 = vxor.u32 %v165, 2147483648
  %v220 = vxor.u32 %v170, 2147483648
  %v221 = vxor.u32 %v173, 2147483648
  %v222 = vxor.u32 %v178, 2147483648
  %v223 = vxor.u32 %v181, 2147483648
  %v224 = vxor.u32 %v186, 2147483648
  %v225 = vxor.u32 %v189, 2147483648
  %v226 = vxor.u32 %v194, 2147483648
  %v227 = vxor.u32 %v197, 2147483648
  %v228 = vxor.u32 %v202, 2147483648
  %v229 = vxor.u32 %v205, 2147483648
  %v230 = vxor.u32 %v210, 2147483648
  %v231 = vxor.u32 %v213, 2147483648
  %v232 = vmul.f32 %v216, 1.442695
  %v233 = vpow.pop %v232
  %v234 = vmul.f32 %v217, 1.442695
  %v235 = vpow.pop %v234
  %v236 = vmul.f32 %v218, 1.442695
  %v237 = vpow.pop %v236
  %v238 = vmul.f32 %v219, 1.442695
  %v239 = vpow.pop %v238
  %v240 = vmul.f32 %v220, 1.442695
  %v241 = vpow.pop %v240
  %v242 = vmul.f32 %v221, 1.442695
  %v243 = vpow.pop %v242
  %v244 = vmul.f32 %v222, 1.442695
  %v245 = vpow.pop %v244
  %v246 = vmul.f32 %v223, 1.442695
  %v247 = vpow.pop %v246
  %v248 = vmul.f32 %v224, 1.442695
  %v249 = vpow.pop %v248
  %v250 = vmul.f32 %v225, 1.442695
  %v251 = vpow.pop %v250
  %v252 = vmul.f32 %v226, 1.442695
  %v253 = vpow.pop %v252
  %v254 = vmul.f32 %v227, 1.442695
  %v255 = vpow.pop %v254
  %v256 = vmul.f32 %v228, 1.442695
  %v257 = vpow.pop %v256
  %v258 = vmul.f32 %v229, 1.442695
  %v259 = vpow.pop %v258
  %v260 = vmul.f32 %v230, 1.442695
  %v261 = vpow.pop %v260
  %v262 = vmul.f32 %v231, 1.442695
  %v263 = vpow.pop %v262
  %v264 = vadd.f32 %v233, 1.0
  %v265 = vadd.f32 %v235, 1.0
  %v266 = vadd.f32 %v237, 1.0
  %v267 = vadd.f32 %v239, 1.0
  %v268 = vadd.f32 %v241, 1.0
  %v269 = vadd.f32 %v243, 1.0
  %v270 = vadd.f32 %v245, 1.0
  %v271 = vadd.f32 %v247, 1.0
  %v272 = vadd.f32 %v249, 1.0
  %v273 = vadd.f32 %v251, 1.0
  %v274 = vadd.f32 %v253, 1.0
  %v275 = vadd.f32 %v255, 1.0
  %v276 = vadd.f32 %v257, 1.0
  %v277 = vadd.f32 %v259, 1.0
  %v278 = vadd.f32 %v261, 1.0
  %v279 = vadd.f32 %v263, 1.0
  %v280 = vrcp.pop %v264
  %v281 = vmul.f32 1.0, %v280
  %v282 = vrcp.pop %v265
  %v283 = vmul.f32 1.0, %v282
  %v284 = vrcp.pop %v266
  %v285 = vmul.f32 1.0, %v284
  %v286 = vrcp.pop %v267
  %v287 = vmul.f32 1.0, %v286
  %v288 = vrcp.pop %v268
  %v289 = vmul.f32 1.0, %v288
  %v290 = vrcp.pop %v269
  %v291 = vmul.f32 1.0, %v290
  %v292 = vrcp.pop %v270
  %v293 = vmul.f32 1.0, %v292
  %v294 = vrcp.pop %v271
  %v295 = vmul.f32 1.0, %v294
  %v296 = vrcp.pop %v272
  %v297 = vmul.f32 1.0, %v296
  %v298 = vrcp.pop %v273
  %v299 = vmul.f32 1.0, %v298
  %v300 = vrcp.pop %v274
  %v301 = vmul.f32 1.0, %v300
  %v302 = vrcp.pop %v275
  %v303 = vmul.f32 1.0, %v302
  %v304 = vrcp.pop %v276
  %v305 = vmul.f32 1.0, %v304
  %v306 = vrcp.pop %v277
  %v307 = vmul.f32 1.0, %v306
  %v308 = vrcp.pop %v278
  %v309 = vmul.f32 1.0, %v308
  %v310 = vrcp.pop %v279
  %v311 = vmul.f32 1.0, %v310
  %v312 = vmul.f32 %v154, %v281
  %v313 = vmul.f32 %v157, %v283
  %v314 = vmul.f32 %v162, %v285
  %v315 = vmul.f32 %v165, %v287
  %v316 = vmul.f32 %v170, %v289
  %v317 = vmul.f32 %v173, %v291
  %v318 = vmul.f32 %v178, %v293
  %v319 = vmul.f32 %v181, %v295
  %v320 = vmul.f32 %v186, %v297
  %v321 = vmul.f32 %v189, %v299
  %v322 = vmul.f32 %v194, %v301
  %v323 = vmul.f32 %v197, %v303
  %v324 = vmul.f32 %v202, %v305
  %v325 = vmul.f32 %v205, %v307
  %v326 = vmul.f32 %v210, %v309
  %v327 = vmul.f32 %v213, %v311
  %v328 = vpack.c.bf16 %v313, %v312
  %v329 = vpack.c.bf16 %v315, %v314
  %v330 = vpack.c.bf16 %v317, %v316
  %v331 = vpack.c.bf16 %v319, %v318
  %v332 = vpack.c.bf16 %v321, %v320
  %v333 = vpack.c.bf16 %v323, %v322
  %v334 = vpack.c.bf16 %v325, %v324
  %v335 = vpack.c.bf16 %v327, %v326
  %v344 = vunpack.c.l.b16 %v328
  %v345 = vunpack.c.h.b16 %v328
  %v346 = vunpack.c.l.b16 %v329
  %v347 = vunpack.c.h.b16 %v329
  %v348 = vunpack.c.l.b16 %v330
  %v349 = vunpack.c.h.b16 %v330
  %v350 = vunpack.c.l.b16 %v331
  %v351 = vunpack.c.h.b16 %v331
  %v352 = vunpack.c.l.b16 %v332
  %v353 = vunpack.c.h.b16 %v332
  %v354 = vunpack.c.l.b16 %v333
  %v355 = vunpack.c.h.b16 %v333
  %v356 = vunpack.c.l.b16 %v334
  %v357 = vunpack.c.h.b16 %v334
  %v358 = vunpack.c.l.b16 %v335
  %v359 = vunpack.c.h.b16 %v335
  %v360 = vpack.c.b16 %v344, %v344
  %v361 = vpack.c.b16 %v345, %v345
  %v362 = vpack.c.b16 %v346, %v346
  %v363 = vpack.c.b16 %v347, %v347
  %v364 = vpack.c.b16 %v348, %v348
  %v365 = vpack.c.b16 %v349, %v349
  %v366 = vpack.c.b16 %v350, %v350
  %v367 = vpack.c.b16 %v351, %v351
  %v368 = vpack.c.b16 %v352, %v352
  %v369 = vpack.c.b16 %v353, %v353
  %v370 = vpack.c.b16 %v354, %v354
  %v371 = vpack.c.b16 %v355, %v355
  %v372 = vpack.c.b16 %v356, %v356
  %v373 = vpack.c.b16 %v357, %v357
  %v374 = vpack.c.b16 %v358, %v358
  %v375 = vpack.c.b16 %v359, %v359
  %392 = vst [vmem:[%s3] sm:$0xf] %v360
  %393 = vst [vmem:[%s3 + $0x4] sm:$0xf] %v361
  %394 = vst [vmem:[%s3 + $0x8] sm:$0xf] %v362
  %395 = vst [vmem:[%s3 + $0xc] sm:$0xf] %v363
  %396 = vst [vmem:[%s3 + $0x10] sm:$0xf] %v364
  %397 = vst [vmem:[%s3 + $0x14] sm:$0xf] %v365
  %398 = vst [vmem:[%s3 + $0x18] sm:$0xf] %v366
  %399 = vst [vmem:[%s3 + $0x1c] sm:$0xf] %v367
  %400 = vst [vmem:[%s3 + $0x20] sm:$0xf] %v368
  %401 = vst [vmem:[%s3 + $0x24] sm:$0xf] %v369
  %402 = vst [vmem:[%s3 + $0x28] sm:$0xf] %v370
  %403 = vst [vmem:[%s3 + $0x2c] sm:$0xf] %v371
  %404 = vst [vmem:[%s3 + $0x30] sm:$0xf] %v372
  %405 = vst [vmem:[%s3 + $0x34] sm:$0xf] %v373
  %406 = vst [vmem:[%s3 + $0x38] sm:$0xf] %v374
  %407 = vst [vmem:[%s3 + $0x3c] sm:$0xf] %v375
  // Predicated region
  $region14: #{effnet_forward.7} parent=0 // pred_check
    _
  $region15: #{effnet_forward.7} parent=0 // pred_check_branch
    %409 = sbr.rel (0) target = $region17
  $region16: #{effnet_forward.7} parent=0 // pred_region
    _
  $region17: #{effnet_forward.7} parent=0 // pred_fallthru
    _
  // Predicated region
  $region18: #{effnet_forward.7} parent=0 // pred_check
    _
  $region19: #{effnet_forward.7} parent=0 // pred_check_branch
    %411 = sbr.rel (0) target = $region21
  $region20: #{effnet_forward.7} parent=0 // pred_region
    _
  $region21: #{effnet_forward.7} parent=0 // pred_fallthru
    _

// kernel: effnet_forward.8
$region0: #{effnet_forward.8}
  #allocation0 [shape = 'u32[]', space=smem, size = 0x4, offset = 0x4, fixed_abs, tag = 'smem constant byte address 0x4 - core index']
  #allocation1 [shape = 'u32[144,128]{1,0:T(1,128)}', space=vmem, size = 0x12000, scoped, tag = 'internal scratch']
  %s0 = inlined_call_operand.vmem [shape: bf16[2,10,10,128], index: 0, kind: input, shape index: {}]
  %s1 = inlined_call_operand.vmem [shape: f32[9,128], index: 1, kind: input, shape index: {}]
  %s2 = inlined_call_operand.vmem [shape: f32[1,128], index: 2, kind: input, shape index: {}]
  %s3 = inlined_call_operand.vmem [shape: bf16[2,8,8,128], index: 3, kind: output, shape index: {0}]
  %s4 = inlined_call_operand.vmem [shape: f32[2,1,128], index: 4, kind: output, shape index: {1}]
  %5 = xla_tuple %s3, %s4
  %s6 = sld [smem:[#allocation0]]
  $region53: #{effnet_forward.8} parent=0
    _
  %s8 = ssub.s32 1, %s6
  %s9 = scalar_select 0, %s8, %s6
  loop: start=0, step=1, limit=4
  $region2: #{effnet_forward.8} parent=0 // loop_pre_header
    _
  $region3: #{effnet_forward.8} parent=0 // loop_header
    %s11 = sphi 0, %s15
    %p12 = scmp.ge.s32.totalorder %s11, 4
    %s21 = sphi 0, %s23
    %s24 = sphi 0, %s21
    %s25 = sphi 0, %s24
    %s41 = sphi 0, %s25
    %s45 = sphi 0, %s45
    %s47 = sphi 0, %s45
    %s48 = sphi 0, %s47
    %s62 = sphi 0, %s48
    %s66 = sphi 0, %s66
    %s68 = sphi 0, %s66
    %s69 = sphi 0, %s68
    %s83 = sphi 0, %s69
    %s89 = sphi 0, %s91
    %s92 = sphi 0, %s89
    %s93 = sphi 0, %s92
    %s109 = sphi 0, %s93
    %s115 = sphi 0, %s117
    %s118 = sphi 0, %s115
    %s119 = sphi 0, %s118
    %s135 = sphi 0, %s119
  $region4: #{effnet_forward.8} parent=0 // loop_header_branch
    %14 = sbr.rel (%p12) target = $region8
  $region5: #{effnet_forward.8} parent=0 // loop_body
    %s16 = ssub.s32 %s11, 1
    %s17 = ssub.s32 %s11, 2
    %s18 = sadd.s32 %s11, 1
    %s19 = ssub.s32 %s11, %s18
    %p20 = scmp.eq.s32.totalorder %s19, 0
    %s22 = sadd.s32 %s21, 1
    %s23 = scalar_select %p20, %s21, %s22
    %p26 = pneg %p20
    %p27 = scmp.eq.s32.totalorder %s11, 1
    %p28 = por %p26, %p27
    %p29 = scmp.ne.s32.totalorder %s21, %s24
    %p30 = scmp.eq.s32.totalorder %s11, 0
    %p31 = por %p29, %p30
    %p32 = scmp.ne.s32.totalorder %s21, %s24
    %p33 = scmp.eq.s32.totalorder %s16, 1
    %p34 = por %p32, %p33
    %p35 = scmp.ne.s32.totalorder %s24, %s25
    %p36 = scmp.eq.s32.totalorder %s16, 0
    %p37 = por %p35, %p36
    %p38 = scmp.ne.s32.totalorder %s24, %s25
    %p39 = scmp.eq.s32.totalorder %s17, 1
    %p40 = por %p38, %p39
    %p42 = scmp.ne.s32.totalorder %s25, %s41
    %p43 = scmp.eq.s32.totalorder %s17, 0
    %p44 = por %p42, %p43
    %s46 = sadd.s32 %s45, 1
    %p49 = scmp.eq.s32.totalorder %s11, 1
    %p50 = scmp.ne.s32.totalorder %s45, %s47
    %p51 = scmp.eq.s32.totalorder %s11, 0
    %p52 = por %p50, %p51
    %p53 = scmp.ne.s32.totalorder %s45, %s47
    %p54 = scmp.eq.s32.totalorder %s16, 1
    %p55 = por %p53, %p54
    %p56 = scmp.ne.s32.totalorder %s47, %s48
    %p57 = scmp.eq.s32.totalorder %s16, 0
    %p58 = por %p56, %p57
    %p59 = scmp.ne.s32.totalorder %s47, %s48
    %p60 = scmp.eq.s32.totalorder %s17, 1
    %p61 = por %p59, %p60
    %p63 = scmp.ne.s32.totalorder %s48, %s62
    %p64 = scmp.eq.s32.totalorder %s17, 0
    %p65 = por %p63, %p64
    %s67 = sadd.s32 %s66, 1
    %p70 = scmp.eq.s32.totalorder %s11, 1
    %p71 = scmp.ne.s32.totalorder %s66, %s68
    %p72 = scmp.eq.s32.totalorder %s11, 0
    %p73 = por %p71, %p72
    %p74 = scmp.ne.s32.totalorder %s66, %s68
    %p75 = scmp.eq.s32.totalorder %s16, 1
    %p76 = por %p74, %p75
    %p77 = scmp.ne.s32.totalorder %s68, %s69
    %p78 = scmp.eq.s32.totalorder %s16, 0
    %p79 = por %p77, %p78
    %p80 = scmp.ne.s32.totalorder %s68, %s69
    %p81 = scmp.eq.s32.totalorder %s17, 1
    %p82 = por %p80, %p81
    %p84 = scmp.ne.s32.totalorder %s69, %s83
    %p85 = scmp.eq.s32.totalorder %s17, 0
    %p86 = por %p84, %p85
    %s87 = ssub.s32 %s11, %s18
    %p88 = scmp.eq.s32.totalorder %s87, 0
    %s90 = sadd.s32 %s89, 1
    %s91 = scalar_select %p88, %s89, %s90
    %p94 = pneg %p88
    %p95 = scmp.eq.s32.totalorder %s11, 1
    %p96 = por %p94, %p95
    %p97 = scmp.ne.s32.totalorder %s89, %s92
    %p98 = scmp.eq.s32.totalorder %s11, 0
    %p99 = por %p97, %p98
    %p100 = scmp.ne.s32.totalorder %s89, %s92
    %p101 = scmp.eq.s32.totalorder %s16, 1
    %p102 = por %p100, %p101
    %p103 = scmp.ne.s32.totalorder %s92, %s93
    %p104 = scmp.eq.s32.totalorder %s16, 0
    %p105 = por %p103, %p104
    %p106 = scmp.ne.s32.totalorder %s92, %s93
    %p107 = scmp.eq.s32.totalorder %s17, 1
    %p108 = por %p106, %p107
    %p110 = scmp.ne.s32.totalorder %s93, %s109
    %p111 = scmp.eq.s32.totalorder %s17, 0
    %p112 = por %p110, %p111
    %s113 = ssub.s32 %s11, %s18
    %p114 = scmp.eq.s32.totalorder %s113, 0
    %s116 = sadd.s32 %s115, 1
    %s117 = scalar_select %p114, %s115, %s116
    %p120 = pneg %p114
    %p121 = scmp.eq.s32.totalorder %s11, 1
    %p122 = por %p120, %p121
    %p123 = scmp.ne.s32.totalorder %s115, %s118
    %p124 = scmp.eq.s32.totalorder %s11, 0
    %p125 = por %p123, %p124
    %p126 = scmp.ne.s32.totalorder %s115, %s118
    %p127 = scmp.eq.s32.totalorder %s16, 1
    %p128 = por %p126, %p127
    %p129 = scmp.ne.s32.totalorder %s118, %s119
    %p130 = scmp.eq.s32.totalorder %s16, 0
    %p131 = por %p129, %p130
    %p132 = scmp.ne.s32.totalorder %s118, %s119
    %p133 = scmp.eq.s32.totalorder %s17, 1
    %p134 = por %p132, %p133
    %p136 = scmp.ne.s32.totalorder %s119, %s135
    %p137 = scmp.eq.s32.totalorder %s17, 0
    %p138 = por %p136, %p137
    %p139 = scmp.le.s32.totalorder 1, %s11
    %p140 = scmp.lt.s32.totalorder %s11, 3
    %p141 = pnand %p139, %p140
    %p142 = pneg %p141
    // Predicated region
    $region9: #{effnet_forward.8} parent=5 // pred_check
      _
    $region10: #{effnet_forward.8} parent=5 // pred_check_branch
      %144 = sbr.rel (%p141) target = $region12
    $region11: #{effnet_forward.8} parent=5 // pred_region
      %s145 = ssub.s32 %s11, 1
      // Predicated region
      $region13: #{effnet_forward.8} parent=11 // pred_check
        %p146 = pneg %p58
      $region14: #{effnet_forward.8} parent=11 // pred_check_branch
        %148 = sbr.rel (%p146) target = $region16
      $region15: #{effnet_forward.8} parent=11 // pred_region
        _
      $region16: #{effnet_forward.8} parent=11 // pred_fallthru
        _
      // Predicated region
      $region17: #{effnet_forward.8} parent=11 // pred_check
        %p149 = pneg %p79
      $region18: #{effnet_forward.8} parent=11 // pred_check_branch
        %151 = sbr.rel (%p149) target = $region20
      $region19: #{effnet_forward.8} parent=11 // pred_region
        _
      $region20: #{effnet_forward.8} parent=11 // pred_fallthru
        _
    $region12: #{effnet_forward.8} parent=5 // pred_fallthru
      _
    %p152 = scmp.lt.s32.totalorder %s11, 2
    // Predicated region
    $region21: #{effnet_forward.8} parent=5 // pred_check
      %p153 = pneg %p152
    $region22: #{effnet_forward.8} parent=5 // pred_check_branch
      %155 = sbr.rel (%p153) target = $region24
    $region23: #{effnet_forward.8} parent=5 // pred_region
      // Predicated region
      $region25: #{effnet_forward.8} parent=23 // pred_check
        %p156 = pneg %p31
      $region26: #{effnet_forward.8} parent=23 // pred_check_branch
        %158 = sbr.rel (%p156) target = $region28
      $region27: #{effnet_forward.8} parent=23 // pred_region
        %p159 = scmp.lt.s32.totalorder %s11, 1
        %s160 = scalar_select %p159, %s11, 1
        %s161 = smul.addr %s160, 20
        %s162 = smul.addr %s161, 4
        %s163 = scalar_lea.vmem %s0, %s162
      $region28: #{effnet_forward.8} parent=23 // pred_fallthru
        _
    $region24: #{effnet_forward.8} parent=5 // pred_fallthru
      _
    %p164 = scmp.le.s32.totalorder 1, %s11
    %p165 = scmp.lt.s32.totalorder %s11, 3
    %p166 = pnand %p164, %p165
    %p167 = pneg %p166
    // Predicated region
    $region29: #{effnet_forward.8} parent=5 // pred_check
      _
    $region30: #{effnet_forward.8} parent=5 // pred_check_branch
      %169 = sbr.rel (%p166) target = $region32
    $region31: #{effnet_forward.8} parent=5 // pred_region
      %s170 = ssub.s32 %s11, 1
      %p171 = scmp.lt.s32.totalorder %s16, 1
      %s172 = scalar_select %p171, %s16, 1
      %s173 = smul.addr %s172, 20
      %s174 = smul.addr %s173, 4
      %s175 = scalar_lea.vmem %s0, %s174
      %p176 = pneg %p37
      %p177 = pneg %p34
      %p178 = pneg %p58
      %p179 = pneg %p55
      %p180 = pneg %p79
      %p181 = pneg %p76
      %p182 = pneg %p105
      %p183 = pneg %p102
      %p184 = scmp.lt.s32.totalorder %s16, 1
      %s185 = scalar_select %p184, %s16, 1
      %s186 = smul.addr %s185, 8
      %s187 = smul.addr %s186, 4
      %s188 = scalar_lea.vmem %s3, %s187
      %p189 = pneg %p131
      %p190 = pneg %p128
      %p191 = scmp.lt.s32.totalorder %s16, 1
      %s192 = scalar_select %p191, %s16, 1
      %s193 = scalar_lea.vmem %s4, %s192
      %p194 = scmp.lt.s32.totalorder %s16, 1
      %s195 = scalar_select %p194, %s16, 1
      %s196 = smul.addr %s195, 20
      %s197 = smul.addr %s196, 4
      %s198 = scalar_lea.vmem %s0, %s197
      %p199 = scmp.lt.s32.totalorder %s16, 1
      %s200 = scalar_select %p199, %s16, 1
      %s201 = smul.addr %s200, 8
      %s202 = smul.addr %s201, 4
      %s203 = scalar_lea.vmem %s3, %s202
      %p204 = scmp.lt.s32.totalorder %s16, 1
      %s205 = scalar_select %p204, %s16, 1
      %s206 = scalar_lea.vmem %s4, %s205
      %v207 = vld [vmem:[%s198] sm:$0xf]
      %v208 = vld [vmem:[%s198 + $0x4] sm:$0x1]
      %v209 = vld [vmem:[%s198 + $0x8] sm:$0xf]
      %v210 = vld [vmem:[%s198 + $0xc] sm:$0x1]
      %v211 = vld [vmem:[%s198 + $0x10] sm:$0xf]
      %v212 = vld [vmem:[%s198 + $0x14] sm:$0x1]
      %v213 = vld [vmem:[%s198 + $0x18] sm:$0xf]
      %v214 = vld [vmem:[%s198 + $0x1c] sm:$0x1]
      %v215 = vld [vmem:[%s198 + $0x20] sm:$0xf]
      %v216 = vld [vmem:[%s198 + $0x24] sm:$0x1]
      %v217 = vld [vmem:[%s198 + $0x28] sm:$0xf]
      %v218 = vld [vmem:[%s198 + $0x2c] sm:$0x1]
      %v219 = vld [vmem:[%s198 + $0x30] sm:$0xf]
      %v220 = vld [vmem:[%s198 + $0x34] sm:$0x1]
      %v221 = vld [vmem:[%s198 + $0x38] sm:$0xf]
      %v222 = vld [vmem:[%s198 + $0x3c] sm:$0x1]
      %v223 = vld [vmem:[%s198 + $0x40] sm:$0xf]
      %v224 = vld [vmem:[%s198 + $0x44] sm:$0x1]
      %v225 = vld [vmem:[%s198 + $0x48] sm:$0xf]
      %v226 = vld [vmem:[%s198 + $0x4c] sm:$0x1]
      %v227 = vunpack.c.l.bf16 %v207
      %v228 = vunpack.c.l.bf16 %v208
      %v229 = vunpack.c.l.bf16 %v209
      %v230 = vunpack.c.l.bf16 %v210
      %v231 = vunpack.c.l.bf16 %v211
      %v232 = vunpack.c.l.bf16 %v212
      %v233 = vunpack.c.l.bf16 %v213
      %v234 = vunpack.c.l.bf16 %v214
      %v235 = vunpack.c.l.bf16 %v215
      %v236 = vunpack.c.l.bf16 %v216
      %v237 = vunpack.c.l.bf16 %v217
      %v238 = vunpack.c.l.bf16 %v218
      %v239 = vunpack.c.l.bf16 %v219
      %v240 = vunpack.c.l.bf16 %v220
      %v241 = vunpack.c.l.bf16 %v221
      %v242 = vunpack.c.l.bf16 %v222
      %v243 = vunpack.c.l.bf16 %v223
      %v244 = vunpack.c.l.bf16 %v224
      %v245 = vunpack.c.l.bf16 %v225
      %v246 = vunpack.c.l.bf16 %v226
      %v247 = vld [vmem:[%s1] sm:$0xff]
      %v248 = vld [vmem:[%s1 + $0x8] sm:$0x1]
      %v249 = vlaneseq
      %v250 = vshrl.u32 %v249, 7
      %v251 = vsub.s32 0, %v250
      %v252 = vrot.slane %v247, %v251
      %v253 = vmul.f32 %v227, %v252
      %v254 = vmul.f32 %v229, %v252
      %v255 = vmul.f32 %v231, %v252
      %v256 = vmul.f32 %v233, %v252
      %v257 = vmul.f32 %v235, %v252
      %v258 = vmul.f32 %v237, %v252
      %v259 = vmul.f32 %v239, %v252
      %v260 = vmul.f32 %v241, %v252
      %v261 = vadd.f32 %v253, 0.0
      %v262 = vadd.f32 %v254, 0.0
      %v263 = vadd.f32 %v255, 0.0
      %v264 = vadd.f32 %v256, 0.0
      %v265 = vadd.f32 %v257, 0.0
      %v266 = vadd.f32 %v258, 0.0
      %v267 = vadd.f32 %v259, 0.0
      %v268 = vadd.f32 %v260, 0.0
      %v269 = vlaneseq
      %v270 = vshrl.u32 %v269, 7
      %v271 = vsub.s32 1, %v270
      %v272 = vrot.slane %v247, %v271
      %v273 = vmul.f32 %v227, %v272
      %v274 = vmul.f32 %v228, %v272
      %v275 = vmul.f32 %v229, %v272
      %v276 = vmul.f32 %v230, %v272
      %v277 = vmul.f32 %v231, %v272
      %v278 = vmul.f32 %v232, %v272
      %v279 = vmul.f32 %v233, %v272
      %v280 = vmul.f32 %v234, %v272
      %v281 = vmul.f32 %v235, %v272
      %v282 = vmul.f32 %v236, %v272
      %v283 = vmul.f32 %v237, %v272
      %v284 = vmul.f32 %v238, %v272
      %v285 = vmul.f32 %v239, %v272
      %v286 = vmul.f32 %v240, %v272
      %v287 = vmul.f32 %v241, %v272
      %v288 = vmul.f32 %v242, %v272
      %vm305 = vcmask 1046528
      %v306 = vrot.slane %v273, 1
      %v307 = vrot.slane %v274, 1
      %v308 = vsel %vm305, %v306, %v307
      %v309 = vrot.slane %v275, 1
      %v310 = vrot.slane %v276, 1
      %v311 = vsel %vm305, %v309, %v310
      %v312 = vrot.slane %v277, 1
      %v313 = vrot.slane %v278, 1
      %v314 = vsel %vm305, %v312, %v313
      %v315 = vrot.slane %v279, 1
      %v316 = vrot.slane %v280, 1
      %v317 = vsel %vm305, %v315, %v316
      %v318 = vrot.slane %v281, 1
      %v319 = vrot.slane %v282, 1
      %v320 = vsel %vm305, %v318, %v319
      %v321 = vrot.slane %v283, 1
      %v322 = vrot.slane %v284, 1
      %v323 = vsel %vm305, %v321, %v322
      %v324 = vrot.slane %v285, 1
      %v325 = vrot.slane %v286, 1
      %v326 = vsel %vm305, %v324, %v325
      %v327 = vrot.slane %v287, 1
      %v328 = vrot.slane %v288, 1
      %v329 = vsel %vm305, %v327, %v328
      %v338 = vadd.f32 %v261, %v308
      %v339 = vadd.f32 %v262, %v311
      %v340 = vadd.f32 %v263, %v314
      %v341 = vadd.f32 %v264, %v317
      %v342 = vadd.f32 %v265, %v320
      %v343 = vadd.f32 %v266, %v323
      %v344 = vadd.f32 %v267, %v326
      %v345 = vadd.f32 %v268, %v329
      %v346 = vlaneseq
      %v347 = vshrl.u32 %v346, 7
      %v348 = vsub.s32 2, %v347
      %v349 = vrot.slane %v247, %v348
      %v350 = vmul.f32 %v227, %v349
      %v351 = vmul.f32 %v228, %v349
      %v352 = vmul.f32 %v229, %v349
      %v353 = vmul.f32 %v230, %v349
      %v354 = vmul.f32 %v231, %v349
      %v355 = vmul.f32 %v232, %v349
      %v356 = vmul.f32 %v233, %v349
      %v357 = vmul.f32 %v234, %v349
      %v358 = vmul.f32 %v235, %v349
      %v359 = vmul.f32 %v236, %v349
      %v360 = vmul.f32 %v237, %v349
      %v361 = vmul.f32 %v238, %v349
      %v362 = vmul.f32 %v239, %v349
      %v363 = vmul.f32 %v240, %v349
      %v364 = vmul.f32 %v241, %v349
      %v365 = vmul.f32 %v242, %v349
      %vm382 = vcmask 1045504
      %v383 = vrot.slane %v350, 2
      %v384 = vrot.slane %v351, 2
      %v385 = vsel %vm382, %v383, %v384
      %v386 = vrot.slane %v352, 2
      %v387 = vrot.slane %v353, 2
      %v388 = vsel %vm382, %v386, %v387
      %v389 = vrot.slane %v354, 2
      %v390 = vrot.slane %v355, 2
      %v391 = vsel %vm382, %v389, %v390
      %v392 = vrot.slane %v356, 2
      %v393 = vrot.slane %v357, 2
      %v394 = vsel %vm382, %v392, %v393
      %v395 = vrot.slane %v358, 2
      %v396 = vrot.slane %v359, 2
      %v397 = vsel %vm382, %v395, %v396
      %v398 = vrot.slane %v360, 2
      %v399 = vrot.slane %v361, 2
      %v400 = vsel %vm382, %v398, %v399
      %v401 = vrot.slane %v362, 2
      %v402 = vrot.slane %v363, 2
      %v403 = vsel %vm382, %v401, %v402
      %v404 = vrot.slane %v364, 2
      %v405 = vrot.slane %v365, 2
      %v406 = vsel %vm382, %v404, %v405
      %v415 = vadd.f32 %v338, %v385
      %v416 = vadd.f32 %v339, %v388
      %v417 = vadd.f32 %v340, %v391
      %v418 = vadd.f32 %v341, %v394
      %v419 = vadd.f32 %v342, %v397
      %v420 = vadd.f32 %v343, %v400
      %v421 = vadd.f32 %v344, %v403
      %v422 = vadd.f32 %v345, %v406
      %v423 = vlaneseq
      %v424 = vshrl.u32 %v423, 7
      %v425 = vsub.s32 3, %v424
      %v426 = vrot.slane %v247, %v425
      %v427 = vmul.f32 %v229, %v426
      %v428 = vmul.f32 %v231, %v426
      %v429 = vmul.f32 %v233, %v426
      %v430 = vmul.f32 %v235, %v426
      %v431 = vmul.f32 %v237, %v426
      %v432 = vmul.f32 %v239, %v426
      %v433 = vmul.f32 %v241, %v426
      %v434 = vmul.f32 %v243, %v426
      %v435 = vadd.f32 %v415, %v427
      %v436 = vadd.f32 %v416, %v428
      %v437 = vadd.f32 %v417, %v429
      %v438 = vadd.f32 %v418, %v430
      %v439 = vadd.f32 %v419, %v431
      %v440 = vadd.f32 %v420, %v432
      %v441 = vadd.f32 %v421, %v433
      %v442 = vadd.f32 %v422, %v434
      %v443 = vlaneseq
      %v444 = vshrl.u32 %v443, 7
      %v445 = vsub.s32 4, %v444
      %v446 = vrot.slane %v247, %v445
      %v447 = vmul.f32 %v229, %v446
      %v448 = vmul.f32 %v230, %v446
      %v449 = vmul.f32 %v231, %v446
      %v450 = vmul.f32 %v232, %v446
      %v451 = vmul.f32 %v233, %v446
      %v452 = vmul.f32 %v234, %v446
      %v453 = vmul.f32 %v235, %v446
      %v454 = vmul.f32 %v236, %v446
      %v455 = vmul.f32 %v237, %v446
      %v456 = vmul.f32 %v238, %v446
      %v457 = vmul.f32 %v239, %v446
      %v458 = vmul.f32 %v240, %v446
      %v459 = vmul.f32 %v241, %v446
      %v460 = vmul.f32 %v242, %v446
      %v461 = vmul.f32 %v243, %v446
      %v462 = vmul.f32 %v244, %v446
      %v479 = vrot.slane %v447, 1
      %v480 = vrot.slane %v448, 1
      %v481 = vsel %vm305, %v479, %v480
      %v482 = vrot.slane %v449, 1
      %v483 = vrot.slane %v450, 1
      %v484 = vsel %vm305, %v482, %v483
      %v485 = vrot.slane %v451, 1
      %v486 = vrot.slane %v452, 1
      %v487 = vsel %vm305, %v485, %v486
      %v488 = vrot.slane %v453, 1
      %v489 = vrot.slane %v454, 1
      %v490 = vsel %vm305, %v488, %v489
      %v491 = vrot.slane %v455, 1
      %v492 = vrot.slane %v456, 1
      %v493 = vsel %vm305, %v491, %v492
      %v494 = vrot.slane %v457, 1
      %v495 = vrot.slane %v458, 1
      %v496 = vsel %vm305, %v494, %v495
      %v497 = vrot.slane %v459, 1
      %v498 = vrot.slane %v460, 1
      %v499 = vsel %vm305, %v497, %v498
      %v500 = vrot.slane %v461, 1
      %v501 = vrot.slane %v462, 1
      %v502 = vsel %vm305, %v500, %v501
      %v511 = vadd.f32 %v435, %v481
      %v512 = vadd.f32 %v436, %v484
      %v513 = vadd.f32 %v437, %v487
      %v514 = vadd.f32 %v438, %v490
      %v515 = vadd.f32 %v439, %v493
      %v516 = vadd.f32 %v440, %v496
      %v517 = vadd.f32 %v441, %v499
      %v518 = vadd.f32 %v442, %v502
      %v519 = vlaneseq
      %v520 = vshrl.u32 %v519, 7
      %v521 = vsub.s32 5, %v520
      %v522 = vrot.slane %v247, %v521
      %v523 = vmul.f32 %v229, %v522
      %v524 = vmul.f32 %v230, %v522
      %v525 = vmul.f32 %v231, %v522
      %v526 = vmul.f32 %v232, %v522
      %v527 = vmul.f32 %v233, %v522
      %v528 = vmul.f32 %v234, %v522
      %v529 = vmul.f32 %v235, %v522
      %v530 = vmul.f32 %v236, %v522
      %v531 = vmul.f32 %v237, %v522
      %v532 = vmul.f32 %v238, %v522
      %v533 = vmul.f32 %v239, %v522
      %v534 = vmul.f32 %v240, %v522
      %v535 = vmul.f32 %v241, %v522
      %v536 = vmul.f32 %v242, %v522
      %v537 = vmul.f32 %v243, %v522
      %v538 = vmul.f32 %v244, %v522
      %v555 = vrot.slane %v523, 2
      %v556 = vrot.slane %v524, 2
      %v557 = vsel %vm382, %v555, %v556
      %v558 = vrot.slane %v525, 2
      %v559 = vrot.slane %v526, 2
      %v560 = vsel %vm382, %v558, %v559
      %v561 = vrot.slane %v527, 2
      %v562 = vrot.slane %v528, 2
      %v563 = vsel %vm382, %v561, %v562
      %v564 = vrot.slane %v529, 2
      %v565 = vrot.slane %v530, 2
      %v566 = vsel %vm382, %v564, %v565
      %v567 = vrot.slane %v531, 2
      %v568 = vrot.slane %v532, 2
      %v569 = vsel %vm382, %v567, %v568
      %v570 = vrot.slane %v533, 2
      %v571 = vrot.slane %v534, 2
      %v572 = vsel %vm382, %v570, %v571
      %v573 = vrot.slane %v535, 2
      %v574 = vrot.slane %v536, 2
      %v575 = vsel %vm382, %v573, %v574
      %v576 = vrot.slane %v537, 2
      %v577 = vrot.slane %v538, 2
      %v578 = vsel %vm382, %v576, %v577
      %v587 = vadd.f32 %v511, %v557
      %v588 = vadd.f32 %v512, %v560
      %v589 = vadd.f32 %v513, %v563
      %v590 = vadd.f32 %v514, %v566
      %v591 = vadd.f32 %v515, %v569
      %v592 = vadd.f32 %v516, %v572
      %v593 = vadd.f32 %v517, %v575
      %v594 = vadd.f32 %v518, %v578
      %v595 = vlaneseq
      %v596 = vshrl.u32 %v595, 7
      %v597 = vsub.s32 6, %v596
      %v598 = vrot.slane %v247, %v597
      %v599 = vmul.f32 %v231, %v598
      %v600 = vmul.f32 %v233, %v598
      %v601 = vmul.f32 %v235, %v598
      %v602 = vmul.f32 %v237, %v598
      %v603 = vmul.f32 %v239, %v598
      %v604 = vmul.f32 %v241, %v598
      %v605 = vmul.f32 %v243, %v598
      %v606 = vmul.f32 %v245, %v598
      %v607 = vadd.f32 %v587, %v599
      %v608 = vadd.f32 %v588, %v600
      %v609 = vadd.f32 %v589, %v601
      %v610 = vadd.f32 %v590, %v602
      %v611 = vadd.f32 %v591, %v603
      %v612 = vadd.f32 %v592, %v604
      %v613 = vadd.f32 %v593, %v605
      %v614 = vadd.f32 %v594, %v606
      %v615 = vlaneseq
      %v616 = vshrl.u32 %v615, 7
      %v617 = vsub.s32 7, %v616
      %v618 = vrot.slane %v247, %v617
      %v619 = vmul.f32 %v231, %v618
      %v620 = vmul.f32 %v232, %v618
      %v621 = vmul.f32 %v233, %v618
      %v622 = vmul.f32 %v234, %v618
      %v623 = vmul.f32 %v235, %v618
      %v624 = vmul.f32 %v236, %v618
      %v625 = vmul.f32 %v237, %v618
      %v626 = vmul.f32 %v238, %v618
      %v627 = vmul.f32 %v239, %v618
      %v628 = vmul.f32 %v240, %v618
      %v629 = vmul.f32 %v241, %v618
      %v630 = vmul.f32 %v242, %v618
      %v631 = vmul.f32 %v243, %v618
      %v632 = vmul.f32 %v244, %v618
      %v633 = vmul.f32 %v245, %v618
      %v634 = vmul.f32 %v246, %v618
      %v651 = vrot.slane %v619, 1
      %v652 = vrot.slane %v620, 1
      %v653 = vsel %vm305, %v651, %v652
      %v654 = vrot.slane %v621, 1
      %v655 = vrot.slane %v622, 1
      %v656 = vsel %vm305, %v654, %v655
      %v657 = vrot.slane %v623, 1
      %v658 = vrot.slane %v624, 1
      %v659 = vsel %vm305, %v657, %v658
      %v660 = vrot.slane %v625, 1
      %v661 = vrot.slane %v626, 1
      %v662 = vsel %vm305, %v660, %v661
      %v663 = vrot.slane %v627, 1
      %v664 = vrot.slane %v628, 1
      %v665 = vsel %vm305, %v663, %v664
      %v666 = vrot.slane %v629, 1
      %v667 = vrot.slane %v630, 1
      %v668 = vsel %vm305, %v666, %v667
      %v669 = vrot.slane %v631, 1
      %v670 = vrot.slane %v632, 1
      %v671 = vsel %vm305, %v669, %v670
      %v672 = vrot.slane %v633, 1
      %v673 = vrot.slane %v634, 1
      %v674 = vsel %vm305, %v672, %v673
      %v683 = vadd.f32 %v607, %v653
      %v684 = vadd.f32 %v608, %v656
      %v685 = vadd.f32 %v609, %v659
      %v686 = vadd.f32 %v610, %v662
      %v687 = vadd.f32 %v611, %v665
      %v688 = vadd.f32 %v612, %v668
      %v689 = vadd.f32 %v613, %v671
      %v690 = vadd.f32 %v614, %v674
      %v691 = vlaneseq
      %v692 = vshrl.u32 %v691, 7
      %v693 = vsub.s32 0, %v692
      %v694 = vrot.slane %v248, %v693
      %v695 = vmul.f32 %v231, %v694
      %v696 = vmul.f32 %v232, %v694
      %v697 = vmul.f32 %v233, %v694
      %v698 = vmul.f32 %v234, %v694
      %v699 = vmul.f32 %v235, %v694
      %v700 = vmul.f32 %v236, %v694
      %v701 = vmul.f32 %v237, %v694
      %v702 = vmul.f32 %v238, %v694
      %v703 = vmul.f32 %v239, %v694
      %v704 = vmul.f32 %v240, %v694
      %v705 = vmul.f32 %v241, %v694
      %v706 = vmul.f32 %v242, %v694
      %v707 = vmul.f32 %v243, %v694
      %v708 = vmul.f32 %v244, %v694
      %v709 = vmul.f32 %v245, %v694
      %v710 = vmul.f32 %v246, %v694
      %v727 = vrot.slane %v695, 2
      %v728 = vrot.slane %v696, 2
      %v729 = vsel %vm382, %v727, %v728
      %v730 = vrot.slane %v697, 2
      %v731 = vrot.slane %v698, 2
      %v732 = vsel %vm382, %v730, %v731
      %v733 = vrot.slane %v699, 2
      %v734 = vrot.slane %v700, 2
      %v735 = vsel %vm382, %v733, %v734
      %v736 = vrot.slane %v701, 2
      %v737 = vrot.slane %v702, 2
      %v738 = vsel %vm382, %v736, %v737
      %v739 = vrot.slane %v703, 2
      %v740 = vrot.slane %v704, 2
      %v741 = vsel %vm382, %v739, %v740
      %v742 = vrot.slane %v705, 2
      %v743 = vrot.slane %v706, 2
      %v744 = vsel %vm382, %v742, %v743
      %v745 = vrot.slane %v707, 2
      %v746 = vrot.slane %v708, 2
      %v747 = vsel %vm382, %v745, %v746
      %v748 = vrot.slane %v709, 2
      %v749 = vrot.slane %v710, 2
      %v750 = vsel %vm382, %v748, %v749
      %v759 = vadd.f32 %v683, %v729
      %v760 = vadd.f32 %v684, %v732
      %v761 = vadd.f32 %v685, %v735
      %v762 = vadd.f32 %v686, %v738
      %v763 = vadd.f32 %v687, %v741
      %v764 = vadd.f32 %v688, %v744
      %v765 = vadd.f32 %v689, %v747
      %v766 = vadd.f32 %v690, %v750
      %v767 = vld [vmem:[%s2] sm:$0x1]
      %v769 = vlaneseq
      %v770 = vshrl.u32 %v769, 7
      %v771 = vsub.s32 0, %v770
      %v772 = vrot.slane %v767, %v771
      %v774 = vadd.f32 %v759, %v772
      %v775 = vadd.f32 %v760, %v772
      %v776 = vadd.f32 %v761, %v772
      %v777 = vadd.f32 %v762, %v772
      %v778 = vadd.f32 %v763, %v772
      %v779 = vadd.f32 %v764, %v772
      %v780 = vadd.f32 %v765, %v772
      %v781 = vadd.f32 %v766, %v772
      %v782 = vxor.u32 %v774, 2147483648
      %v783 = vxor.u32 %v775, 2147483648
      %v784 = vxor.u32 %v776, 2147483648
      %v785 = vxor.u32 %v777, 2147483648
      %v786 = vxor.u32 %v778, 2147483648
      %v787 = vxor.u32 %v779, 2147483648
      %v788 = vxor.u32 %v780, 2147483648
      %v789 = vxor.u32 %v781, 2147483648
      %v790 = vmul.f32 %v782, 1.442695
      %v791 = vpow.pop %v790
      %v792 = vmul.f32 %v783, 1.442695
      %v793 = vpow.pop %v792
      %v794 = vmul.f32 %v784, 1.442695
      %v795 = vpow.pop %v794
      %v796 = vmul.f32 %v785, 1.442695
      %v797 = vpow.pop %v796
      %v798 = vmul.f32 %v786, 1.442695
      %v799 = vpow.pop %v798
      %v800 = vmul.f32 %v787, 1.442695
      %v801 = vpow.pop %v800
      %v802 = vmul.f32 %v788, 1.442695
      %v803 = vpow.pop %v802
      %v804 = vmul.f32 %v789, 1.442695
      %v805 = vpow.pop %v804
      %v806 = vadd.f32 %v791, 1.0
      %v807 = vadd.f32 %v793, 1.0
      %v808 = vadd.f32 %v795, 1.0
      %v809 = vadd.f32 %v797, 1.0
      %v810 = vadd.f32 %v799, 1.0
      %v811 = vadd.f32 %v801, 1.0
      %v812 = vadd.f32 %v803, 1.0
      %v813 = vadd.f32 %v805, 1.0
      %v814 = vrcp.pop %v806
      %v815 = vmul.f32 1.0, %v814
      %v816 = vrcp.pop %v807
      %v817 = vmul.f32 1.0, %v816
      %v818 = vrcp.pop %v808
      %v819 = vmul.f32 1.0, %v818
      %v820 = vrcp.pop %v809
      %v821 = vmul.f32 1.0, %v820
      %v822 = vrcp.pop %v810
      %v823 = vmul.f32 1.0, %v822
      %v824 = vrcp.pop %v811
      %v825 = vmul.f32 1.0, %v824
      %v826 = vrcp.pop %v812
      %v827 = vmul.f32 1.0, %v826
      %v828 = vrcp.pop %v813
      %v829 = vmul.f32 1.0, %v828
      %v830 = vmul.f32 %v774, %v815
      %v831 = vmul.f32 %v775, %v817
      %v832 = vmul.f32 %v776, %v819
      %v833 = vmul.f32 %v777, %v821
      %v834 = vmul.f32 %v778, %v823
      %v835 = vmul.f32 %v779, %v825
      %v836 = vmul.f32 %v780, %v827
      %v837 = vmul.f32 %v781, %v829
      %v838 = vpack.c.bf16 %v830, %v830
      %v839 = vpack.c.bf16 %v831, %v831
      %v840 = vpack.c.bf16 %v832, %v832
      %v841 = vpack.c.bf16 %v833, %v833
      %v842 = vpack.c.bf16 %v834, %v834
      %v843 = vpack.c.bf16 %v835, %v835
      %v844 = vpack.c.bf16 %v836, %v836
      %v845 = vpack.c.bf16 %v837, %v837
      %846 = vst [vmem:[%s203] sm:$0xf] %v838
      %847 = vst [vmem:[%s203 + $0x4] sm:$0xf] %v839
      %848 = vst [vmem:[%s203 + $0x8] sm:$0xf] %v840
      %849 = vst [vmem:[%s203 + $0xc] sm:$0xf] %v841
      %850 = vst [vmem:[%s203 + $0x10] sm:$0xf] %v842
      %851 = vst [vmem:[%s203 + $0x14] sm:$0xf] %v843
      %852 = vst [vmem:[%s203 + $0x18] sm:$0xf] %v844
      %853 = vst [vmem:[%s203 + $0x1c] sm:$0xf] %v845
      %v854 = vadd.f32 %v830, %v831
      %v855 = vadd.f32 %v854, %v832
      %v856 = vadd.f32 %v855, %v833
      %v857 = vadd.f32 %v856, %v834
      %v858 = vadd.f32 %v857, %v835
      %v859 = vadd.f32 %v858, %v836
      %v860 = vadd.f32 %v859, %v837
      %v861 = vrot.slane %v860, 4
      %v862 = vadd.f32 %v860, %v861
      %v863 = vrot.slane %v862, 2
      %v864 = vadd.f32 %v862, %v863
      %v865 = vrot.slane %v864, 1
      %v866 = vadd.f32 %v864, %v865
      %v867 = vrcp.pop 64.0
      %v868 = vmul.f32 %v866, %v867
      %869 = vst [vmem:[%s206] sm:$0x1] %v868
      %p870 = scmp.lt.s32.totalorder %s16, 1
      %s871 = scalar_select %p870, %s16, 1
      %s872 = smul.addr %s871, 8
      %s873 = smul.addr %s872, 4
      %s874 = scalar_lea.vmem %s3, %s873
      %p875 = scmp.lt.s32.totalorder %s16, 1
      %s876 = scalar_select %p875, %s16, 1
      %s877 = scalar_lea.vmem %s4, %s876
      // Predicated region
      $region33: #{effnet_forward.8} parent=31 // pred_check
        %p878 = pneg %p102
      $region34: #{effnet_forward.8} parent=31 // pred_check_branch
        %880 = sbr.rel (%p878) target = $region36
      $region35: #{effnet_forward.8} parent=31 // pred_region
        _
      $region36: #{effnet_forward.8} parent=31 // pred_fallthru
        _
      // Predicated region
      $region37: #{effnet_forward.8} parent=31 // pred_check
        %p881 = pneg %p128
      $region38: #{effnet_forward.8} parent=31 // pred_check_branch
        %883 = sbr.rel (%p881) target = $region40
      $region39: #{effnet_forward.8} parent=31 // pred_region
        _
      $region40: #{effnet_forward.8} parent=31 // pred_fallthru
        _
    $region32: #{effnet_forward.8} parent=5 // pred_fallthru
      _
    %p884 = scmp.le.s32.totalorder 2, %s11
    // Predicated region
    $region41: #{effnet_forward.8} parent=5 // pred_check
      %p885 = pneg %p884
    $region42: #{effnet_forward.8} parent=5 // pred_check_branch
      %887 = sbr.rel (%p885) target = $region44
    $region43: #{effnet_forward.8} parent=5 // pred_region
      %s888 = ssub.s32 %s11, 2
      // Predicated region
      $region45: #{effnet_forward.8} parent=43 // pred_check
        %p889 = pneg %p108
      $region46: #{effnet_forward.8} parent=43 // pred_check_branch
        %891 = sbr.rel (%p889) target = $region48
      $region47: #{effnet_forward.8} parent=43 // pred_region
        %p892 = scmp.lt.s32.totalorder %s17, 1
        %s893 = scalar_select %p892, %s17, 1
        %s894 = smul.addr %s893, 8
        %s895 = smul.addr %s894, 4
        %s896 = scalar_lea.vmem %s3, %s895
      $region48: #{effnet_forward.8} parent=43 // pred_fallthru
        _
      // Predicated region
      $region49: #{effnet_forward.8} parent=43 // pred_check
        %p897 = pneg %p134
      $region50: #{effnet_forward.8} parent=43 // pred_check_branch
        %899 = sbr.rel (%p897) target = $region52
      $region51: #{effnet_forward.8} parent=43 // pred_region
        %p900 = scmp.lt.s32.totalorder %s17, 1
        %s901 = scalar_select %p900, %s17, 1
        %s902 = scalar_lea.vmem %s4, %s901
      $region52: #{effnet_forward.8} parent=43 // pred_fallthru
        _
    $region44: #{effnet_forward.8} parent=5 // pred_fallthru
      _
  $region6: #{effnet_forward.8} parent=0 // loop_footer
    %s15 = sadd.s32 1, %s11
  $region7: #{effnet_forward.8} parent=0 // loop_footer_branch
    %10 = sbr.rel target = $region3
  $region8: #{effnet_forward.8} parent=0 // loop_exit
    _

// kernel: effnet_forward.9
$region0: #{effnet_forward.9}
  #allocation0 [shape = 'u32[]', space=smem, size = 0x4, offset = 0x4, fixed_abs, tag = 'smem constant byte address 0x4 - core index']
  #allocation1 [shape = 'u32[144,128]{1,0:T(1,128)}', space=vmem, size = 0x12000, scoped, tag = 'internal scratch']
  %s0 = inlined_call_operand.vmem [shape: f32[2,128], index: 0, kind: input, shape index: {}]
  %s1 = inlined_call_operand.vmem [shape: f32[128,8], index: 1, kind: input, shape index: {}]
  %s2 = inlined_call_operand.vmem [shape: f32[1,8], index: 2, kind: input, shape index: {}]
  %s3 = inlined_call_operand.vmem [shape: f32[8,128], index: 3, kind: input, shape index: {}]
  %s4 = inlined_call_operand.vmem [shape: f32[1,128], index: 4, kind: input, shape index: {}]
  %s5 = inlined_call_operand.vmem [shape: f32[2,128], index: 5, kind: output, shape index: {}]
  %s6 = sld [smem:[#allocation0]]
  $region30: #{effnet_forward.9} parent=0
    _
  %s8 = ssub.s32 1, %s6
  %s9 = scalar_select 0, %s8, %s6
  // Predicated region
  $region2: #{effnet_forward.9} parent=0 // pred_check
    _
  $region3: #{effnet_forward.9} parent=0 // pred_check_branch
    %11 = sbr.rel (0) target = $region5
  $region4: #{effnet_forward.9} parent=0 // pred_region
    _
  $region5: #{effnet_forward.9} parent=0 // pred_fallthru
    _
  // Predicated region
  $region6: #{effnet_forward.9} parent=0 // pred_check
    _
  $region7: #{effnet_forward.9} parent=0 // pred_check_branch
    %13 = sbr.rel (0) target = $region9
  $region8: #{effnet_forward.9} parent=0 // pred_region
    _
  $region9: #{effnet_forward.9} parent=0 // pred_fallthru
    _
  // Predicated region
  $region10: #{effnet_forward.9} parent=0 // pred_check
    _
  $region11: #{effnet_forward.9} parent=0 // pred_check_branch
    %15 = sbr.rel (0) target = $region13
  $region12: #{effnet_forward.9} parent=0 // pred_region
    _
  $region13: #{effnet_forward.9} parent=0 // pred_fallthru
    _
  // Predicated region
  $region14: #{effnet_forward.9} parent=0 // pred_check
    _
  $region15: #{effnet_forward.9} parent=0 // pred_check_branch
    %17 = sbr.rel (0) target = $region17
  $region16: #{effnet_forward.9} parent=0 // pred_region
    _
  $region17: #{effnet_forward.9} parent=0 // pred_fallthru
    _
  // Predicated region
  $region18: #{effnet_forward.9} parent=0 // pred_check
    _
  $region19: #{effnet_forward.9} parent=0 // pred_check_branch
    %19 = sbr.rel (0) target = $region21
  $region20: #{effnet_forward.9} parent=0 // pred_region
    _
  $region21: #{effnet_forward.9} parent=0 // pred_fallthru
    _
  %v20 = vld [vmem:[%s0] sm:$0x3]
  %v21 = vld [vmem:[%s1] sm:$0xff]
  %v22 = vld [vmem:[%s1 + $0x8] sm:$0xff]
  %v23 = vld [vmem:[%s1 + $0x10] sm:$0xff]
  %v24 = vld [vmem:[%s1 + $0x18] sm:$0xff]
  %v25 = vld [vmem:[%s1 + $0x20] sm:$0xff]
  %v26 = vld [vmem:[%s1 + $0x28] sm:$0xff]
  %v27 = vld [vmem:[%s1 + $0x30] sm:$0xff]
  %v28 = vld [vmem:[%s1 + $0x38] sm:$0xff]
  %v29 = vld [vmem:[%s1 + $0x40] sm:$0xff]
  %v30 = vld [vmem:[%s1 + $0x48] sm:$0xff]
  %v31 = vld [vmem:[%s1 + $0x50] sm:$0xff]
  %v32 = vld [vmem:[%s1 + $0x58] sm:$0xff]
  %v33 = vld [vmem:[%s1 + $0x60] sm:$0xff]
  %v34 = vld [vmem:[%s1 + $0x68] sm:$0xff]
  %v35 = vld [vmem:[%s1 + $0x70] sm:$0xff]
  %v36 = vld [vmem:[%s1 + $0x78] sm:$0xff]
  %v37 = vld [vmem:[%s2] sm:$0x1]
  %v39 = vlaneseq
  %v40 = vshrl.u32 %v39, 7
  %v41 = vsub.s32 0, %v40
  %v42 = vrot.slane %v37, %v41
  %44 = vmatprep.subr.mxu0 0.0
  %45 = vmatpush1.msra.mxu0 %v21
  %46 = vmatprep.subr.mxu0 0.0
  %47 = vmatpush1.msra.mxu0 %v22
  %48 = vmatprep.subr.mxu0 0.0
  %49 = vmatpush1.msra.mxu0 %v23
  %50 = vmatprep.subr.mxu0 0.0
  %51 = vmatpush1.msra.mxu0 %v24
  %52 = vmatprep.subr.mxu0 0.0
  %53 = vmatpush1.msra.mxu0 %v25
  %54 = vmatprep.subr.mxu0 0.0
  %55 = vmatpush1.msra.mxu0 %v26
  %56 = vmatprep.subr.mxu0 0.0
  %57 = vmatpush1.msra.mxu0 %v27
  %58 = vmatprep.subr.mxu0 0.0
  %59 = vmatpush1.msra.mxu0 %v28
  %60 = vmatprep.subr.mxu0 0.0
  %61 = vmatpush1.msra.mxu0 %v29
  %62 = vmatprep.subr.mxu0 0.0
  %63 = vmatpush1.msra.mxu0 %v30
  %64 = vmatprep.subr.mxu0 0.0
  %65 = vmatpush1.msra.mxu0 %v31
  %66 = vmatprep.subr.mxu0 0.0
  %67 = vmatpush1.msra.mxu0 %v32
  %68 = vmatprep.subr.mxu0 0.0
  %69 = vmatpush1.msra.mxu0 %v33
  %70 = vmatprep.subr.mxu0 0.0
  %71 = vmatpush1.msra.mxu0 %v34
  %72 = vmatprep.subr.mxu0 0.0
  %73 = vmatpush1.msra.mxu0 %v35
  %74 = vmatprep.subr.mxu0 0.0
  %75 = vmatpush1.msra.mxu0 %v36
  %76 = vmatprep.subr.mxu0 0.0
  %77 = vmatpush1.msra.mxu0 0.0
  %78 = vmatprep.subr.mxu0 0.0
  %79 = vmatpush1.msra.mxu0 0.0
  %80 = vmatprep.subr.mxu0 0.0
  %81 = vmatpush1.msra.mxu0 0.0
  %82 = vmatprep.subr.mxu0 0.0
  %83 = vmatpush1.msra.mxu0 0.0
  %84 = vmatprep.subr.mxu0 0.0
  %85 = vmatpush1.msra.mxu0 0.0
  %86 = vmatprep.subr.mxu0 0.0
  %87 = vmatpush1.msra.mxu0 0.0
  %88 = vmatprep.subr.mxu0 0.0
  %89 = vmatpush1.msra.mxu0 0.0
  %90 = vmatprep.subr.mxu0 0.0
  %91 = vmatpush1.msra.mxu0 0.0
  %92 = vmatprep.subr.mxu0 0.0
  %93 = vmatpush1.msra.mxu0 0.0
  %94 = vmatprep.subr.mxu0 0.0
  %95 = vmatpush1.msra.mxu0 0.0
  %96 = vmatprep.subr.mxu0 0.0
  %97 = vmatpush1.msra.mxu0 0.0
  %98 = vmatprep.subr.mxu0 0.0
  %99 = vmatpush1.msra.mxu0 0.0
  %100 = vmatprep.subr.mxu0 0.0
  %101 = vmatpush1.msra.mxu0 0.0
  %102 = vmatprep.subr.mxu0 0.0
  %103 = vmatpush1.msra.mxu0 0.0
  %104 = vmatprep.subr.mxu0 0.0
  %105 = vmatpush1.msra.mxu0 0.0
  %106 = vmatprep.subr.mxu0 0.0
  %107 = vmatpush1.msra.mxu0 0.0
  %108 = vmatprep.mubr.f32.mxu0 0.0
  %109 = vmatmul.mubr.f32.gmra.mrb[0].mxu0 %v20
  %v110 = vpop.f32.mrb[0].mxu0
  %v111 = vadd.f32 %v42, %v110
  %v112 = vpop.f32.mrb[0].mxu0
  %113 = vdwg.mxu0
  %v114 = vxor.u32 %v111, 2147483648
  %v115 = vmul.f32 %v114, 1.442695
  %v116 = vpow.pop %v115
  %v117 = vadd.f32 %v116, 1.0
  %v118 = vrcp.pop %v117
  %v119 = vmul.f32 1.0, %v118
  %v120 = vmul.f32 %v111, %v119
  %v121 = vld [vmem:[%s3] sm:$0xff]
  %v122 = vld [vmem:[%s4] sm:$0x1]
  %v124 = vlaneseq
  %v125 = vshrl.u32 %v124, 7
  %v126 = vsub.s32 0, %v125
  %v127 = vrot.slane %v122, %v126
  %vm129 = vcmask 64512
  %v131 = vsel %vm129, %v120, 0
  %133 = vmatprep.subr.mxu0 0.0
  %134 = vmatpush1.msra.mxu0 %v121
  %135 = vmatprep.subr.mxu0 0.0
  %136 = vmatpush1.msra.mxu0 0.0
  %137 = vmatprep.subr.mxu0 0.0
  %138 = vmatpush1.msra.mxu0 0.0
  %139 = vmatprep.subr.mxu0 0.0
  %140 = vmatpush1.msra.mxu0 0.0
  %141 = vmatprep.subr.mxu0 0.0
  %142 = vmatpush1.msra.mxu0 0.0
  %143 = vmatprep.subr.mxu0 0.0
  %144 = vmatpush1.msra.mxu0 0.0
  %145 = vmatprep.subr.mxu0 0.0
  %146 = vmatpush1.msra.mxu0 0.0
  %147 = vmatprep.subr.mxu0 0.0
  %148 = vmatpush1.msra.mxu0 0.0
  %149 = vmatprep.subr.mxu0 0.0
  %150 = vmatpush1.msra.mxu0 0.0
  %151 = vmatprep.subr.mxu0 0.0
  %152 = vmatpush1.msra.mxu0 0.0
  %153 = vmatprep.subr.mxu0 0.0
  %154 = vmatpush1.msra.mxu0 0.0
  %155 = vmatprep.subr.mxu0 0.0
  %156 = vmatpush1.msra.mxu0 0.0
  %157 = vmatprep.subr.mxu0 0.0
  %158 = vmatpush1.msra.mxu0 0.0
  %159 = vmatprep.subr.mxu0 0.0
  %160 = vmatpush1.msra.mxu0 0.0
  %161 = vmatprep.subr.mxu0 0.0
  %162 = vmatpush1.msra.mxu0 0.0
  %163 = vmatprep.subr.mxu0 0.0
  %164 = vmatpush1.msra.mxu0 0.0
  %165 = vmatprep.subr.mxu0 0.0
  %166 = vmatpush1.msra.mxu0 0.0
  %167 = vmatprep.subr.mxu0 0.0
  %168 = vmatpush1.msra.mxu0 0.0
  %169 = vmatprep.subr.mxu0 0.0
  %170 = vmatpush1.msra.mxu0 0.0
  %171 = vmatprep.subr.mxu0 0.0
  %172 = vmatpush1.msra.mxu0 0.0
  %173 = vmatprep.subr.mxu0 0.0
  %174 = vmatpush1.msra.mxu0 0.0
  %175 = vmatprep.subr.mxu0 0.0
  %176 = vmatpush1.msra.mxu0 0.0
  %177 = vmatprep.subr.mxu0 0.0
  %178 = vmatpush1.msra.mxu0 0.0
  %179 = vmatprep.subr.mxu0 0.0
  %180 = vmatpush1.msra.mxu0 0.0
  %181 = vmatprep.subr.mxu0 0.0
  %182 = vmatpush1.msra.mxu0 0.0
  %183 = vmatprep.subr.mxu0 0.0
  %184 = vmatpush1.msra.mxu0 0.0
  %185 = vmatprep.subr.mxu0 0.0
  %186 = vmatpush1.msra.mxu0 0.0
  %187 = vmatprep.subr.mxu0 0.0
  %188 = vmatpush1.msra.mxu0 0.0
  %189 = vmatprep.subr.mxu0 0.0
  %190 = vmatpush1.msra.mxu0 0.0
  %191 = vmatprep.subr.mxu0 0.0
  %192 = vmatpush1.msra.mxu0 0.0
  %193 = vmatprep.subr.mxu0 0.0
  %194 = vmatpush1.msra.mxu0 0.0
  %195 = vmatprep.subr.mxu0 0.0
  %196 = vmatpush1.msra.mxu0 0.0
  %197 = vmatprep.mubr.f32.mxu0 0.0
  %198 = vmatmul.mubr.f32.gmra.mrb[0].mxu0 %v131
  %v199 = vpop.f32.mrb[0].mxu0
  %v200 = vadd.f32 %v127, %v199
  %v201 = vpop.f32.mrb[0].mxu0
  %202 = vdwg.mxu0
  %v203 = vxor.u32 %v200, 2147483648
  %v204 = vmul.f32 %v203, 1.442695
  %v205 = vpow.pop %v204
  %v206 = vadd.f32 %v205, 1.0
  %v207 = vrcp.pop %v206
  %v208 = vmul.f32 1.0, %v207
  %209 = vst [vmem:[%s5] sm:$0x3] %v208
  // Predicated region
  $region22: #{effnet_forward.9} parent=0 // pred_check
    _
  $region23: #{effnet_forward.9} parent=0 // pred_check_branch
    %211 = sbr.rel (0) target = $region25
  $region24: #{effnet_forward.9} parent=0 // pred_region
    _
  $region25: #{effnet_forward.9} parent=0 // pred_fallthru
    _
  // Predicated region
  $region26: #{effnet_forward.9} parent=0 // pred_check
    _
  $region27: #{effnet_forward.9} parent=0 // pred_check_branch
    %213 = sbr.rel (0) target = $region29
  $region28: #{effnet_forward.9} parent=0 // pred_region
    _
  $region29: #{effnet_forward.9} parent=0 // pred_fallthru
    _

// kernel: effnet_forward.10
$region0: #{effnet_forward.10}
  #allocation0 [shape = 'u32[]', space=smem, size = 0x4, offset = 0x4, fixed_abs, tag = 'smem constant byte address 0x4 - core index']
  #allocation1 [shape = 'u32[144,128]{1,0:T(1,128)}', space=vmem, size = 0x12000, scoped, tag = 'internal scratch']
  %s0 = inlined_call_operand.vmem [shape: bf16[2,64,128], index: 0, kind: input, shape index: {}]
  %s1 = inlined_call_operand.vmem [shape: f32[2,1,128], index: 1, kind: input, shape index: {}]
  %s2 = inlined_call_operand.vmem [shape: bf16[128,32], index: 2, kind: input, shape index: {}]
  %s3 = inlined_call_operand.vmem [shape: f32[1,32], index: 3, kind: input, shape index: {}]
  %s4 = inlined_call_operand.vmem [shape: bf16[2,64,32], index: 4, kind: input, shape index: {}]
  %s5 = inlined_call_operand.vmem [shape: bf16[2,64,32], index: 5, kind: output, shape index: {}]
  %s6 = sld [smem:[#allocation0]]
  $region53: #{effnet_forward.10} parent=0
    _
  %s8 = ssub.s32 1, %s6
  %s9 = scalar_select 0, %s8, %s6
  loop: start=0, step=1, limit=4
  $region2: #{effnet_forward.10} parent=0 // loop_pre_header
    _
  $region3: #{effnet_forward.10} parent=0 // loop_header
    %s11 = sphi 0, %s15
    %p12 = scmp.ge.s32.totalorder %s11, 4
    %s18 = sphi 0, %s30
    %s19 = sphi 0, %s26
    %s20 = sphi 0, %s18
    %s21 = sphi 0, %s19
    %s22 = sphi 0, %s20
    %s23 = sphi 0, %s21
    %s35 = sphi 0, %s37
    %s38 = sphi 0, %s35
    %s39 = sphi 0, %s38
    %s55 = sphi 0, %s39
    %s61 = sphi 0, %s63
    %s64 = sphi 0, %s61
    %s65 = sphi 0, %s64
    %s81 = sphi 0, %s65
    %s85 = sphi 0, %s85
    %s87 = sphi 0, %s85
    %s88 = sphi 0, %s87
    %s102 = sphi 0, %s88
    %s106 = sphi 0, %s106
    %s108 = sphi 0, %s106
    %s109 = sphi 0, %s108
    %s123 = sphi 0, %s109
    %s131 = sphi 0, %s133
    %s134 = sphi 0, %s131
    %s135 = sphi 0, %s134
    %s151 = sphi 0, %s135
    %s159 = sphi 0, %s161
    %s162 = sphi 0, %s159
    %s163 = sphi 0, %s162
    %s179 = sphi 0, %s163
  $region4: #{effnet_forward.10} parent=0 // loop_header_branch
    %14 = sbr.rel (%p12) target = $region8
  $region5: #{effnet_forward.10} parent=0 // loop_body
    %s16 = ssub.s32 %s11, 1
    %s17 = ssub.s32 %s11, 2
    %s24 = sadd.s32 1, %s19
    %p25 = scmp.ge.s32.totalorder %s24, 1
    %s26 = scalar_select %p25, 0, %s24
    %s27 = sadd.s32 1, %s18
    %s28 = scalar_select %p25, %s27, %s18
    %p29 = scmp.ge.s32.totalorder %s28, 2
    %s30 = scalar_select %p29, 0, %s28
    %s31 = ssub.s32 %s18, %s30
    %s32 = ssub.s32 %s19, %s26
    %s33 = sor.u32 %s31, %s32
    %p34 = scmp.eq.s32.totalorder %s33, 0
    %s36 = sadd.s32 %s35, 1
    %s37 = scalar_select %p34, %s35, %s36
    %p40 = pneg %p34
    %p41 = scmp.eq.s32.totalorder %s11, 1
    %p42 = por %p40, %p41
    %p43 = scmp.ne.s32.totalorder %s35, %s38
    %p44 = scmp.eq.s32.totalorder %s11, 0
    %p45 = por %p43, %p44
    %p46 = scmp.ne.s32.totalorder %s35, %s38
    %p47 = scmp.eq.s32.totalorder %s16, 1
    %p48 = por %p46, %p47
    %p49 = scmp.ne.s32.totalorder %s38, %s39
    %p50 = scmp.eq.s32.totalorder %s16, 0
    %p51 = por %p49, %p50
    %p52 = scmp.ne.s32.totalorder %s38, %s39
    %p53 = scmp.eq.s32.totalorder %s17, 1
    %p54 = por %p52, %p53
    %p56 = scmp.ne.s32.totalorder %s39, %s55
    %p57 = scmp.eq.s32.totalorder %s17, 0
    %p58 = por %p56, %p57
    %s59 = ssub.s32 %s18, %s30
    %p60 = scmp.eq.s32.totalorder %s59, 0
    %s62 = sadd.s32 %s61, 1
    %s63 = scalar_select %p60, %s61, %s62
    %p66 = pneg %p60
    %p67 = scmp.eq.s32.totalorder %s11, 1
    %p68 = por %p66, %p67
    %p69 = scmp.ne.s32.totalorder %s61, %s64
    %p70 = scmp.eq.s32.totalorder %s11, 0
    %p71 = por %p69, %p70
    %p72 = scmp.ne.s32.totalorder %s61, %s64
    %p73 = scmp.eq.s32.totalorder %s16, 1
    %p74 = por %p72, %p73
    %p75 = scmp.ne.s32.totalorder %s64, %s65
    %p76 = scmp.eq.s32.totalorder %s16, 0
    %p77 = por %p75, %p76
    %p78 = scmp.ne.s32.totalorder %s64, %s65
    %p79 = scmp.eq.s32.totalorder %s17, 1
    %p80 = por %p78, %p79
    %p82 = scmp.ne.s32.totalorder %s65, %s81
    %p83 = scmp.eq.s32.totalorder %s17, 0
    %p84 = por %p82, %p83
    %s86 = sadd.s32 %s85, 1
    %p89 = scmp.eq.s32.totalorder %s11, 1
    %p90 = scmp.ne.s32.totalorder %s85, %s87
    %p91 = scmp.eq.s32.totalorder %s11, 0
    %p92 = por %p90, %p91
    %p93 = scmp.ne.s32.totalorder %s85, %s87
    %p94 = scmp.eq.s32.totalorder %s16, 1
    %p95 = por %p93, %p94
    %p96 = scmp.ne.s32.totalorder %s87, %s88
    %p97 = scmp.eq.s32.totalorder %s16, 0
    %p98 = por %p96, %p97
    %p99 = scmp.ne.s32.totalorder %s87, %s88
    %p100 = scmp.eq.s32.totalorder %s17, 1
    %p101 = por %p99, %p100
    %p103 = scmp.ne.s32.totalorder %s88, %s102
    %p104 = scmp.eq.s32.totalorder %s17, 0
    %p105 = por %p103, %p104
    %s107 = sadd.s32 %s106, 1
    %p110 = scmp.eq.s32.totalorder %s11, 1
    %p111 = scmp.ne.s32.totalorder %s106, %s108
    %p112 = scmp.eq.s32.totalorder %s11, 0
    %p113 = por %p111, %p112
    %p114 = scmp.ne.s32.totalorder %s106, %s108
    %p115 = scmp.eq.s32.totalorder %s16, 1
    %p116 = por %p114, %p115
    %p117 = scmp.ne.s32.totalorder %s108, %s109
    %p118 = scmp.eq.s32.totalorder %s16, 0
    %p119 = por %p117, %p118
    %p120 = scmp.ne.s32.totalorder %s108, %s109
    %p121 = scmp.eq.s32.totalorder %s17, 1
    %p122 = por %p120, %p121
    %p124 = scmp.ne.s32.totalorder %s109, %s123
    %p125 = scmp.eq.s32.totalorder %s17, 0
    %p126 = por %p124, %p125
    %s127 = ssub.s32 %s18, %s30
    %s128 = ssub.s32 %s19, %s26
    %s129 = sor.u32 %s127, %s128
    %p130 = scmp.eq.s32.totalorder %s129, 0
    %s132 = sadd.s32 %s131, 1
    %s133 = scalar_select %p130, %s131, %s132
    %p136 = pneg %p130
    %p137 = scmp.eq.s32.totalorder %s11, 1
    %p138 = por %p136, %p137
    %p139 = scmp.ne.s32.totalorder %s131, %s134
    %p140 = scmp.eq.s32.totalorder %s11, 0
    %p141 = por %p139, %p140
    %p142 = scmp.ne.s32.totalorder %s131, %s134
    %p143 = scmp.eq.s32.totalorder %s16, 1
    %p144 = por %p142, %p143
    %p145 = scmp.ne.s32.totalorder %s134, %s135
    %p146 = scmp.eq.s32.totalorder %s16, 0
    %p147 = por %p145, %p146
    %p148 = scmp.ne.s32.totalorder %s134, %s135
    %p149 = scmp.eq.s32.totalorder %s17, 1
    %p150 = por %p148, %p149
    %p152 = scmp.ne.s32.totalorder %s135, %s151
    %p153 = scmp.eq.s32.totalorder %s17, 0
    %p154 = por %p152, %p153
    %s155 = ssub.s32 %s18, %s30
    %s156 = ssub.s32 %s19, %s26
    %s157 = sor.u32 %s155, %s156
    %p158 = scmp.eq.s32.totalorder %s157, 0
    %s160 = sadd.s32 %s159, 1
    %s161 = scalar_select %p158, %s159, %s160
    %p164 = pneg %p158
    %p165 = scmp.eq.s32.totalorder %s11, 1
    %p166 = por %p164, %p165
    %p167 = scmp.ne.s32.totalorder %s159, %s162
    %p168 = scmp.eq.s32.totalorder %s11, 0
    %p169 = por %p167, %p168
    %p170 = scmp.ne.s32.totalorder %s159, %s162
    %p171 = scmp.eq.s32.totalorder %s16, 1
    %p172 = por %p170, %p171
    %p173 = scmp.ne.s32.totalorder %s162, %s163
    %p174 = scmp.eq.s32.totalorder %s16, 0
    %p175 = por %p173, %p174
    %p176 = scmp.ne.s32.totalorder %s162, %s163
    %p177 = scmp.eq.s32.totalorder %s17, 1
    %p178 = por %p176, %p177
    %p180 = scmp.ne.s32.totalorder %s163, %s179
    %p181 = scmp.eq.s32.totalorder %s17, 0
    %p182 = por %p180, %p181
    %p183 = scmp.le.s32.totalorder 1, %s11
    %p184 = scmp.lt.s32.totalorder %s11, 3
    %p185 = pnand %p183, %p184
    %p186 = pneg %p185
    // Predicated region
    $region9: #{effnet_forward.10} parent=5 // pred_check
      _
    $region10: #{effnet_forward.10} parent=5 // pred_check_branch
      %188 = sbr.rel (%p185) target = $region12
    $region11: #{effnet_forward.10} parent=5 // pred_region
      %s189 = ssub.s32 %s11, 1
      // Predicated region
      $region13: #{effnet_forward.10} parent=11 // pred_check
        %p190 = pneg %p98
      $region14: #{effnet_forward.10} parent=11 // pred_check_branch
        %192 = sbr.rel (%p190) target = $region16
      $region15: #{effnet_forward.10} parent=11 // pred_region
        _
      $region16: #{effnet_forward.10} parent=11 // pred_fallthru
        _
      // Predicated region
      $region17: #{effnet_forward.10} parent=11 // pred_check
        %p193 = pneg %p119
      $region18: #{effnet_forward.10} parent=11 // pred_check_branch
        %195 = sbr.rel (%p193) target = $region20
      $region19: #{effnet_forward.10} parent=11 // pred_region
        _
      $region20: #{effnet_forward.10} parent=11 // pred_fallthru
        _
    $region12: #{effnet_forward.10} parent=5 // pred_fallthru
      _
    %p196 = scmp.lt.s32.totalorder %s11, 2
    // Predicated region
    $region21: #{effnet_forward.10} parent=5 // pred_check
      %p197 = pneg %p196
    $region22: #{effnet_forward.10} parent=5 // pred_check_branch
      %199 = sbr.rel (%p197) target = $region24
    $region23: #{effnet_forward.10} parent=5 // pred_region
      // Predicated region
      $region25: #{effnet_forward.10} parent=23 // pred_check
        %p200 = pneg %p45
      $region26: #{effnet_forward.10} parent=23 // pred_check_branch
        %202 = sbr.rel (%p200) target = $region28
      $region27: #{effnet_forward.10} parent=23 // pred_region
        %s203 = smul.u32 8, %s19
        %p204 = scmp.lt.s32.totalorder %s18, 1
        %s205 = scalar_select %p204, %s18, 1
        %p206 = scmp.lt.s32.totalorder %s203, 7
        %s207 = scalar_select %p206, %s203, 7
        %s208 = smul.addr %s205, 8
        %s209 = sadd.s32 %s207, %s208
        %s210 = smul.addr %s209, 4
        %s211 = scalar_lea.vmem %s0, %s210
        %s212 = smul.u32 8, %s19
      $region28: #{effnet_forward.10} parent=23 // pred_fallthru
        _
      // Predicated region
      $region29: #{effnet_forward.10} parent=23 // pred_check
        %p213 = pneg %p71
      $region30: #{effnet_forward.10} parent=23 // pred_check_branch
        %215 = sbr.rel (%p213) target = $region32
      $region31: #{effnet_forward.10} parent=23 // pred_region
        %p216 = scmp.lt.s32.totalorder %s18, 1
        %s217 = scalar_select %p216, %s18, 1
        %s218 = scalar_lea.vmem %s1, %s217
      $region32: #{effnet_forward.10} parent=23 // pred_fallthru
        _
      // Predicated region
      $region33: #{effnet_forward.10} parent=23 // pred_check
        %p219 = pneg %p141
      $region34: #{effnet_forward.10} parent=23 // pred_check_branch
        %221 = sbr.rel (%p219) target = $region36
      $region35: #{effnet_forward.10} parent=23 // pred_region
        %s222 = smul.u32 8, %s19
        %p223 = scmp.lt.s32.totalorder %s18, 1
        %s224 = scalar_select %p223, %s18, 1
        %p225 = scmp.lt.s32.totalorder %s222, 7
        %s226 = scalar_select %p225, %s222, 7
        %s227 = smul.addr %s224, 8
        %s228 = sadd.s32 %s226, %s227
        %s229 = smul.addr %s228, 4
        %s230 = scalar_lea.vmem %s4, %s229
        %s231 = smul.u32 8, %s19
      $region36: #{effnet_forward.10} parent=23 // pred_fallthru
        _
    $region24: #{effnet_forward.10} parent=5 // pred_fallthru
      _
    %p232 = scmp.le.s32.totalorder 1, %s11
    %p233 = scmp.lt.s32.totalorder %s11, 3
    %p234 = pnand %p232, %p233
    %p235 = pneg %p234
    // Predicated region
    $region37: #{effnet_forward.10} parent=5 // pred_check
      _
    $region38: #{effnet_forward.10} parent=5 // pred_check_branch
      %237 = sbr.rel (%p234) target = $region40
    $region39: #{effnet_forward.10} parent=5 // pred_region
      %s238 = ssub.s32 %s11, 1
      %s239 = smul.u32 8, %s21
      %p240 = scmp.lt.s32.totalorder %s20, 1
      %s241 = scalar_select %p240, %s20, 1
      %p242 = scmp.lt.s32.totalorder %s239, 7
      %s243 = scalar_select %p242, %s239, 7
      %s244 = smul.addr %s241, 8
      %s245 = sadd.s32 %s243, %s244
      %s246 = smul.addr %s245, 4
      %s247 = scalar_lea.vmem %s0, %s246
      %p248 = pneg %p51
      %p249 = pneg %p48
      %p250 = scmp.lt.s32.totalorder %s20, 1
      %s251 = scalar_select %p250, %s20, 1
      %s252 = scalar_lea.vmem %s1, %s251
      %p253 = pneg %p77
      %p254 = pneg %p74
      %p255 = pneg %p98
      %p256 = pneg %p95
      %p257 = pneg %p119
      %p258 = pneg %p116
      %s259 = smul.u32 8, %s21
      %p260 = scmp.lt.s32.totalorder %s20, 1
      %s261 = scalar_select %p260, %s20, 1
      %p262 = scmp.lt.s32.totalorder %s259, 7
      %s263 = scalar_select %p262, %s259, 7
      %s264 = smul.addr %s261, 8
      %s265 = sadd.s32 %s263, %s264
      %s266 = smul.addr %s265, 4
      %s267 = scalar_lea.vmem %s4, %s266
      %p268 = pneg %p147
      %p269 = pneg %p144
      %p270 = pneg %p175
      %p271 = pneg %p172
      %s272 = smul.u32 8, %s21
      %p273 = scmp.lt.s32.totalorder %s20, 1
      %s274 = scalar_select %p273, %s20, 1
      %p275 = scmp.lt.s32.totalorder %s272, 7
      %s276 = scalar_select %p275, %s272, 7
      %s277 = smul.addr %s274, 8
      %s278 = sadd.s32 %s276, %s277
      %s279 = smul.addr %s278, 4
      %s280 = scalar_lea.vmem %s5, %s279
      %s281 = smul.u32 8, %s21
      %p282 = scmp.lt.s32.totalorder %s20, 1
      %s283 = scalar_select %p282, %s20, 1
      %p284 = scmp.lt.s32.totalorder %s281, 7
      %s285 = scalar_select %p284, %s281, 7
      %s286 = smul.addr %s283, 8
      %s287 = sadd.s32 %s285, %s286
      %s288 = smul.addr %s287, 4
      %s289 = scalar_lea.vmem %s0, %s288
      %s290 = smul.u32 8, %s21
      %p291 = scmp.lt.s32.totalorder %s20, 1
      %s292 = scalar_select %p291, %s20, 1
      %s293 = scalar_lea.vmem %s1, %s292
      %s294 = smul.u32 8, %s21
      %p295 = scmp.lt.s32.totalorder %s20, 1
      %s296 = scalar_select %p295, %s20, 1
      %p297 = scmp.lt.s32.totalorder %s294, 7
      %s298 = scalar_select %p297, %s294, 7
      %s299 = smul.addr %s296, 8
      %s300 = sadd.s32 %s298, %s299
      %s301 = smul.addr %s300, 4
      %s302 = scalar_lea.vmem %s4, %s301
      %s303 = smul.u32 8, %s21
      %s304 = smul.u32 8, %s21
      %p305 = scmp.lt.s32.totalorder %s20, 1
      %s306 = scalar_select %p305, %s20, 1
      %p307 = scmp.lt.s32.totalorder %s304, 7
      %s308 = scalar_select %p307, %s304, 7
      %s309 = smul.addr %s306, 8
      %s310 = sadd.s32 %s308, %s309
      %s311 = smul.addr %s310, 4
      %s312 = scalar_lea.vmem %s5, %s311
      %s313 = smul.u32 8, %s21
      %v315 = vld [vmem:[%s289] sm:$0xf]
      %v316 = vld [vmem:[%s289 + $0x4] sm:$0xf]
      %v317 = vld [vmem:[%s289 + $0x8] sm:$0xf]
      %v318 = vld [vmem:[%s289 + $0xc] sm:$0xf]
      %v319 = vld [vmem:[%s289 + $0x10] sm:$0xf]
      %v320 = vld [vmem:[%s289 + $0x14] sm:$0xf]
      %v321 = vld [vmem:[%s289 + $0x18] sm:$0xf]
      %v322 = vld [vmem:[%s289 + $0x1c] sm:$0xf]
      %v323 = vunpack.c.l.bf16 %v315
      %v324 = vunpack.c.l.bf16 %v316
      %v325 = vunpack.c.l.bf16 %v317
      %v326 = vunpack.c.l.bf16 %v318
      %v327 = vunpack.c.l.bf16 %v319
      %v328 = vunpack.c.l.bf16 %v320
      %v329 = vunpack.c.l.bf16 %v321
      %v330 = vunpack.c.l.bf16 %v322
      %v331 = vld [vmem:[%s293] sm:$0x1]
      %v333 = vlaneseq
      %v334 = vshrl.u32 %v333, 7
      %v335 = vsub.s32 0, %v334
      %v336 = vrot.slane %v331, %v335
      %v338 = vmul.f32 %v323, %v336
      %v339 = vmul.f32 %v324, %v336
      %v340 = vmul.f32 %v325, %v336
      %v341 = vmul.f32 %v326, %v336
      %v342 = vmul.f32 %v327, %v336
      %v343 = vmul.f32 %v328, %v336
      %v344 = vmul.f32 %v329, %v336
      %v345 = vmul.f32 %v330, %v336
      %v346 = vpack.c.bf16 %v339, %v338
      %v347 = vpack.c.bf16 %v341, %v340
      %v348 = vpack.c.bf16 %v343, %v342
      %v349 = vpack.c.bf16 %v345, %v344
      %v350 = vld [vmem:[%s2] sm:$0xf]
      %v351 = vld [vmem:[%s2 + $0x4] sm:$0xf]
      %v352 = vld [vmem:[%s2 + $0x8] sm:$0xf]
      %v353 = vld [vmem:[%s2 + $0xc] sm:$0xf]
      %v354 = vld [vmem:[%s2 + $0x10] sm:$0xf]
      %v355 = vld [vmem:[%s2 + $0x14] sm:$0xf]
      %v356 = vld [vmem:[%s2 + $0x18] sm:$0xf]
      %v357 = vld [vmem:[%s2 + $0x1c] sm:$0xf]
      %v358 = vld [vmem:[%s2 + $0x20] sm:$0xf]
      %v359 = vld [vmem:[%s2 + $0x24] sm:$0xf]
      %v360 = vld [vmem:[%s2 + $0x28] sm:$0xf]
      %v361 = vld [vmem:[%s2 + $0x2c] sm:$0xf]
      %v362 = vld [vmem:[%s2 + $0x30] sm:$0xf]
      %v363 = vld [vmem:[%s2 + $0x34] sm:$0xf]
      %v364 = vld [vmem:[%s2 + $0x38] sm:$0xf]
      %v365 = vld [vmem:[%s2 + $0x3c] sm:$0xf]
      %v366 = vld [vmem:[%s3] sm:$0x1]
      %v368 = vlaneseq
      %v369 = vshrl.u32 %v368, 7
      %v370 = vsub.s32 0, %v369
      %v371 = vrot.slane %v366, %v370
      %v389 = vunpack.c.l.b16 %v350
      %v390 = vunpack.c.l.b16 %v351
      %v391 = vunpack.c.l.b16 %v352
      %v392 = vunpack.c.l.b16 %v353
      %v393 = vunpack.c.l.b16 %v354
      %v394 = vunpack.c.l.b16 %v355
      %v395 = vunpack.c.l.b16 %v356
      %v396 = vunpack.c.l.b16 %v357
      %v397 = vunpack.c.l.b16 %v358
      %v398 = vunpack.c.l.b16 %v359
      %v399 = vunpack.c.l.b16 %v360
      %v400 = vunpack.c.l.b16 %v361
      %v401 = vunpack.c.l.b16 %v362
      %v402 = vunpack.c.l.b16 %v363
      %v403 = vunpack.c.l.b16 %v364
      %v404 = vunpack.c.l.b16 %v365
      %v405 = vpack.c.b16 %v390, %v389
      %v406 = vpack.c.b16 %v392, %v391
      %v407 = vpack.c.b16 %v394, %v393
      %v408 = vpack.c.b16 %v396, %v395
      %v409 = vpack.c.b16 %v398, %v397
      %v410 = vpack.c.b16 %v400, %v399
      %v411 = vpack.c.b16 %v402, %v401
      %v412 = vpack.c.b16 %v404, %v403
      %421 = vmatprep.subr.bf16.mxu0 0
      %422 = vmatpush1.bf16.msra.mxu0 %v405
      %423 = vmatprep.subr.bf16.mxu0 0
      %424 = vmatpush1.bf16.msra.mxu0 %v406
      %425 = vmatprep.subr.bf16.mxu0 0
      %426 = vmatpush1.bf16.msra.mxu0 %v407
      %427 = vmatprep.subr.bf16.mxu0 0
      %428 = vmatpush1.bf16.msra.mxu0 %v408
      %429 = vmatprep.subr.bf16.mxu0 0
      %430 = vmatpush1.bf16.msra.mxu0 %v409
      %431 = vmatprep.subr.bf16.mxu0 0
      %432 = vmatpush1.bf16.msra.mxu0 %v410
      %433 = vmatprep.subr.bf16.mxu0 0
      %434 = vmatpush1.bf16.msra.mxu0 %v411
      %435 = vmatprep.subr.bf16.mxu0 0
      %436 = vmatpush1.bf16.msra.mxu0 %v412
      %437 = vmatprep.subr.bf16.mxu0 0
      %438 = vmatpush1.bf16.msra.mxu0 0
      %439 = vmatprep.subr.bf16.mxu0 0
      %440 = vmatpush1.bf16.msra.mxu0 0
      %441 = vmatprep.subr.bf16.mxu0 0
      %442 = vmatpush1.bf16.msra.mxu0 0
      %443 = vmatprep.subr.bf16.mxu0 0
      %444 = vmatpush1.bf16.msra.mxu0 0
      %445 = vmatprep.subr.bf16.mxu0 0
      %446 = vmatpush1.bf16.msra.mxu0 0
      %447 = vmatprep.subr.bf16.mxu0 0
      %448 = vmatpush1.bf16.msra.mxu0 0
      %449 = vmatprep.subr.bf16.mxu0 0
      %450 = vmatpush1.bf16.msra.mxu0 0
      %451 = vmatprep.subr.bf16.mxu0 0
      %452 = vmatpush1.bf16.msra.mxu0 0
      %453 = vmatprep.mubr.bf16.mxu0 0
      %454 = vmatmul.mubr.bf16.gmra.mrb[0].mxu0 %v346
      %v455 = vpop.f32.mrb[0].mxu0
      %v456 = vadd.f32 %v371, %v455
      %v457 = vpop.f32.mrb[0].mxu0
      %v458 = vpop.f32.mrb[0].mxu0
      %v459 = vadd.f32 %v371, %v458
      %v460 = vpop.f32.mrb[0].mxu0
      %461 = vmatprep.mubr.bf16.mxu0 0
      %462 = vmatmul.mubr.bf16.gmra.mrb[0].mxu0 %v347
      %v463 = vpop.f32.mrb[0].mxu0
      %v464 = vadd.f32 %v371, %v463
      %v465 = vpop.f32.mrb[0].mxu0
      %v466 = vpop.f32.mrb[0].mxu0
      %v467 = vadd.f32 %v371, %v466
      %v468 = vpop.f32.mrb[0].mxu0
      %469 = vmatprep.mubr.bf16.mxu0 0
      %470 = vmatmul.mubr.bf16.gmra.mrb[0].mxu0 %v348
      %v471 = vpop.f32.mrb[0].mxu0
      %v472 = vadd.f32 %v371, %v471
      %v473 = vpop.f32.mrb[0].mxu0
      %v474 = vpop.f32.mrb[0].mxu0
      %v475 = vadd.f32 %v371, %v474
      %v476 = vpop.f32.mrb[0].mxu0
      %477 = vmatprep.mubr.bf16.mxu0 0
      %478 = vmatmul.mubr.bf16.gmra.mrb[0].mxu0 %v349
      %v479 = vpop.f32.mrb[0].mxu0
      %v480 = vadd.f32 %v371, %v479
      %v481 = vpop.f32.mrb[0].mxu0
      %v482 = vpop.f32.mrb[0].mxu0
      %v483 = vadd.f32 %v371, %v482
      %v484 = vpop.f32.mrb[0].mxu0
      %485 = vdwg.mxu0
      %v486 = vld [vmem:[%s302] sm:$0xf]
      %v487 = vld [vmem:[%s302 + $0x4] sm:$0xf]
      %v488 = vld [vmem:[%s302 + $0x8] sm:$0xf]
      %v489 = vld [vmem:[%s302 + $0xc] sm:$0xf]
      %v490 = vld [vmem:[%s302 + $0x10] sm:$0xf]
      %v491 = vld [vmem:[%s302 + $0x14] sm:$0xf]
      %v492 = vld [vmem:[%s302 + $0x18] sm:$0xf]
      %v493 = vld [vmem:[%s302 + $0x1c] sm:$0xf]
      %v494 = vunpack.c.l.bf16 %v486
      %v495 = vunpack.c.l.bf16 %v487
      %v496 = vunpack.c.l.bf16 %v488
      %v497 = vunpack.c.l.bf16 %v489
      %v498 = vunpack.c.l.bf16 %v490
      %v499 = vunpack.c.l.bf16 %v491
      %v500 = vunpack.c.l.bf16 %v492
      %v501 = vunpack.c.l.bf16 %v493
      %v502 = vadd.f32 %v456, %v494
      %v503 = vadd.f32 %v459, %v495
      %v504 = vadd.f32 %v464, %v496
      %v505 = vadd.f32 %v467, %v497
      %v506 = vadd.f32 %v472, %v498
      %v507 = vadd.f32 %v475, %v499
      %v508 = vadd.f32 %v480, %v500
      %v509 = vadd.f32 %v483, %v501
      %v510 = vpack.c.bf16 %v503, %v502
      %v511 = vpack.c.bf16 %v505, %v504
      %v512 = vpack.c.bf16 %v507, %v506
      %v513 = vpack.c.bf16 %v509, %v508
      %v518 = vunpack.c.l.b16 %v510
      %v519 = vunpack.c.h.b16 %v510
      %v520 = vunpack.c.l.b16 %v511
      %v521 = vunpack.c.h.b16 %v511
      %v522 = vunpack.c.l.b16 %v512
      %v523 = vunpack.c.h.b16 %v512
      %v524 = vunpack.c.l.b16 %v513
      %v525 = vunpack.c.h.b16 %v513
      %v526 = vpack.c.b16 %v518, %v518
      %v527 = vpack.c.b16 %v519, %v519
      %v528 = vpack.c.b16 %v520, %v520
      %v529 = vpack.c.b16 %v521, %v521
      %v530 = vpack.c.b16 %v522, %v522
      %v531 = vpack.c.b16 %v523, %v523
      %v532 = vpack.c.b16 %v524, %v524
      %v533 = vpack.c.b16 %v525, %v525
      %vm542 = vcmask 257024
      %543 = vst.msk [vmem:[%s312] sm:$0xf] %vm542, %v526
      %544 = vst.msk [vmem:[%s312 + $0x4] sm:$0xf] %vm542, %v527
      %545 = vst.msk [vmem:[%s312 + $0x8] sm:$0xf] %vm542, %v528
      %546 = vst.msk [vmem:[%s312 + $0xc] sm:$0xf] %vm542, %v529
      %547 = vst.msk [vmem:[%s312 + $0x10] sm:$0xf] %vm542, %v530
      %548 = vst.msk [vmem:[%s312 + $0x14] sm:$0xf] %vm542, %v531
      %549 = vst.msk [vmem:[%s312 + $0x18] sm:$0xf] %vm542, %v532
      %550 = vst.msk [vmem:[%s312 + $0x1c] sm:$0xf] %vm542, %v533
      %s551 = smul.u32 8, %s21
      %p552 = scmp.lt.s32.totalorder %s20, 1
      %s553 = scalar_select %p552, %s20, 1
      %p554 = scmp.lt.s32.totalorder %s551, 7
      %s555 = scalar_select %p554, %s551, 7
      %s556 = smul.addr %s553, 8
      %s557 = sadd.s32 %s555, %s556
      %s558 = smul.addr %s557, 4
      %s559 = scalar_lea.vmem %s5, %s558
      // Predicated region
      $region41: #{effnet_forward.10} parent=39 // pred_check
        %p560 = pneg %p172
      $region42: #{effnet_forward.10} parent=39 // pred_check_branch
        %562 = sbr.rel (%p560) target = $region44
      $region43: #{effnet_forward.10} parent=39 // pred_region
        %s563 = smul.u32 8, %s21
      $region44: #{effnet_forward.10} parent=39 // pred_fallthru
        _
    $region40: #{effnet_forward.10} parent=5 // pred_fallthru
      _
    %p564 = scmp.le.s32.totalorder 2, %s11
    // Predicated region
    $region45: #{effnet_forward.10} parent=5 // pred_check
      %p565 = pneg %p564
    $region46: #{effnet_forward.10} parent=5 // pred_check_branch
      %567 = sbr.rel (%p565) target = $region48
    $region47: #{effnet_forward.10} parent=5 // pred_region
      %s568 = ssub.s32 %s11, 2
      // Predicated region
      $region49: #{effnet_forward.10} parent=47 // pred_check
        %p569 = pneg %p178
      $region50: #{effnet_forward.10} parent=47 // pred_check_branch
        %571 = sbr.rel (%p569) target = $region52
      $region51: #{effnet_forward.10} parent=47 // pred_region
        %s572 = smul.u32 8, %s23
        %p573 = scmp.lt.s32.totalorder %s22, 1
        %s574 = scalar_select %p573, %s22, 1
        %p575 = scmp.lt.s32.totalorder %s572, 7
        %s576 = scalar_select %p575, %s572, 7
        %s577 = smul.addr %s574, 8
        %s578 = sadd.s32 %s576, %s577
        %s579 = smul.addr %s578, 4
        %s580 = scalar_lea.vmem %s5, %s579
      $region52: #{effnet_forward.10} parent=47 // pred_fallthru
        _
    $region48: #{effnet_forward.10} parent=5 // pred_fallthru
      _
  $region6: #{effnet_forward.10} parent=0 // loop_footer
    %s15 = sadd.s32 1, %s11
  $region7: #{effnet_forward.10} parent=0 // loop_footer_branch
    %10 = sbr.rel target = $region3
  $region8: #{effnet_forward.10} parent=0 // loop_exit
    _

// kernel: effnet_forward.11
$region0: #{effnet_forward.11}
  #allocation0 [shape = 'u32[]', space=smem, size = 0x4, offset = 0x4, fixed_abs, tag = 'smem constant byte address 0x4 - core index']
  #allocation1 [shape = 'u32[144,128]{1,0:T(1,128)}', space=vmem, size = 0x12000, scoped, tag = 'internal scratch']
  #allocation2 [shape = 'f32[1,128]{1,0:T(1,128)}', space=vmem, size = 0x200, scoped, tag = 'scratch operand']
  #allocation3 [shape = 'f32[1,1]{1,0:T(1,128)S(1)}', space=vmem, size = 0x200, scoped, tag = 'scoped memory for effnet_forward.11']
  %s0 = inlined_call_operand.vmem [shape: bf16[2,64,32], index: 0, kind: input, shape index: {}]
  %s1 = inlined_call_operand.vmem [shape: bf16[32,128], index: 1, kind: input, shape index: {}]
  %s2 = inlined_call_operand.vmem [shape: f32[1,128], index: 2, kind: input, shape index: {}]
  %s3 = inlined_call_operand.vmem [shape: f32[1,128], index: 3, kind: input, shape index: {}]
  %s4 = inlined_call_operand.<no memory space> [shape: f32[1,1], index: 4, kind: input, shape index: {}]
  %s5 = inlined_call_operand.vmem [shape: f32[2,1,1], index: 5, kind: output, shape index: {}]
  %s6 = sld [smem:[#allocation0]]
  $region61: #{effnet_forward.11} parent=0
    _
  %s8 = ssub.s32 1, %s6
  %s9 = scalar_select 0, %s8, %s6
  %v10 = vstv %s4
  %11 = vst [vmem:[#allocation3] sm:$0x1] %v10
  loop: start=0, step=1, limit=4
  $region2: #{effnet_forward.11} parent=0 // loop_pre_header
    _
  $region3: #{effnet_forward.11} parent=0 // loop_header
    %s13 = sphi 0, %s17
    %p14 = scmp.ge.s32.totalorder %s13, 4
    %s20 = sphi 0, %s32
    %s21 = sphi 0, %s28
    %s22 = sphi 0, %s20
    %s23 = sphi 0, %s21
    %s24 = sphi 0, %s22
    %s25 = sphi 0, %s23
    %s37 = sphi 0, %s39
    %s40 = sphi 0, %s37
    %s41 = sphi 0, %s40
    %s57 = sphi 0, %s41
    %s61 = sphi 0, %s61
    %s63 = sphi 0, %s61
    %s64 = sphi 0, %s63
    %s78 = sphi 0, %s64
    %s82 = sphi 0, %s82
    %s84 = sphi 0, %s82
    %s85 = sphi 0, %s84
    %s99 = sphi 0, %s85
    %s103 = sphi 0, %s103
    %s105 = sphi 0, %s103
    %s106 = sphi 0, %s105
    %s120 = sphi 0, %s106
    %s124 = sphi 0, %s124
    %s126 = sphi 0, %s124
    %s127 = sphi 0, %s126
    %s141 = sphi 0, %s127
    %s147 = sphi 0, %s149
    %s150 = sphi 0, %s147
    %s151 = sphi 0, %s150
    %s167 = sphi 0, %s151
  $region4: #{effnet_forward.11} parent=0 // loop_header_branch
    %16 = sbr.rel (%p14) target = $region8
  $region5: #{effnet_forward.11} parent=0 // loop_body
    %s18 = ssub.s32 %s13, 1
    %s19 = ssub.s32 %s13, 2
    %s26 = sadd.s32 1, %s21
    %p27 = scmp.ge.s32.totalorder %s26, 1
    %s28 = scalar_select %p27, 0, %s26
    %s29 = sadd.s32 1, %s20
    %s30 = scalar_select %p27, %s29, %s20
    %p31 = scmp.ge.s32.totalorder %s30, 2
    %s32 = scalar_select %p31, 0, %s30
    %s33 = ssub.s32 %s20, %s32
    %s34 = ssub.s32 %s21, %s28
    %s35 = sor.u32 %s33, %s34
    %p36 = scmp.eq.s32.totalorder %s35, 0
    %s38 = sadd.s32 %s37, 1
    %s39 = scalar_select %p36, %s37, %s38
    %p42 = pneg %p36
    %p43 = scmp.eq.s32.totalorder %s13, 1
    %p44 = por %p42, %p43
    %p45 = scmp.ne.s32.totalorder %s37, %s40
    %p46 = scmp.eq.s32.totalorder %s13, 0
    %p47 = por %p45, %p46
    %p48 = scmp.ne.s32.totalorder %s37, %s40
    %p49 = scmp.eq.s32.totalorder %s18, 1
    %p50 = por %p48, %p49
    %p51 = scmp.ne.s32.totalorder %s40, %s41
    %p52 = scmp.eq.s32.totalorder %s18, 0
    %p53 = por %p51, %p52
    %p54 = scmp.ne.s32.totalorder %s40, %s41
    %p55 = scmp.eq.s32.totalorder %s19, 1
    %p56 = por %p54, %p55
    %p58 = scmp.ne.s32.totalorder %s41, %s57
    %p59 = scmp.eq.s32.totalorder %s19, 0
    %p60 = por %p58, %p59
    %s62 = sadd.s32 %s61, 1
    %p65 = scmp.eq.s32.totalorder %s13, 1
    %p66 = scmp.ne.s32.totalorder %s61, %s63
    %p67 = scmp.eq.s32.totalorder %s13, 0
    %p68 = por %p66, %p67
    %p69 = scmp.ne.s32.totalorder %s61, %s63
    %p70 = scmp.eq.s32.totalorder %s18, 1
    %p71 = por %p69, %p70
    %p72 = scmp.ne.s32.totalorder %s63, %s64
    %p73 = scmp.eq.s32.totalorder %s18, 0
    %p74 = por %p72, %p73
    %p75 = scmp.ne.s32.totalorder %s63, %s64
    %p76 = scmp.eq.s32.totalorder %s19, 1
    %p77 = por %p75, %p76
    %p79 = scmp.ne.s32.totalorder %s64, %s78
    %p80 = scmp.eq.s32.totalorder %s19, 0
    %p81 = por %p79, %p80
    %s83 = sadd.s32 %s82, 1
    %p86 = scmp.eq.s32.totalorder %s13, 1
    %p87 = scmp.ne.s32.totalorder %s82, %s84
    %p88 = scmp.eq.s32.totalorder %s13, 0
    %p89 = por %p87, %p88
    %p90 = scmp.ne.s32.totalorder %s82, %s84
    %p91 = scmp.eq.s32.totalorder %s18, 1
    %p92 = por %p90, %p91
    %p93 = scmp.ne.s32.totalorder %s84, %s85
    %p94 = scmp.eq.s32.totalorder %s18, 0
    %p95 = por %p93, %p94
    %p96 = scmp.ne.s32.totalorder %s84, %s85
    %p97 = scmp.eq.s32.totalorder %s19, 1
    %p98 = por %p96, %p97
    %p100 = scmp.ne.s32.totalorder %s85, %s99
    %p101 = scmp.eq.s32.totalorder %s19, 0
    %p102 = por %p100, %p101
    %s104 = sadd.s32 %s103, 1
    %p107 = scmp.eq.s32.totalorder %s13, 1
    %p108 = scmp.ne.s32.totalorder %s103, %s105
    %p109 = scmp.eq.s32.totalorder %s13, 0
    %p110 = por %p108, %p109
    %p111 = scmp.ne.s32.totalorder %s103, %s105
    %p112 = scmp.eq.s32.totalorder %s18, 1
    %p113 = por %p111, %p112
    %p114 = scmp.ne.s32.totalorder %s105, %s106
    %p115 = scmp.eq.s32.totalorder %s18, 0
    %p116 = por %p114, %p115
    %p117 = scmp.ne.s32.totalorder %s105, %s106
    %p118 = scmp.eq.s32.totalorder %s19, 1
    %p119 = por %p117, %p118
    %p121 = scmp.ne.s32.totalorder %s106, %s120
    %p122 = scmp.eq.s32.totalorder %s19, 0
    %p123 = por %p121, %p122
    %s125 = sadd.s32 %s124, 1
    %p128 = scmp.eq.s32.totalorder %s13, 1
    %p129 = scmp.ne.s32.totalorder %s124, %s126
    %p130 = scmp.eq.s32.totalorder %s13, 0
    %p131 = por %p129, %p130
    %p132 = scmp.ne.s32.totalorder %s124, %s126
    %p133 = scmp.eq.s32.totalorder %s18, 1
    %p134 = por %p132, %p133
    %p135 = scmp.ne.s32.totalorder %s126, %s127
    %p136 = scmp.eq.s32.totalorder %s18, 0
    %p137 = por %p135, %p136
    %p138 = scmp.ne.s32.totalorder %s126, %s127
    %p139 = scmp.eq.s32.totalorder %s19, 1
    %p140 = por %p138, %p139
    %p142 = scmp.ne.s32.totalorder %s127, %s141
    %p143 = scmp.eq.s32.totalorder %s19, 0
    %p144 = por %p142, %p143
    %s145 = ssub.s32 %s20, %s32
    %p146 = scmp.eq.s32.totalorder %s145, 0
    %s148 = sadd.s32 %s147, 1
    %s149 = scalar_select %p146, %s147, %s148
    %p152 = pneg %p146
    %p153 = scmp.eq.s32.totalorder %s13, 1
    %p154 = por %p152, %p153
    %p155 = scmp.ne.s32.totalorder %s147, %s150
    %p156 = scmp.eq.s32.totalorder %s13, 0
    %p157 = por %p155, %p156
    %p158 = scmp.ne.s32.totalorder %s147, %s150
    %p159 = scmp.eq.s32.totalorder %s18, 1
    %p160 = por %p158, %p159
    %p161 = scmp.ne.s32.totalorder %s150, %s151
    %p162 = scmp.eq.s32.totalorder %s18, 0
    %p163 = por %p161, %p162
    %p164 = scmp.ne.s32.totalorder %s150, %s151
    %p165 = scmp.eq.s32.totalorder %s19, 1
    %p166 = por %p164, %p165
    %p168 = scmp.ne.s32.totalorder %s151, %s167
    %p169 = scmp.eq.s32.totalorder %s19, 0
    %p170 = por %p168, %p169
    %p171 = scmp.le.s32.totalorder 1, %s13
    %p172 = scmp.lt.s32.totalorder %s13, 3
    %p173 = pnand %p171, %p172
    %p174 = pneg %p173
    // Predicated region
    $region9: #{effnet_forward.11} parent=5 // pred_check
      _
    $region10: #{effnet_forward.11} parent=5 // pred_check_branch
      %176 = sbr.rel (%p173) target = $region12
    $region11: #{effnet_forward.11} parent=5 // pred_region
      %s177 = ssub.s32 %s13, 1
      // Predicated region
      $region13: #{effnet_forward.11} parent=11 // pred_check
        %p178 = pneg %p74
      $region14: #{effnet_forward.11} parent=11 // pred_check_branch
        %180 = sbr.rel (%p178) target = $region16
      $region15: #{effnet_forward.11} parent=11 // pred_region
        _
      $region16: #{effnet_forward.11} parent=11 // pred_fallthru
        _
      // Predicated region
      $region17: #{effnet_forward.11} parent=11 // pred_check
        %p181 = pneg %p95
      $region18: #{effnet_forward.11} parent=11 // pred_check_branch
        %183 = sbr.rel (%p181) target = $region20
      $region19: #{effnet_forward.11} parent=11 // pred_region
        _
      $region20: #{effnet_forward.11} parent=11 // pred_fallthru
        _
      // Predicated region
      $region21: #{effnet_forward.11} parent=11 // pred_check
        %p184 = pneg %p116
      $region22: #{effnet_forward.11} parent=11 // pred_check_branch
        %186 = sbr.rel (%p184) target = $region24
      $region23: #{effnet_forward.11} parent=11 // pred_region
        _
      $region24: #{effnet_forward.11} parent=11 // pred_fallthru
        _
      // Predicated region
      $region25: #{effnet_forward.11} parent=11 // pred_check
        %p187 = pneg %p137
      $region26: #{effnet_forward.11} parent=11 // pred_check_branch
        %189 = sbr.rel (%p187) target = $region28
      $region27: #{effnet_forward.11} parent=11 // pred_region
        _
      $region28: #{effnet_forward.11} parent=11 // pred_fallthru
        _
    $region12: #{effnet_forward.11} parent=5 // pred_fallthru
      _
    %p190 = scmp.lt.s32.totalorder %s13, 2
    // Predicated region
    $region29: #{effnet_forward.11} parent=5 // pred_check
      %p191 = pneg %p190
    $region30: #{effnet_forward.11} parent=5 // pred_check_branch
      %193 = sbr.rel (%p191) target = $region32
    $region31: #{effnet_forward.11} parent=5 // pred_region
      // Predicated region
      $region33: #{effnet_forward.11} parent=31 // pred_check
        %p194 = pneg %p47
      $region34: #{effnet_forward.11} parent=31 // pred_check_branch
        %196 = sbr.rel (%p194) target = $region36
      $region35: #{effnet_forward.11} parent=31 // pred_region
        %s197 = smul.u32 8, %s21
        %p198 = scmp.lt.s32.totalorder %s20, 1
        %s199 = scalar_select %p198, %s20, 1
        %p200 = scmp.lt.s32.totalorder %s197, 7
        %s201 = scalar_select %p200, %s197, 7
        %s202 = smul.addr %s199, 8
        %s203 = sadd.s32 %s201, %s202
        %s204 = smul.addr %s203, 4
        %s205 = scalar_lea.vmem %s0, %s204
        %s206 = smul.u32 8, %s21
      $region36: #{effnet_forward.11} parent=31 // pred_fallthru
        _
    $region32: #{effnet_forward.11} parent=5 // pred_fallthru
      _
    %p207 = scmp.le.s32.totalorder 1, %s13
    %p208 = scmp.lt.s32.totalorder %s13, 3
    %p209 = pnand %p207, %p208
    %p210 = pneg %p209
    // Predicated region
    $region37: #{effnet_forward.11} parent=5 // pred_check
      _
    $region38: #{effnet_forward.11} parent=5 // pred_check_branch
      %212 = sbr.rel (%p209) target = $region40
    $region39: #{effnet_forward.11} parent=5 // pred_region
      %s213 = ssub.s32 %s13, 1
      %s214 = smul.u32 8, %s23
      %p215 = scmp.lt.s32.totalorder %s22, 1
      %s216 = scalar_select %p215, %s22, 1
      %p217 = scmp.lt.s32.totalorder %s214, 7
      %s218 = scalar_select %p217, %s214, 7
      %s219 = smul.addr %s216, 8
      %s220 = sadd.s32 %s218, %s219
      %s221 = smul.addr %s220, 4
      %s222 = scalar_lea.vmem %s0, %s221
      %p223 = pneg %p53
      %p224 = pneg %p50
      %p225 = pneg %p74
      %p226 = pneg %p71
      %p227 = pneg %p95
      %p228 = pneg %p92
      %p229 = pneg %p116
      %p230 = pneg %p113
      %p231 = pneg %p137
      %p232 = pneg %p134
      %p233 = pneg %p163
      %p234 = pneg %p160
      %p235 = scmp.lt.s32.totalorder %s22, 1
      %s236 = scalar_select %p235, %s22, 1
      %s237 = scalar_lea.vmem %s5, %s236
      %s238 = smul.u32 8, %s23
      %p239 = scmp.lt.s32.totalorder %s22, 1
      %s240 = scalar_select %p239, %s22, 1
      %p241 = scmp.lt.s32.totalorder %s238, 7
      %s242 = scalar_select %p241, %s238, 7
      %s243 = smul.addr %s240, 8
      %s244 = sadd.s32 %s242, %s243
      %s245 = smul.addr %s244, 4
      %s246 = scalar_lea.vmem %s0, %s245
      %s247 = smul.u32 8, %s23
      %p248 = scmp.lt.s32.totalorder %s22, 1
      %s249 = scalar_select %p248, %s22, 1
      %s250 = scalar_lea.vmem %s5, %s249
      %p252 = scmp.eq.s32.totalorder %s23, 0
      // Predicated region
      $region41: #{effnet_forward.11} parent=39 // pred_check
        %p253 = pneg %p252
      $region42: #{effnet_forward.11} parent=39 // pred_check_branch
        %255 = sbr.rel (%p253) target = $region44
      $region43: #{effnet_forward.11} parent=39 // pred_region
        %256 = vst [vmem:[#allocation2] sm:$0x1] 0.0
      $region44: #{effnet_forward.11} parent=39 // pred_fallthru
        _
      %v257 = vld [vmem:[%s246] sm:$0xf]
      %v258 = vld [vmem:[%s246 + $0x4] sm:$0xf]
      %v259 = vld [vmem:[%s246 + $0x8] sm:$0xf]
      %v260 = vld [vmem:[%s246 + $0xc] sm:$0xf]
      %v261 = vld [vmem:[%s246 + $0x10] sm:$0xf]
      %v262 = vld [vmem:[%s246 + $0x14] sm:$0xf]
      %v263 = vld [vmem:[%s246 + $0x18] sm:$0xf]
      %v264 = vld [vmem:[%s246 + $0x1c] sm:$0xf]
      %v265 = vld [vmem:[%s1] sm:$0xf]
      %v266 = vld [vmem:[%s1 + $0x4] sm:$0xf]
      %v267 = vld [vmem:[%s1 + $0x8] sm:$0xf]
      %v268 = vld [vmem:[%s1 + $0xc] sm:$0xf]
      %v269 = vld [vmem:[%s2] sm:$0x1]
      %v271 = vlaneseq
      %v272 = vshrl.u32 %v271, 7
      %v273 = vsub.s32 0, %v272
      %v274 = vrot.slane %v269, %v273
      %v284 = vunpack.c.l.b16 %v257
      %v285 = vunpack.c.l.b16 %v258
      %v286 = vunpack.c.l.b16 %v259
      %v287 = vunpack.c.l.b16 %v260
      %v288 = vunpack.c.l.b16 %v261
      %v289 = vunpack.c.l.b16 %v262
      %v290 = vunpack.c.l.b16 %v263
      %v291 = vunpack.c.l.b16 %v264
      %v292 = vpack.c.b16 %v285, %v284
      %v293 = vpack.c.b16 %v287, %v286
      %v294 = vpack.c.b16 %v289, %v288
      %v295 = vpack.c.b16 %v291, %v290
      %v300 = vunpack.c.l.b16 %v265
      %v301 = vunpack.c.l.b16 %v266
      %v302 = vunpack.c.l.b16 %v267
      %v303 = vunpack.c.l.b16 %v268
      %v304 = vpack.c.b16 %v301, %v300
      %v305 = vpack.c.b16 %v303, %v302
      %vm308 = vcmask 261120
      %v310 = vsel %vm308, %v292, 0
      %v313 = vsel %vm308, %v293, 0
      %v316 = vsel %vm308, %v294, 0
      %v319 = vsel %vm308, %v295, 0
      %321 = vmatprep.subr.bf16.mxu0 0
      %322 = vmatpush1.bf16.msra.mxu0 %v304
      %323 = vmatprep.subr.bf16.mxu0 0
      %324 = vmatpush1.bf16.msra.mxu0 %v305
      %325 = vmatprep.subr.bf16.mxu0 0
      %326 = vmatpush1.bf16.msra.mxu0 0
      %327 = vmatprep.subr.bf16.mxu0 0
      %328 = vmatpush1.bf16.msra.mxu0 0
      %329 = vmatprep.subr.bf16.mxu0 0
      %330 = vmatpush1.bf16.msra.mxu0 0
      %331 = vmatprep.subr.bf16.mxu0 0
      %332 = vmatpush1.bf16.msra.mxu0 0
      %333 = vmatprep.subr.bf16.mxu0 0
      %334 = vmatpush1.bf16.msra.mxu0 0
      %335 = vmatprep.subr.bf16.mxu0 0
      %336 = vmatpush1.bf16.msra.mxu0 0
      %337 = vmatprep.subr.bf16.mxu0 0
      %338 = vmatpush1.bf16.msra.mxu0 0
      %339 = vmatprep.subr.bf16.mxu0 0
      %340 = vmatpush1.bf16.msra.mxu0 0
      %341 = vmatprep.subr.bf16.mxu0 0
      %342 = vmatpush1.bf16.msra.mxu0 0
      %343 = vmatprep.subr.bf16.mxu0 0
      %344 = vmatpush1.bf16.msra.mxu0 0
      %345 = vmatprep.subr.bf16.mxu0 0
      %346 = vmatpush1.bf16.msra.mxu0 0
      %347 = vmatprep.subr.bf16.mxu0 0
      %348 = vmatpush1.bf16.msra.mxu0 0
      %349 = vmatprep.subr.bf16.mxu0 0
      %350 = vmatpush1.bf16.msra.mxu0 0
      %351 = vmatprep.subr.bf16.mxu0 0
      %352 = vmatpush1.bf16.msra.mxu0 0
      %353 = vmatprep.mubr.bf16.mxu0 0
      %354 = vmatmul.mubr.bf16.gmra.mrb[0].mxu0 %v310
      %v355 = vpop.f32.mrb[0].mxu0
      %v356 = vadd.f32 %v274, %v355
      %v357 = vpop.f32.mrb[0].mxu0
      %v358 = vpop.f32.mrb[0].mxu0
      %v359 = vadd.f32 %v274, %v358
      %v360 = vpop.f32.mrb[0].mxu0
      %361 = vmatprep.mubr.bf16.mxu0 0
      %362 = vmatmul.mubr.bf16.gmra.mrb[0].mxu0 %v313
      %v363 = vpop.f32.mrb[0].mxu0
      %v364 = vadd.f32 %v274, %v363
      %v365 = vpop.f32.mrb[0].mxu0
      %v366 = vpop.f32.mrb[0].mxu0
      %v367 = vadd.f32 %v274, %v366
      %v368 = vpop.f32.mrb[0].mxu0
      %369 = vmatprep.mubr.bf16.mxu0 0
      %370 = vmatmul.mubr.bf16.gmra.mrb[0].mxu0 %v316
      %v371 = vpop.f32.mrb[0].mxu0
      %v372 = vadd.f32 %v274, %v371
      %v373 = vpop.f32.mrb[0].mxu0
      %v374 = vpop.f32.mrb[0].mxu0
      %v375 = vadd.f32 %v274, %v374
      %v376 = vpop.f32.mrb[0].mxu0
      %377 = vmatprep.mubr.bf16.mxu0 0
      %378 = vmatmul.mubr.bf16.gmra.mrb[0].mxu0 %v319
      %v379 = vpop.f32.mrb[0].mxu0
      %v380 = vadd.f32 %v274, %v379
      %v381 = vpop.f32.mrb[0].mxu0
      %v382 = vpop.f32.mrb[0].mxu0
      %v383 = vadd.f32 %v274, %v382
      %v384 = vpop.f32.mrb[0].mxu0
      %385 = vdwg.mxu0
      %v386 = vxor.u32 %v356, 2147483648
      %v387 = vxor.u32 %v359, 2147483648
      %v388 = vxor.u32 %v364, 2147483648
      %v389 = vxor.u32 %v367, 2147483648
      %v390 = vxor.u32 %v372, 2147483648
      %v391 = vxor.u32 %v375, 2147483648
      %v392 = vxor.u32 %v380, 2147483648
      %v393 = vxor.u32 %v383, 2147483648
      %v394 = vmul.f32 %v386, 1.442695
      %v395 = vpow.pop %v394
      %v396 = vmul.f32 %v387, 1.442695
      %v397 = vpow.pop %v396
      %v398 = vmul.f32 %v388, 1.442695
      %v399 = vpow.pop %v398
      %v400 = vmul.f32 %v389, 1.442695
      %v401 = vpow.pop %v400
      %v402 = vmul.f32 %v390, 1.442695
      %v403 = vpow.pop %v402
      %v404 = vmul.f32 %v391, 1.442695
      %v405 = vpow.pop %v404
      %v406 = vmul.f32 %v392, 1.442695
      %v407 = vpow.pop %v406
      %v408 = vmul.f32 %v393, 1.442695
      %v409 = vpow.pop %v408
      %v410 = vadd.f32 %v395, 1.0
      %v411 = vadd.f32 %v397, 1.0
      %v412 = vadd.f32 %v399, 1.0
      %v413 = vadd.f32 %v401, 1.0
      %v414 = vadd.f32 %v403, 1.0
      %v415 = vadd.f32 %v405, 1.0
      %v416 = vadd.f32 %v407, 1.0
      %v417 = vadd.f32 %v409, 1.0
      %v418 = vrcp.pop %v410
      %v419 = vmul.f32 1.0, %v418
      %v420 = vrcp.pop %v411
      %v421 = vmul.f32 1.0, %v420
      %v422 = vrcp.pop %v412
      %v423 = vmul.f32 1.0, %v422
      %v424 = vrcp.pop %v413
      %v425 = vmul.f32 1.0, %v424
      %v426 = vrcp.pop %v414
      %v427 = vmul.f32 1.0, %v426
      %v428 = vrcp.pop %v415
      %v429 = vmul.f32 1.0, %v428
      %v430 = vrcp.pop %v416
      %v431 = vmul.f32 1.0, %v430
      %v432 = vrcp.pop %v417
      %v433 = vmul.f32 1.0, %v432
      %v434 = vmul.f32 %v356, %v419
      %v435 = vmul.f32 %v359, %v421
      %v436 = vmul.f32 %v364, %v423
      %v437 = vmul.f32 %v367, %v425
      %v438 = vmul.f32 %v372, %v427
      %v439 = vmul.f32 %v375, %v429
      %v440 = vmul.f32 %v380, %v431
      %v441 = vmul.f32 %v383, %v433
      %s442 = smul.u32 %s23, 64
      %v443 = vlaneseq
      %v444 = vshrl.u32 %v443, 7
      %v445 = vadd.s32 %v444, 8
      %v446 = vadd.s32 %v444, 16
      %v447 = vadd.s32 %v444, 24
      %v448 = vadd.s32 %v444, 32
      %v449 = vadd.s32 %v444, 40
      %v450 = vadd.s32 %v444, 48
      %v451 = vadd.s32 %v444, 56
      %v452 = vstv %s442
      %v453 = vadd.s32 %v452, %v444
      %v454 = vadd.s32 %v452, %v445
      %v455 = vadd.s32 %v452, %v446
      %v456 = vadd.s32 %v452, %v447
      %v457 = vadd.s32 %v452, %v448
      %v458 = vadd.s32 %v452, %v449
      %v459 = vadd.s32 %v452, %v450
      %v460 = vadd.s32 %v452, %v451
      %vm461 = vcmp.lt.s32.totalorder %v453, 64
      %vm462 = vcmp.lt.s32.totalorder %v454, 64
      %vm463 = vcmp.lt.s32.totalorder %v455, 64
      %vm464 = vcmp.lt.s32.totalorder %v456, 64
      %vm465 = vcmp.lt.s32.totalorder %v457, 64
      %vm466 = vcmp.lt.s32.totalorder %v458, 64
      %vm467 = vcmp.lt.s32.totalorder %v459, 64
      %vm468 = vcmp.lt.s32.totalorder %v460, 64
      %v469 = vsel %vm461, 1, 0
      %v470 = vsel %vm462, 1, 0
      %v471 = vsel %vm463, 1, 0
      %v472 = vsel %vm464, 1, 0
      %v473 = vsel %vm465, 1, 0
      %v474 = vsel %vm466, 1, 0
      %v475 = vsel %vm467, 1, 0
      %v476 = vsel %vm468, 1, 0
      %vm477 = vcmp.eq.s32.totalorder %v469, 1
      %vm478 = vcmp.eq.s32.totalorder %v470, 1
      %vm479 = vcmp.eq.s32.totalorder %v471, 1
      %vm480 = vcmp.eq.s32.totalorder %v472, 1
      %vm481 = vcmp.eq.s32.totalorder %v473, 1
      %vm482 = vcmp.eq.s32.totalorder %v474, 1
      %vm483 = vcmp.eq.s32.totalorder %v475, 1
      %vm484 = vcmp.eq.s32.totalorder %v476, 1
      %v485 = vsel %vm477, %v434, 0.0
      %v486 = vsel %vm478, %v435, 0.0
      %v487 = vsel %vm479, %v436, 0.0
      %v488 = vsel %vm480, %v437, 0.0
      %v489 = vsel %vm481, %v438, 0.0
      %v490 = vsel %vm482, %v439, 0.0
      %v491 = vsel %vm483, %v440, 0.0
      %v492 = vsel %vm484, %v441, 0.0
      %v493 = vld [vmem:[#allocation2] sm:$0x1]
      %v494 = vadd.f32 %v485, %v486
      %v495 = vadd.f32 %v494, %v487
      %v496 = vadd.f32 %v495, %v488
      %v497 = vadd.f32 %v496, %v489
      %v498 = vadd.f32 %v497, %v490
      %v499 = vadd.f32 %v498, %v491
      %v500 = vadd.f32 %v499, %v492
      %v501 = vrot.slane %v500, 4
      %v502 = vadd.f32 %v500, %v501
      %v503 = vrot.slane %v502, 2
      %v504 = vadd.f32 %v502, %v503
      %v505 = vrot.slane %v504, 1
      %v506 = vadd.f32 %v504, %v505
      %v507 = vadd.f32 %v493, %v506
      %508 = vst [vmem:[#allocation2] sm:$0x1] %v507
      // Predicated region
      $region45: #{effnet_forward.11} parent=39 // pred_check
        %p509 = pneg %p252
      $region46: #{effnet_forward.11} parent=39 // pred_check_branch
        %511 = sbr.rel (%p509) target = $region48
      $region47: #{effnet_forward.11} parent=39 // pred_region
        %v512 = vld [vmem:[#allocation2] sm:$0x1]
        %v513 = vmul.f32 %v512, 0.015625
        %v514 = vld [vmem:[%s3] sm:$0x1]
        %v515 = vmul.f32 %v513, %v514
        %vm516 = vcmask 1040384
        %v517 = vsel %vm516, %v515, 0.0
        %518 = vadd.xlane.f32.xlu0 %v517
        %v519 = vpop.xlane.xlu0 %518
        %v520 = vld [vmem:[#allocation3] sm:$0x1]
        %v521 = vadd.f32 %v519, %v520
        %v522 = vsub.f32 %v521, %v521
        %v523 = vmul.f32 %v522, 1.442695
        %v524 = vpow.pop %v523
        %v525 = vadd.f32 %v524, 0.0
        %v526 = vrcp.pop %v525
        %v527 = vmul.f32 %v524, %v526
        %vm528 = vcmask 0
        %529 = vst.msk [vmem:[%s250] sm:$0x1] %vm528, %v527
      $region48: #{effnet_forward.11} parent=39 // pred_fallthru
        _
      %p530 = scmp.lt.s32.totalorder %s22, 1
      %s531 = scalar_select %p530, %s22, 1
      %s532 = scalar_lea.vmem %s5, %s531
      // Predicated region
      $region49: #{effnet_forward.11} parent=39 // pred_check
        %p533 = pneg %p160
      $region50: #{effnet_forward.11} parent=39 // pred_check_branch
        %535 = sbr.rel (%p533) target = $region52
      $region51: #{effnet_forward.11} parent=39 // pred_region
        _
      $region52: #{effnet_forward.11} parent=39 // pred_fallthru
        _
    $region40: #{effnet_forward.11} parent=5 // pred_fallthru
      _
    %p536 = scmp.le.s32.totalorder 2, %s13
    // Predicated region
    $region53: #{effnet_forward.11} parent=5 // pred_check
      %p537 = pneg %p536
    $region54: #{effnet_forward.11} parent=5 // pred_check_branch
      %539 = sbr.rel (%p537) target = $region56
    $region55: #{effnet_forward.11} parent=5 // pred_region
      %s540 = ssub.s32 %s13, 2
      // Predicated region
      $region57: #{effnet_forward.11} parent=55 // pred_check
        %p541 = pneg %p166
      $region58: #{effnet_forward.11} parent=55 // pred_check_branch
        %543 = sbr.rel (%p541) target = $region60
      $region59: #{effnet_forward.11} parent=55 // pred_region
        %p544 = scmp.lt.s32.totalorder %s24, 1
        %s545 = scalar_select %p544, %s24, 1
        %s546 = scalar_lea.vmem %s5, %s545
      $region60: #{effnet_forward.11} parent=55 // pred_fallthru
        _
    $region56: #{effnet_forward.11} parent=5 // pred_fallthru
      _
  $region6: #{effnet_forward.11} parent=0 // loop_footer
    %s17 = sadd.s32 1, %s13
  $region7: #{effnet_forward.11} parent=0 // loop_footer_branch
    %12 = sbr.rel target = $region3
  $region8: #{effnet_forward.11} parent=0 // loop_exit
    _

</llo_original>
